<compile_context>
chip_gen: v5e
topology: v5e:2x2
jax: 0.10.0
libtpu: 0.0.40
codegen_flags: <defaults>
</compile_context>

<pallas_src>
import math
import functools

import jax
import jax.numpy as jnp
from jax import lax
from jax.experimental import pallas as pl
from jax.experimental.pallas import tpu as pltpu

PAD = 0
MASK = 5
NEG_BIG = -1e18


# ----------------------------- kernel helpers ------------------------------

def _layer_norm(x, g, b, eps=1e-5):
    # PyTorch nn.LayerNorm semantics: biased variance over last dim, eps=1e-5.
    mu = jnp.mean(x, axis=-1, keepdims=True)
    var = jnp.mean((x - mu) ** 2, axis=-1, keepdims=True)
    return (x - mu) * lax.rsqrt(var + eps) * g + b


def _bf16(x):
    return x.astype(jnp.bfloat16)


# ------------------------- fused encoder kernel -----------------------------
# grid = (batch, layer); activation carried across the layer axis in VMEM.

def encoder_kernel(x_ref, mb_ref,
                   ln1_g_ref, ln1_b_ref,
                   wq_ref, bq_ref, wk_ref, bk_ref, wv_ref, bv_ref,
                   wo_ref, bo_ref,
                   ln2_g_ref, ln2_b_ref,
                   w1_ref, b1_ref, w2_ref, b2_ref,
                   fg_ref, fb_ref, pw_ref, pb_ref,
                   out_ref, pool_ref,
                   carry_ref,
                   *, n_head, dim_per_head):
    l = pl.program_id(1)
    n_layers = pl.num_programs(1)

    # Initialize the per-sequence carry from the embedding at the first layer.
    @pl.when(l == 0)
    def _():
        carry_ref[...] = x_ref[0]

    x = carry_ref[...]                           # (S, D) f32
    S, D = x.shape
    H, Dh = n_head, dim_per_head

    # ---------------- pre-LN multi-head self-attention ----------------
    xn = _layer_norm(x, ln1_g_ref[0], ln1_b_ref[0])          # (S, D) f32
    xnb = jnp.broadcast_to(_bf16(xn), (H, S, D))             # heads on batch axis

    # Per-head projections as batched matmuls (K = D, bf16 * bf16 -> f32).
    qh = jnp.einsum('hsd,hde->hse', xnb, wq_ref[0],
                    preferred_element_type=jnp.float32) + bq_ref[0]   # (H,S,Dh)
    kh = jnp.einsum('hsd,hde->hse', xnb, wk_ref[0],
                    preferred_element_type=jnp.float32) + bk_ref[0]
    vh = jnp.einsum('hsd,hde->hse', xnb, wv_ref[0],
                    preferred_element_type=jnp.float32) + bv_ref[0]

    inv_sqrt_d = jnp.float32(1.0 / math.sqrt(dim_per_head))
    scores = jnp.einsum('hqe,hke->hqk', _bf16(qh), _bf16(kh),
                        preferred_element_type=jnp.float32)           # (H,S,S)
    # Additive mask bias (key positions): masked -> -1e18, else 0.
    scores = scores * inv_sqrt_d + mb_ref[...]                        # (1,1,S) bcast

    scores = scores - jnp.max(scores, axis=-1, keepdims=True)
    p = jnp.exp(scores)
    p = p * pl.reciprocal(jnp.sum(p, axis=-1, keepdims=True), approx=True)

    ctx = jnp.einsum('hqk,hke->hqe', _bf16(p), _bf16(vh),
                     preferred_element_type=jnp.float32)              # (H,S,Dh)
    # Output projection: per-head (Dh x D) matmuls summed over heads
    # (== combine_heads + final_linear, but without any lane concatenate).
    attn = jnp.einsum('hqe,hed->hqd', _bf16(ctx), wo_ref[0],
                      preferred_element_type=jnp.float32)             # (H,S,D)
    attn_out = jnp.sum(attn, axis=0) + bo_ref[0]                      # (S,D)
    out1 = attn_out + x                        # residual (dropout = identity)

    # ---------------- pre-LN position-wise feed-forward ----------------
    xn2 = _layer_norm(out1, ln2_g_ref[0], ln2_b_ref[0])
    inter = jnp.maximum(
        jnp.dot(_bf16(xn2), w1_ref[0], preferred_element_type=jnp.float32)
        + b1_ref[0], 0.0)                                             # (S,DF)
    ffn = jnp.dot(_bf16(inter), w2_ref[0],
                  preferred_element_type=jnp.float32) + b2_ref[0]     # (S,D)
    new_x = ffn + out1
    carry_ref[...] = new_x

    # ------------- final LayerNorm + Pooler fused at the last layer ----------
    @pl.when(l == n_layers - 1)
    def _():
        xf = _layer_norm(new_x, fg_ref[...], fb_ref[...])             # (S,D)
        out_ref[0] = xf.astype(out_ref.dtype)
        pooled = jnp.tanh(
            jnp.dot(_bf16(xf[0:1, :]), pw_ref[...],
                    preferred_element_type=jnp.float32) + pb_ref[...])
        pool_ref[0] = pooled.astype(pool_ref.dtype)


# ------------------------------ pallas wrapper -------------------------------

LAYER_ORDER = ["ln1_g", "ln1_b", "wq", "bq", "wk", "bk", "wv", "bv",
               "wo", "bo", "ln2_g", "ln2_b", "w1", "b1", "w2", "b2"]
FINAL_ORDER = ["fg", "fb", "pw", "pb"]


def _layer_spec(arr):
    nd = arr.ndim
    return pl.BlockSpec((1,) + arr.shape[1:],
                        lambda b, l, _nd=nd: (l,) + (0,) * (_nd - 1))


def _const_spec(arr):
    nd = arr.ndim
    return pl.BlockSpec(arr.shape, lambda b, l, _nd=nd: (0,) * _nd)


def transformer_encoder_pallas(emb, mask_bias, packed, n_head, dim_per_head):
    B, S, D = emb.shape
    L = packed["wq"].shape[0]

    layer_args = [packed[k] for k in LAYER_ORDER]
    final_args = [packed[k] for k in FINAL_ORDER]

    x_spec = pl.BlockSpec((1, S, D), lambda b, l: (b, 0, 0))
    mb_spec = pl.BlockSpec((1, 1, S), lambda b, l: (b, 0, 0))
    out_spec = pl.BlockSpec((1, S, D), lambda b, l: (b, 0, 0))
    pool_spec = pl.BlockSpec((1, 1, D), lambda b, l: (b, 0, 0))

    in_specs = ([x_spec, mb_spec]
                + [_layer_spec(a) for a in layer_args]
                + [_const_spec(a) for a in final_args])

    kernel = functools.partial(encoder_kernel,
                               n_head=n_head, dim_per_head=dim_per_head)

    out, pooled = pl.pallas_call(
        kernel,
        out_shape=(jax.ShapeDtypeStruct((B, S, D), jnp.float32),
                   jax.ShapeDtypeStruct((B, 1, D), jnp.float32)),
        grid=(B, L),
        in_specs=in_specs,
        out_specs=(out_spec, pool_spec),
        scratch_shapes=[pltpu.VMEM((S, D), jnp.float32)],    # layer-to-layer carry
        compiler_params=pltpu.CompilerParams(
            dimension_semantics=("parallel", "arbitrary")),
    )(emb, mask_bias, *layer_args, *final_args)
    return out, pooled[:, 0, :]


# ------------------------------ JAX glue code --------------------------------

def embed(src, emb_table):
    """Embedding lookup * sqrt(D) + sinusoidal position signal (plain JAX glue)."""
    B, S = src.shape
    D = emb_table.shape[1]
    emb = emb_table[src].astype(jnp.float32) * (float(D) ** 0.5)       # (B, S, D)
    num_ts = D // 2
    log_inc = math.log(10000.0 / 1.0) / (float(num_ts) - 1.0)
    inv_ts = jnp.exp(jnp.arange(num_ts, dtype=jnp.float32) * (-log_inc))
    pos = jnp.arange(S, dtype=jnp.float32)
    scaled = pos[:, None] * inv_ts[None, :]                            # (S, num_ts)
    signal = jnp.concatenate([jnp.sin(scaled), jnp.cos(scaled)], axis=1)  # (S, D)
    return emb + signal[None, :, :]


def transformer_encoder_forward(src, emb_table, packed, n_head, dim_per_head):
    emb = embed(src, emb_table)
    # enc_mask = (src == PAD) | (src == MASK)   (pretrain=True), mask over keys.
    masked = jnp.logical_or(src == PAD, src == MASK)
    mask_bias = jnp.where(masked, jnp.float32(NEG_BIG),
                          jnp.float32(0.0)).astype(jnp.float32)[:, None, :]  # (B,1,S)
    return transformer_encoder_pallas(emb, mask_bias, packed, n_head, dim_per_head)


# ---------------------------- deterministic params ---------------------------

def init_params(key, n_src_vocab, n_layers, n_head, d_model, d_inner_hid,
                dim_per_head):
    hd = n_head * dim_per_head
    keys = jax.random.split(key, n_layers + 2)

    scale = d_model ** 0.5
    emb_table = jax.random.uniform(keys[0], (n_src_vocab, d_model),
                                   jnp.float32, -1.0 / scale, 1.0 / scale)
    emb_table = emb_table.at[PAD].set(0.0)        # padding_idx row zeroed

    def lin(k, fan_in, fan_out):
        return jax.random.normal(k, (fan_in, fan_out), jnp.float32) * 0.05

    per = {k: [] for k in LAYER_ORDER}
    for i in range(n_layers):
        ks = jax.random.split(keys[1 + i], 6)
        per["ln1_g"].append(jnp.ones((1, d_model), jnp.float32))
        per["ln1_b"].append(jnp.zeros((1, d_model), jnp.float32))
        per["wq"].append(lin(ks[0], d_model, hd))
        per["bq"].append(jnp.zeros((1, hd), jnp.float32))
        per["wk"].append(lin(ks[1], d_model, hd))
        per["bk"].append(jnp.zeros((1, hd), jnp.float32))
        per["wv"].append(lin(ks[2], d_model, hd))
        per["bv"].append(jnp.zeros((1, hd), jnp.float32))
        per["wo"].append(lin(ks[3], hd, d_model))
        per["bo"].append(jnp.zeros((1, d_model), jnp.float32))
        per["ln2_g"].append(jnp.ones((1, d_model), jnp.float32))
        per["ln2_b"].append(jnp.zeros((1, d_model), jnp.float32))
        per["w1"].append(lin(ks[4], d_model, d_inner_hid))
        per["b1"].append(jnp.zeros((1, d_inner_hid), jnp.float32))
        per["w2"].append(lin(ks[5], d_inner_hid, d_model))
        per["b2"].append(jnp.zeros((1, d_model), jnp.float32))

    stk = {k: jnp.stack(v, axis=0) for k, v in per.items()}   # leading L axis

    L, H, Dh, D, DF = n_layers, n_head, dim_per_head, d_model, d_inner_hid
    packed = dict(
        ln1_g=stk["ln1_g"], ln1_b=stk["ln1_b"],
        # Per-head projection weights, bf16 for the MXU: (L, H, D, Dh).
        wq=stk["wq"].reshape(L, D, H, Dh).transpose(0, 2, 1, 3).astype(jnp.bfloat16),
        wk=stk["wk"].reshape(L, D, H, Dh).transpose(0, 2, 1, 3).astype(jnp.bfloat16),
        wv=stk["wv"].reshape(L, D, H, Dh).transpose(0, 2, 1, 3).astype(jnp.bfloat16),
        bq=stk["bq"].reshape(L, H, 1, Dh),
        bk=stk["bk"].reshape(L, H, 1, Dh),
        bv=stk["bv"].reshape(L, H, 1, Dh),
        # Output projection split per head: (L, H, Dh, D).
        wo=stk["wo"].reshape(L, H, Dh, D).astype(jnp.bfloat16),
        bo=stk["bo"],
        ln2_g=stk["ln2_g"], ln2_b=stk["ln2_b"],
        w1=stk["w1"].astype(jnp.bfloat16), b1=stk["b1"],
        w2=stk["w2"].astype(jnp.bfloat16), b2=stk["b2"],
        # Final LayerNorm + Pooler (weight.data.normal_(), bias zeroed).
        fg=jnp.ones((1, D), jnp.float32), fb=jnp.zeros((1, D), jnp.float32),
        pw=jax.random.normal(keys[-1], (D, D), jnp.float32).astype(jnp.bfloat16),
        pb=jnp.zeros((1, D), jnp.float32),
    )
    return emb_table, packed


# ----------------------------------- main ------------------------------------

if __name__ == "__main__":
    B, S = 2, 8
    n_src_vocab = 32
    n_layers = 2
    n_head = 4
    d_model = 128            # multiple of 128 -> lane-dense activations/stores
    d_inner_hid = 256
    dim_per_head = d_model // n_head        # dim_per_head=None in the module

    key = jax.random.PRNGKey(0)
    k_param, k_src = jax.random.split(key)

    emb_table, packed = init_params(
        k_param, n_src_vocab, n_layers, n_head, d_model, d_inner_hid,
        dim_per_head)

    src = jax.random.randint(k_src, (B, S), 1, n_src_vocab, dtype=jnp.int32)
    src = src.at[0, -1].set(PAD)    # exercise PAD masking
    src = src.at[1, 2].set(MASK)    # exercise MASK-token masking (pretrain=True)

    out, sent_encode = transformer_encoder_forward(
        src, emb_table, packed, n_head, dim_per_head)
    jax.block_until_ready((out, sent_encode))

    assert out.shape == (B, S, d_model)
    assert sent_encode.shape == (B, d_model)
    # TODO(synk): dropout layers are identity (inference semantics); attention
    # probs (top_attn) and KV caches returned by the PyTorch attention are not
    # needed for the encoder forward and are not produced.
    print("KERNEL_OK")
</pallas_src>

<mosaic_0001>
module attributes {stable_mosaic.version = 11 : i64} {
  func.func @encoder_kernel(%arg0: i32, %arg1: i32, %arg2: memref<1x8x128xf32, #tpu.memory_space<vmem>>, %arg3: memref<1x1x8xf32, #tpu.memory_space<vmem>>, %arg4: memref<1x1x128xf32, #tpu.memory_space<vmem>>, %arg5: memref<1x1x128xf32, #tpu.memory_space<vmem>>, %arg6: memref<1x4x128x32xbf16, #tpu.memory_space<vmem>>, %arg7: memref<1x4x1x32xf32, #tpu.memory_space<vmem>>, %arg8: memref<1x4x128x32xbf16, #tpu.memory_space<vmem>>, %arg9: memref<1x4x1x32xf32, #tpu.memory_space<vmem>>, %arg10: memref<1x4x128x32xbf16, #tpu.memory_space<vmem>>, %arg11: memref<1x4x1x32xf32, #tpu.memory_space<vmem>>, %arg12: memref<1x4x32x128xbf16, #tpu.memory_space<vmem>>, %arg13: memref<1x1x128xf32, #tpu.memory_space<vmem>>, %arg14: memref<1x1x128xf32, #tpu.memory_space<vmem>>, %arg15: memref<1x1x128xf32, #tpu.memory_space<vmem>>, %arg16: memref<1x128x256xbf16, #tpu.memory_space<vmem>>, %arg17: memref<1x1x256xf32, #tpu.memory_space<vmem>>, %arg18: memref<1x256x128xbf16, #tpu.memory_space<vmem>>, %arg19: memref<1x1x128xf32, #tpu.memory_space<vmem>>, %arg20: memref<1x128xf32, #tpu.memory_space<vmem>>, %arg21: memref<1x128xf32, #tpu.memory_space<vmem>>, %arg22: memref<128x128xbf16, #tpu.memory_space<vmem>>, %arg23: memref<1x128xf32, #tpu.memory_space<vmem>>, %arg24: memref<1x8x128xf32, #tpu.memory_space<vmem>>, %arg25: memref<1x1x128xf32, #tpu.memory_space<vmem>>, %arg26: memref<8x128xf32, #tpu.memory_space<vmem>>) attributes {dimension_semantics = [#tpu.dimension_semantics<parallel>, #tpu.dimension_semantics<arbitrary>], iteration_bounds = array<i64: 2, 2>, scalar_prefetch = 0 : i64, scratch_operands = 1 : i64, tpu.core_type = #tpu.core_type<tc>, window_params = [{transform_indices = @transform_0, window_bounds = array<i64: 1, 8, 128>}, {transform_indices = @transform_1, window_bounds = array<i64: 1, 1, 8>}, {transform_indices = @transform_2, window_bounds = array<i64: 1, 1, 128>}, {transform_indices = @transform_3, window_bounds = array<i64: 1, 1, 128>}, {transform_indices = @transform_4, window_bounds = array<i64: 1, 4, 128, 32>}, {transform_indices = @transform_5, window_bounds = array<i64: 1, 4, 1, 32>}, {transform_indices = @transform_6, window_bounds = array<i64: 1, 4, 128, 32>}, {transform_indices = @transform_7, window_bounds = array<i64: 1, 4, 1, 32>}, {transform_indices = @transform_8, window_bounds = array<i64: 1, 4, 128, 32>}, {transform_indices = @transform_9, window_bounds = array<i64: 1, 4, 1, 32>}, {transform_indices = @transform_10, window_bounds = array<i64: 1, 4, 32, 128>}, {transform_indices = @transform_11, window_bounds = array<i64: 1, 1, 128>}, {transform_indices = @transform_12, window_bounds = array<i64: 1, 1, 128>}, {transform_indices = @transform_13, window_bounds = array<i64: 1, 1, 128>}, {transform_indices = @transform_14, window_bounds = array<i64: 1, 128, 256>}, {transform_indices = @transform_15, window_bounds = array<i64: 1, 1, 256>}, {transform_indices = @transform_16, window_bounds = array<i64: 1, 256, 128>}, {transform_indices = @transform_17, window_bounds = array<i64: 1, 1, 128>}, {pipeline_mode = #tpu.pipeline_mode<synchronous>, transform_indices = @transform_18, window_bounds = array<i64: 1, 128>}, {pipeline_mode = #tpu.pipeline_mode<synchronous>, transform_indices = @transform_19, window_bounds = array<i64: 1, 128>}, {pipeline_mode = #tpu.pipeline_mode<synchronous>, transform_indices = @transform_20, window_bounds = array<i64: 128, 128>}, {pipeline_mode = #tpu.pipeline_mode<synchronous>, transform_indices = @transform_21, window_bounds = array<i64: 1, 128>}, {transform_indices = @transform_22, window_bounds = array<i64: 1, 8, 128>}, {transform_indices = @transform_23, window_bounds = array<i64: 1, 1, 128>}]} {
    %c0_i32 = arith.constant 0 : i32
    %0 = arith.cmpi eq, %arg1, %c0_i32 : i32
    %1 = arith.extui %0 : i1 to i32
    %c0_i32_0 = arith.constant 0 : i32
    %2 = arith.cmpi ne, %1, %c0_i32_0 : i32
    scf.if %2 {
      %c0_85 = arith.constant 0 : index
      %c0_86 = arith.constant 0 : index
      %c0_87 = arith.constant 0 : index
      %134 = vector.load %arg2[%c0_85, %c0_86, %c0_87] : memref<1x8x128xf32, #tpu.memory_space<vmem>>, vector<1x8x128xf32>
      %135 = vector.shape_cast %134 : vector<1x8x128xf32> to vector<8x128xf32>
      %c0_88 = arith.constant 0 : index
      %c0_89 = arith.constant 0 : index
      %136 = vector.load %arg26[%c0_88, %c0_89] : memref<8x128xf32, #tpu.memory_space<vmem>>, vector<8x128xf32>
      tpu.vector_store %arg26[%c0_88, %c0_89], %135 {strides = array<i32>} : memref<8x128xf32, #tpu.memory_space<vmem>>, vector<8x128xf32>,
    } else {
    }
    %c0 = arith.constant 0 : index
    %c0_1 = arith.constant 0 : index
    %3 = vector.load %arg26[%c0, %c0_1] : memref<8x128xf32, #tpu.memory_space<vmem>>, vector<8x128xf32>
    %c0_2 = arith.constant 0 : index
    %c0_3 = arith.constant 0 : index
    %c0_4 = arith.constant 0 : index
    %4 = vector.load %arg4[%c0_2, %c0_3, %c0_4] : memref<1x1x128xf32, #tpu.memory_space<vmem>>, vector<1x1x128xf32>
    %5 = vector.shape_cast %4 : vector<1x1x128xf32> to vector<1x128xf32>
    %c0_5 = arith.constant 0 : index
    %c0_6 = arith.constant 0 : index
    %c0_7 = arith.constant 0 : index
    %6 = vector.load %arg5[%c0_5, %c0_6, %c0_7] : memref<1x1x128xf32, #tpu.memory_space<vmem>>, vector<1x1x128xf32>
    %7 = vector.shape_cast %6 : vector<1x1x128xf32> to vector<1x128xf32>
    %cst = arith.constant dense<0.000000e+00> : vector<8xf32>
    %8 = vector.multi_reduction <add>, %3, %cst [1] : vector<8x128xf32> to vector<8xf32>
    %9 = vector.shape_cast %8 : vector<8xf32> to vector<8x1xf32>
    %cst_8 = arith.constant 1.280000e+02 : f32
    %10 = vector.broadcast %cst_8 : f32 to vector<8x1xf32>
    %11 = arith.divf %9, %10 : vector<8x1xf32>
    %12 = vector.broadcast %11 : vector<8x1xf32> to vector<8x128xf32>
    %13 = arith.subf %3, %12 : vector<8x128xf32>
    %14 = arith.mulf %13, %13 : vector<8x128xf32>
    %cst_9 = arith.constant dense<0.000000e+00> : vector<8xf32>
    %15 = vector.multi_reduction <add>, %14, %cst_9 [1] : vector<8x128xf32> to vector<8xf32>
    %16 = vector.shape_cast %15 : vector<8xf32> to vector<8x1xf32>
    %cst_10 = arith.constant 1.280000e+02 : f32
    %17 = vector.broadcast %cst_10 : f32 to vector<8x1xf32>
    %18 = arith.divf %16, %17 : vector<8x1xf32>
    %19 = vector.broadcast %11 : vector<8x1xf32> to vector<8x128xf32>
    %20 = arith.subf %3, %19 : vector<8x128xf32>
    %cst_11 = arith.constant 9.99999974E-6 : f32
    %21 = vector.broadcast %cst_11 : f32 to vector<8x1xf32>
    %22 = arith.addf %18, %21 : vector<8x1xf32>
    %23 = math.rsqrt %22 : vector<8x1xf32>
    %24 = vector.broadcast %23 : vector<8x1xf32> to vector<8x128xf32>
    %25 = arith.mulf %20, %24 : vector<8x128xf32>
    %26 = vector.broadcast %5 : vector<1x128xf32> to vector<8x128xf32>
    %27 = arith.mulf %25, %26 : vector<8x128xf32>
    %28 = vector.broadcast %7 : vector<1x128xf32> to vector<8x128xf32>
    %29 = arith.addf %27, %28 : vector<8x128xf32>
    %30 = arith.truncf %29 : vector<8x128xf32> to vector<8x128xbf16>
    %31 = vector.shape_cast %30 : vector<8x128xbf16> to vector<1x8x128xbf16>
    %32 = vector.broadcast %31 : vector<1x8x128xbf16> to vector<4x8x128xbf16>
    %c0_12 = arith.constant 0 : index
    %c0_13 = arith.constant 0 : index
    %c0_14 = arith.constant 0 : index
    %c0_15 = arith.constant 0 : index
    %33 = vector.load %arg6[%c0_12, %c0_13, %c0_14, %c0_15] : memref<1x4x128x32xbf16, #tpu.memory_space<vmem>>, vector<1x4x128x32xbf16>
    %34 = vector.shape_cast %33 : vector<1x4x128x32xbf16> to vector<4x128x32xbf16>
    "tpu.trace_start"() <{level = 10 : i32, message = "hsd,hde->hse"}> : () -> ()
    %cst_16 = arith.constant dense<0.000000e+00> : vector<4x8x32xf32>
    %35 = tpu.matmul %32, %34, %cst_16 {dimension_numbers = #tpu.dot_dimension_numbers<[2], [1], [1], [2], [0, 0, 0, 1, 1, 2], [0], [0]>} : vector<4x8x128xbf16>, vector<4x128x32xbf16>, vector<4x8x32xf32> -> vector<4x8x32xf32>
    "tpu.trace_stop"() : () -> ()
    %c0_17 = arith.constant 0 : index
    %c0_18 = arith.constant 0 : index
    %c0_19 = arith.constant 0 : index
    %c0_20 = arith.constant 0 : index
    %36 = vector.load %arg7[%c0_17, %c0_18, %c0_19, %c0_20] : memref<1x4x1x32xf32, #tpu.memory_space<vmem>>, vector<1x4x1x32xf32>
    %37 = vector.shape_cast %36 : vector<1x4x1x32xf32> to vector<4x1x32xf32>
    %38 = vector.broadcast %37 : vector<4x1x32xf32> to vector<4x8x32xf32>
    %39 = arith.addf %35, %38 : vector<4x8x32xf32>
    %c0_21 = arith.constant 0 : index
    %c0_22 = arith.constant 0 : index
    %c0_23 = arith.constant 0 : index
    %c0_24 = arith.constant 0 : index
    %40 = vector.load %arg8[%c0_21, %c0_22, %c0_23, %c0_24] : memref<1x4x128x32xbf16, #tpu.memory_space<vmem>>, vector<1x4x128x32xbf16>
    %41 = vector.shape_cast %40 : vector<1x4x128x32xbf16> to vector<4x128x32xbf16>
    "tpu.trace_start"() <{level = 10 : i32, message = "hsd,hde->hse"}> : () -> ()
    %cst_25 = arith.constant dense<0.000000e+00> : vector<4x8x32xf32>
    %42 = tpu.matmul %32, %41, %cst_25 {dimension_numbers = #tpu.dot_dimension_numbers<[2], [1], [1], [2], [0, 0, 0, 1, 1, 2], [0], [0]>} : vector<4x8x128xbf16>, vector<4x128x32xbf16>, vector<4x8x32xf32> -> vector<4x8x32xf32>
    "tpu.trace_stop"() : () -> ()
    %c0_26 = arith.constant 0 : index
    %c0_27 = arith.constant 0 : index
    %c0_28 = arith.constant 0 : index
    %c0_29 = arith.constant 0 : index
    %43 = vector.load %arg9[%c0_26, %c0_27, %c0_28, %c0_29] : memref<1x4x1x32xf32, #tpu.memory_space<vmem>>, vector<1x4x1x32xf32>
    %44 = vector.shape_cast %43 : vector<1x4x1x32xf32> to vector<4x1x32xf32>
    %45 = vector.broadcast %44 : vector<4x1x32xf32> to vector<4x8x32xf32>
    %46 = arith.addf %42, %45 : vector<4x8x32xf32>
    %c0_30 = arith.constant 0 : index
    %c0_31 = arith.constant 0 : index
    %c0_32 = arith.constant 0 : index
    %c0_33 = arith.constant 0 : index
    %47 = vector.load %arg10[%c0_30, %c0_31, %c0_32, %c0_33] : memref<1x4x128x32xbf16, #tpu.memory_space<vmem>>, vector<1x4x128x32xbf16>
    %48 = vector.shape_cast %47 : vector<1x4x128x32xbf16> to vector<4x128x32xbf16>
    "tpu.trace_start"() <{level = 10 : i32, message = "hsd,hde->hse"}> : () -> ()
    %cst_34 = arith.constant dense<0.000000e+00> : vector<4x8x32xf32>
    %49 = tpu.matmul %32, %48, %cst_34 {dimension_numbers = #tpu.dot_dimension_numbers<[2], [1], [1], [2], [0, 0, 0, 1, 1, 2], [0], [0]>} : vector<4x8x128xbf16>, vector<4x128x32xbf16>, vector<4x8x32xf32> -> vector<4x8x32xf32>
    "tpu.trace_stop"() : () -> ()
    %c0_35 = arith.constant 0 : index
    %c0_36 = arith.constant 0 : index
    %c0_37 = arith.constant 0 : index
    %c0_38 = arith.constant 0 : index
    %50 = vector.load %arg11[%c0_35, %c0_36, %c0_37, %c0_38] : memref<1x4x1x32xf32, #tpu.memory_space<vmem>>, vector<1x4x1x32xf32>
    %51 = vector.shape_cast %50 : vector<1x4x1x32xf32> to vector<4x1x32xf32>
    %52 = vector.broadcast %51 : vector<4x1x32xf32> to vector<4x8x32xf32>
    %53 = arith.addf %49, %52 : vector<4x8x32xf32>
    %54 = arith.truncf %39 : vector<4x8x32xf32> to vector<4x8x32xbf16>
    %55 = arith.truncf %46 : vector<4x8x32xf32> to vector<4x8x32xbf16>
    "tpu.trace_start"() <{level = 10 : i32, message = "hqe,hke->hqk"}> : () -> ()
    %cst_39 = arith.constant dense<0.000000e+00> : vector<4x8x8xf32>
    %56 = tpu.matmul %54, %55, %cst_39 {dimension_numbers = #tpu.dot_dimension_numbers<[2], [2], [1], [1], [0, 0, 0, 1, 1, 1], [0], [0]>} : vector<4x8x32xbf16>, vector<4x8x32xbf16>, vector<4x8x8xf32> -> vector<4x8x8xf32>
    "tpu.trace_stop"() : () -> ()
    %cst_40 = arith.constant 0.176776692 : f32
    %57 = vector.broadcast %cst_40 : f32 to vector<4x8x8xf32>
    %58 = arith.mulf %56, %57 : vector<4x8x8xf32>
    %c0_41 = arith.constant 0 : index
    %c0_42 = arith.constant 0 : index
    %c0_43 = arith.constant 0 : index
    %59 = vector.load %arg3[%c0_41, %c0_42, %c0_43] : memref<1x1x8xf32, #tpu.memory_space<vmem>>, vector<1x1x8xf32>
    %60 = vector.broadcast %59 : vector<1x1x8xf32> to vector<4x8x8xf32>
    %61 = arith.addf %58, %60 : vector<4x8x8xf32>
    %cst_44 = arith.constant dense<0xFF800000> : vector<4x8xf32>
    %62 = vector.multi_reduction <maximumf>, %61, %cst_44 [2] : vector<4x8x8xf32> to vector<4x8xf32>
    %63 = vector.shape_cast %62 : vector<4x8xf32> to vector<4x8x1xf32>
    %64 = vector.broadcast %63 : vector<4x8x1xf32> to vector<4x8x8xf32>
    %65 = arith.subf %61, %64 : vector<4x8x8xf32>
    %66 = math.exp %65 : vector<4x8x8xf32>
    %cst_45 = arith.constant dense<0.000000e+00> : vector<4x8xf32>
    %67 = vector.multi_reduction <add>, %66, %cst_45 [2] : vector<4x8x8xf32> to vector<4x8xf32>
    %68 = vector.shape_cast %67 : vector<4x8xf32> to vector<4x8x1xf32>
    %69 = tpu.reciprocal %68 {approx = true} : vector<4x8x1xf32> -> vector<4x8x1xf32>
    %70 = vector.broadcast %69 : vector<4x8x1xf32> to vector<4x8x8xf32>
    %71 = arith.mulf %66, %70 : vector<4x8x8xf32>
    %72 = arith.truncf %71 : vector<4x8x8xf32> to vector<4x8x8xbf16>
    %73 = arith.truncf %53 : vector<4x8x32xf32> to vector<4x8x32xbf16>
    "tpu.trace_start"() <{level = 10 : i32, message = "hqk,hke->hqe"}> : () -> ()
    %cst_46 = arith.constant dense<0.000000e+00> : vector<4x8x32xf32>
    %74 = tpu.matmul %72, %73, %cst_46 {dimension_numbers = #tpu.dot_dimension_numbers<[2], [1], [1], [2], [0, 0, 0, 1, 1, 2], [0], [0]>} : vector<4x8x8xbf16>, vector<4x8x32xbf16>, vector<4x8x32xf32> -> vector<4x8x32xf32>
    "tpu.trace_stop"() : () -> ()
    %75 = arith.truncf %74 : vector<4x8x32xf32> to vector<4x8x32xbf16>
    %c0_47 = arith.constant 0 : index
    %c0_48 = arith.constant 0 : index
    %c0_49 = arith.constant 0 : index
    %c0_50 = arith.constant 0 : index
    %76 = vector.load %arg12[%c0_47, %c0_48, %c0_49, %c0_50] : memref<1x4x32x128xbf16, #tpu.memory_space<vmem>>, vector<1x4x32x128xbf16>
    %77 = vector.shape_cast %76 : vector<1x4x32x128xbf16> to vector<4x32x128xbf16>
    "tpu.trace_start"() <{level = 10 : i32, message = "hqe,hed->hqd"}> : () -> ()
    %cst_51 = arith.constant dense<0.000000e+00> : vector<4x8x128xf32>
    %78 = tpu.matmul %75, %77, %cst_51 {dimension_numbers = #tpu.dot_dimension_numbers<[2], [1], [1], [2], [0, 0, 0, 1, 1, 2], [0], [0]>} : vector<4x8x32xbf16>, vector<4x32x128xbf16>, vector<4x8x128xf32> -> vector<4x8x128xf32>
    "tpu.trace_stop"() : () -> ()
    %cst_52 = arith.constant dense<0.000000e+00> : vector<8x128xf32>
    %79 = vector.multi_reduction <add>, %78, %cst_52 [0] : vector<4x8x128xf32> to vector<8x128xf32>
    %c0_53 = arith.constant 0 : index
    %c0_54 = arith.constant 0 : index
    %c0_55 = arith.constant 0 : index
    %80 = vector.load %arg13[%c0_53, %c0_54, %c0_55] : memref<1x1x128xf32, #tpu.memory_space<vmem>>, vector<1x1x128xf32>
    %81 = vector.shape_cast %80 : vector<1x1x128xf32> to vector<1x128xf32>
    %82 = vector.broadcast %81 : vector<1x128xf32> to vector<8x128xf32>
    %83 = arith.addf %79, %82 : vector<8x128xf32>
    %84 = arith.addf %83, %3 : vector<8x128xf32>
    %c0_56 = arith.constant 0 : index
    %c0_57 = arith.constant 0 : index
    %c0_58 = arith.constant 0 : index
    %85 = vector.load %arg14[%c0_56, %c0_57, %c0_58] : memref<1x1x128xf32, #tpu.memory_space<vmem>>, vector<1x1x128xf32>
    %86 = vector.shape_cast %85 : vector<1x1x128xf32> to vector<1x128xf32>
    %c0_59 = arith.constant 0 : index
    %c0_60 = arith.constant 0 : index
    %c0_61 = arith.constant 0 : index
    %87 = vector.load %arg15[%c0_59, %c0_60, %c0_61] : memref<1x1x128xf32, #tpu.memory_space<vmem>>, vector<1x1x128xf32>
    %88 = vector.shape_cast %87 : vector<1x1x128xf32> to vector<1x128xf32>
    %cst_62 = arith.constant dense<0.000000e+00> : vector<8xf32>
    %89 = vector.multi_reduction <add>, %84, %cst_62 [1] : vector<8x128xf32> to vector<8xf32>
    %90 = vector.shape_cast %89 : vector<8xf32> to vector<8x1xf32>
    %cst_63 = arith.constant 1.280000e+02 : f32
    %91 = vector.broadcast %cst_63 : f32 to vector<8x1xf32>
    %92 = arith.divf %90, %91 : vector<8x1xf32>
    %93 = vector.broadcast %92 : vector<8x1xf32> to vector<8x128xf32>
    %94 = arith.subf %84, %93 : vector<8x128xf32>
    %95 = arith.mulf %94, %94 : vector<8x128xf32>
    %cst_64 = arith.constant dense<0.000000e+00> : vector<8xf32>
    %96 = vector.multi_reduction <add>, %95, %cst_64 [1] : vector<8x128xf32> to vector<8xf32>
    %97 = vector.shape_cast %96 : vector<8xf32> to vector<8x1xf32>
    %cst_65 = arith.constant 1.280000e+02 : f32
    %98 = vector.broadcast %cst_65 : f32 to vector<8x1xf32>
    %99 = arith.divf %97, %98 : vector<8x1xf32>
    %100 = vector.broadcast %92 : vector<8x1xf32> to vector<8x128xf32>
    %101 = arith.subf %84, %100 : vector<8x128xf32>
    %cst_66 = arith.constant 9.99999974E-6 : f32
    %102 = vector.broadcast %cst_66 : f32 to vector<8x1xf32>
    %103 = arith.addf %99, %102 : vector<8x1xf32>
    %104 = math.rsqrt %103 : vector<8x1xf32>
    %105 = vector.broadcast %104 : vector<8x1xf32> to vector<8x128xf32>
    %106 = arith.mulf %101, %105 : vector<8x128xf32>
    %107 = vector.broadcast %86 : vector<1x128xf32> to vector<8x128xf32>
    %108 = arith.mulf %106, %107 : vector<8x128xf32>
    %109 = vector.broadcast %88 : vector<1x128xf32> to vector<8x128xf32>
    %110 = arith.addf %108, %109 : vector<8x128xf32>
    %111 = arith.truncf %110 : vector<8x128xf32> to vector<8x128xbf16>
    %c0_67 = arith.constant 0 : index
    %c0_68 = arith.constant 0 : index
    %c0_69 = arith.constant 0 : index
    %112 = vector.load %arg16[%c0_67, %c0_68, %c0_69] : memref<1x128x256xbf16, #tpu.memory_space<vmem>>, vector<1x128x256xbf16>
    %113 = vector.shape_cast %112 : vector<1x128x256xbf16> to vector<128x256xbf16>
    %cst_70 = arith.constant dense<0.000000e+00> : vector<8x256xf32>
    %114 = tpu.matmul %111, %113, %cst_70 {dimension_numbers = #tpu.dot_dimension_numbers<[1], [0], [0], [1], [0, 0, 1, 1], [], []>} : vector<8x128xbf16>, vector<128x256xbf16>, vector<8x256xf32> -> vector<8x256xf32>
    %c0_71 = arith.constant 0 : index
    %c0_72 = arith.constant 0 : index
    %c0_73 = arith.constant 0 : index
    %115 = vector.load %arg17[%c0_71, %c0_72, %c0_73] : memref<1x1x256xf32, #tpu.memory_space<vmem>>, vector<1x1x256xf32>
    %116 = vector.shape_cast %115 : vector<1x1x256xf32> to vector<1x256xf32>
    %117 = vector.broadcast %116 : vector<1x256xf32> to vector<8x256xf32>
    %118 = arith.addf %114, %117 : vector<8x256xf32>
    %cst_74 = arith.constant 0.000000e+00 : f32
    %119 = vector.broadcast %cst_74 : f32 to vector<8x256xf32>
    %120 = arith.maximumf %118, %119 : vector<8x256xf32>
    %121 = arith.truncf %120 : vector<8x256xf32> to vector<8x256xbf16>
    %c0_75 = arith.constant 0 : index
    %c0_76 = arith.constant 0 : index
    %c0_77 = arith.constant 0 : index
    %122 = vector.load %arg18[%c0_75, %c0_76, %c0_77] : memref<1x256x128xbf16, #tpu.memory_space<vmem>>, vector<1x256x128xbf16>
    %123 = vector.shape_cast %122 : vector<1x256x128xbf16> to vector<256x128xbf16>
    %cst_78 = arith.constant dense<0.000000e+00> : vector<8x128xf32>
    %124 = tpu.matmul %121, %123, %cst_78 {dimension_numbers = #tpu.dot_dimension_numbers<[1], [0], [0], [1], [0, 0, 1, 1], [], []>} : vector<8x256xbf16>, vector<256x128xbf16>, vector<8x128xf32> -> vector<8x128xf32>
    %c0_79 = arith.constant 0 : index
    %c0_80 = arith.constant 0 : index
    %c0_81 = arith.constant 0 : index
    %125 = vector.load %arg19[%c0_79, %c0_80, %c0_81] : memref<1x1x128xf32, #tpu.memory_space<vmem>>, vector<1x1x128xf32>
    %126 = vector.shape_cast %125 : vector<1x1x128xf32> to vector<1x128xf32>
    %127 = vector.broadcast %126 : vector<1x128xf32> to vector<8x128xf32>
    %128 = arith.addf %124, %127 : vector<8x128xf32>
    %129 = arith.addf %128, %84 : vector<8x128xf32>
    %c0_82 = arith.constant 0 : index
    %c0_83 = arith.constant 0 : index
    %130 = vector.load %arg26[%c0_82, %c0_83] : memref<8x128xf32, #tpu.memory_space<vmem>>, vector<8x128xf32>
    tpu.vector_store %arg26[%c0_82, %c0_83], %129 {strides = array<i32>} : memref<8x128xf32, #tpu.memory_space<vmem>>, vector<8x128xf32>,
    %c1_i32 = arith.constant 1 : i32
    %131 = arith.cmpi eq, %arg1, %c1_i32 : i32
    %132 = arith.extui %131 : i1 to i32
    %c0_i32_84 = arith.constant 0 : i32
    %133 = arith.cmpi ne, %132, %c0_i32_84 : i32
    scf.if %133 {
      %c0_85 = arith.constant 0 : index
      %c0_86 = arith.constant 0 : index
      %134 = vector.load %arg20[%c0_85, %c0_86] : memref<1x128xf32, #tpu.memory_space<vmem>>, vector<1x128xf32>
      %c0_87 = arith.constant 0 : index
      %c0_88 = arith.constant 0 : index
      %135 = vector.load %arg21[%c0_87, %c0_88] : memref<1x128xf32, #tpu.memory_space<vmem>>, vector<1x128xf32>
      %cst_89 = arith.constant dense<0.000000e+00> : vector<8xf32>
      %136 = vector.multi_reduction <add>, %129, %cst_89 [1] : vector<8x128xf32> to vector<8xf32>
      %137 = vector.shape_cast %136 : vector<8xf32> to vector<8x1xf32>
      %cst_90 = arith.constant 1.280000e+02 : f32
      %138 = vector.broadcast %cst_90 : f32 to vector<8x1xf32>
      %139 = arith.divf %137, %138 : vector<8x1xf32>
      %140 = vector.broadcast %139 : vector<8x1xf32> to vector<8x128xf32>
      %141 = arith.subf %129, %140 : vector<8x128xf32>
      %142 = arith.mulf %141, %141 : vector<8x128xf32>
      %cst_91 = arith.constant dense<0.000000e+00> : vector<8xf32>
      %143 = vector.multi_reduction <add>, %142, %cst_91 [1] : vector<8x128xf32> to vector<8xf32>
      %144 = vector.shape_cast %143 : vector<8xf32> to vector<8x1xf32>
      %cst_92 = arith.constant 1.280000e+02 : f32
      %145 = vector.broadcast %cst_92 : f32 to vector<8x1xf32>
      %146 = arith.divf %144, %145 : vector<8x1xf32>
      %147 = vector.broadcast %139 : vector<8x1xf32> to vector<8x128xf32>
      %148 = arith.subf %129, %147 : vector<8x128xf32>
      %cst_93 = arith.constant 9.99999974E-6 : f32
      %149 = vector.broadcast %cst_93 : f32 to vector<8x1xf32>
      %150 = arith.addf %146, %149 : vector<8x1xf32>
      %151 = math.rsqrt %150 : vector<8x1xf32>
      %152 = vector.broadcast %151 : vector<8x1xf32> to vector<8x128xf32>
      %153 = arith.mulf %148, %152 : vector<8x128xf32>
      %154 = vector.broadcast %134 : vector<1x128xf32> to vector<8x128xf32>
      %155 = arith.mulf %153, %154 : vector<8x128xf32>
      %156 = vector.broadcast %135 : vector<1x128xf32> to vector<8x128xf32>
      %157 = arith.addf %155, %156 : vector<8x128xf32>
      %c0_94 = arith.constant 0 : index
      %c0_95 = arith.constant 0 : index
      %c0_96 = arith.constant 0 : index
      %158 = vector.load %arg24[%c0_94, %c0_95, %c0_96] : memref<1x8x128xf32, #tpu.memory_space<vmem>>, vector<1x8x128xf32>
      %159 = vector.shape_cast %158 : vector<1x8x128xf32> to vector<8x128xf32>
      %160 = vector.shape_cast %157 : vector<8x128xf32> to vector<1x8x128xf32>
      tpu.vector_store %arg24[%c0_94, %c0_95, %c0_96], %160 {strides = array<i32>} : memref<1x8x128xf32, #tpu.memory_space<vmem>>, vector<1x8x128xf32>,
      %161 = vector.extract_strided_slice %157 {offsets = [0, 0], sizes = [1, 128], strides = [1, 1]} : vector<8x128xf32> to vector<1x128xf32>
      %162 = arith.truncf %161 : vector<1x128xf32> to vector<1x128xbf16>
      %c0_97 = arith.constant 0 : index
      %c0_98 = arith.constant 0 : index
      %163 = vector.load %arg22[%c0_97, %c0_98] : memref<128x128xbf16, #tpu.memory_space<vmem>>, vector<128x128xbf16>
      %cst_99 = arith.constant dense<0.000000e+00> : vector<1x128xf32>
      %164 = tpu.matmul %162, %163, %cst_99 {dimension_numbers = #tpu.dot_dimension_numbers<[1], [0], [0], [1], [0, 0, 1, 1], [], []>} : vector<1x128xbf16>, vector<128x128xbf16>, vector<1x128xf32> -> vector<1x128xf32>
      %c0_100 = arith.constant 0 : index
      %c0_101 = arith.constant 0 : index
      %165 = vector.load %arg23[%c0_100, %c0_101] : memref<1x128xf32, #tpu.memory_space<vmem>>, vector<1x128xf32>
      %166 = arith.addf %164, %165 : vector<1x128xf32>
      %167 = math.tanh %166 : vector<1x128xf32>
      %c0_102 = arith.constant 0 : index
      %c0_103 = arith.constant 0 : index
      %c0_104 = arith.constant 0 : index
      %168 = vector.load %arg25[%c0_102, %c0_103, %c0_104] : memref<1x1x128xf32, #tpu.memory_space<vmem>>, vector<1x1x128xf32>
      %169 = vector.shape_cast %168 : vector<1x1x128xf32> to vector<1x128xf32>
      %170 = vector.shape_cast %167 : vector<1x128xf32> to vector<1x1x128xf32>
      tpu.vector_store %arg25[%c0_102, %c0_103, %c0_104], %170 {strides = array<i32>} : memref<1x1x128xf32, #tpu.memory_space<vmem>>, vector<1x1x128xf32>,
    } else {
    }
    return
  }
  func.func @transform_0(%arg0: i32, %arg1: i32) -> (i32, i32, i32) {
    %c0_i32 = arith.constant 0 : i32
    %c0_i32_0 = arith.constant 0 : i32
    %c0_i32_1 = arith.constant 0 : i32
    return %arg0, %c0_i32, %c0_i32_0 : i32, i32, i32
  }
  func.func @transform_1(%arg0: i32, %arg1: i32) -> (i32, i32, i32) {
    %c0_i32 = arith.constant 0 : i32
    %c0_i32_0 = arith.constant 0 : i32
    %c0_i32_1 = arith.constant 0 : i32
    return %arg0, %c0_i32, %c0_i32_0 : i32, i32, i32
  }
  func.func @transform_2(%arg0: i32, %arg1: i32) -> (i32, i32, i32) {
    %c0_i32 = arith.constant 0 : i32
    %c0_i32_0 = arith.constant 0 : i32
    %c0_i32_1 = arith.constant 0 : i32
    return %arg1, %c0_i32, %c0_i32_0 : i32, i32, i32
  }
  func.func @transform_3(%arg0: i32, %arg1: i32) -> (i32, i32, i32) {
    %c0_i32 = arith.constant 0 : i32
    %c0_i32_0 = arith.constant 0 : i32
    %c0_i32_1 = arith.constant 0 : i32
    return %arg1, %c0_i32, %c0_i32_0 : i32, i32, i32
  }
  func.func @transform_4(%arg0: i32, %arg1: i32) -> (i32, i32, i32, i32) {
    %c0_i32 = arith.constant 0 : i32
    %c0_i32_0 = arith.constant 0 : i32
    %c0_i32_1 = arith.constant 0 : i32
    %c0_i32_2 = arith.constant 0 : i32
    return %arg1, %c0_i32, %c0_i32_0, %c0_i32_1 : i32, i32, i32, i32
  }
  func.func @transform_5(%arg0: i32, %arg1: i32) -> (i32, i32, i32, i32) {
    %c0_i32 = arith.constant 0 : i32
    %c0_i32_0 = arith.constant 0 : i32
    %c0_i32_1 = arith.constant 0 : i32
    %c0_i32_2 = arith.constant 0 : i32
    return %arg1, %c0_i32, %c0_i32_0, %c0_i32_1 : i32, i32, i32, i32
  }
  func.func @transform_6(%arg0: i32, %arg1: i32) -> (i32, i32, i32, i32) {
    %c0_i32 = arith.constant 0 : i32
    %c0_i32_0 = arith.constant 0 : i32
    %c0_i32_1 = arith.constant 0 : i32
    %c0_i32_2 = arith.constant 0 : i32
    return %arg1, %c0_i32, %c0_i32_0, %c0_i32_1 : i32, i32, i32, i32
  }
  func.func @transform_7(%arg0: i32, %arg1: i32) -> (i32, i32, i32, i32) {
    %c0_i32 = arith.constant 0 : i32
    %c0_i32_0 = arith.constant 0 : i32
    %c0_i32_1 = arith.constant 0 : i32
    %c0_i32_2 = arith.constant 0 : i32
    return %arg1, %c0_i32, %c0_i32_0, %c0_i32_1 : i32, i32, i32, i32
  }
  func.func @transform_8(%arg0: i32, %arg1: i32) -> (i32, i32, i32, i32) {
    %c0_i32 = arith.constant 0 : i32
    %c0_i32_0 = arith.constant 0 : i32
    %c0_i32_1 = arith.constant 0 : i32
    %c0_i32_2 = arith.constant 0 : i32
    return %arg1, %c0_i32, %c0_i32_0, %c0_i32_1 : i32, i32, i32, i32
  }
  func.func @transform_9(%arg0: i32, %arg1: i32) -> (i32, i32, i32, i32) {
    %c0_i32 = arith.constant 0 : i32
    %c0_i32_0 = arith.constant 0 : i32
    %c0_i32_1 = arith.constant 0 : i32
    %c0_i32_2 = arith.constant 0 : i32
    return %arg1, %c0_i32, %c0_i32_0, %c0_i32_1 : i32, i32, i32, i32
  }
  func.func @transform_10(%arg0: i32, %arg1: i32) -> (i32, i32, i32, i32) {
    %c0_i32 = arith.constant 0 : i32
    %c0_i32_0 = arith.constant 0 : i32
    %c0_i32_1 = arith.constant 0 : i32
    %c0_i32_2 = arith.constant 0 : i32
    return %arg1, %c0_i32, %c0_i32_0, %c0_i32_1 : i32, i32, i32, i32
  }
  func.func @transform_11(%arg0: i32, %arg1: i32) -> (i32, i32, i32) {
    %c0_i32 = arith.constant 0 : i32
    %c0_i32_0 = arith.constant 0 : i32
    %c0_i32_1 = arith.constant 0 : i32
    return %arg1, %c0_i32, %c0_i32_0 : i32, i32, i32
  }
  func.func @transform_12(%arg0: i32, %arg1: i32) -> (i32, i32, i32) {
    %c0_i32 = arith.constant 0 : i32
    %c0_i32_0 = arith.constant 0 : i32
    %c0_i32_1 = arith.constant 0 : i32
    return %arg1, %c0_i32, %c0_i32_0 : i32, i32, i32
  }
  func.func @transform_13(%arg0: i32, %arg1: i32) -> (i32, i32, i32) {
    %c0_i32 = arith.constant 0 : i32
    %c0_i32_0 = arith.constant 0 : i32
    %c0_i32_1 = arith.constant 0 : i32
    return %arg1, %c0_i32, %c0_i32_0 : i32, i32, i32
  }
  func.func @transform_14(%arg0: i32, %arg1: i32) -> (i32, i32, i32) {
    %c0_i32 = arith.constant 0 : i32
    %c0_i32_0 = arith.constant 0 : i32
    %c0_i32_1 = arith.constant 0 : i32
    return %arg1, %c0_i32, %c0_i32_0 : i32, i32, i32
  }
  func.func @transform_15(%arg0: i32, %arg1: i32) -> (i32, i32, i32) {
    %c0_i32 = arith.constant 0 : i32
    %c0_i32_0 = arith.constant 0 : i32
    %c0_i32_1 = arith.constant 0 : i32
    return %arg1, %c0_i32, %c0_i32_0 : i32, i32, i32
  }
  func.func @transform_16(%arg0: i32, %arg1: i32) -> (i32, i32, i32) {
    %c0_i32 = arith.constant 0 : i32
    %c0_i32_0 = arith.constant 0 : i32
    %c0_i32_1 = arith.constant 0 : i32
    return %arg1, %c0_i32, %c0_i32_0 : i32, i32, i32
  }
  func.func @transform_17(%arg0: i32, %arg1: i32) -> (i32, i32, i32) {
    %c0_i32 = arith.constant 0 : i32
    %c0_i32_0 = arith.constant 0 : i32
    %c0_i32_1 = arith.constant 0 : i32
    return %arg1, %c0_i32, %c0_i32_0 : i32, i32, i32
  }
  func.func @transform_18(%arg0: i32, %arg1: i32) -> (i32, i32) {
    %c0_i32 = arith.constant 0 : i32
    %c0_i32_0 = arith.constant 0 : i32
    %c0_i32_1 = arith.constant 0 : i32
    return %c0_i32, %c0_i32_0 : i32, i32
  }
  func.func @transform_19(%arg0: i32, %arg1: i32) -> (i32, i32) {
    %c0_i32 = arith.constant 0 : i32
    %c0_i32_0 = arith.constant 0 : i32
    %c0_i32_1 = arith.constant 0 : i32
    return %c0_i32, %c0_i32_0 : i32, i32
  }
  func.func @transform_20(%arg0: i32, %arg1: i32) -> (i32, i32) {
    %c0_i32 = arith.constant 0 : i32
    %c0_i32_0 = arith.constant 0 : i32
    %c0_i32_1 = arith.constant 0 : i32
    return %c0_i32, %c0_i32_0 : i32, i32
  }
  func.func @transform_21(%arg0: i32, %arg1: i32) -> (i32, i32) {
    %c0_i32 = arith.constant 0 : i32
    %c0_i32_0 = arith.constant 0 : i32
    %c0_i32_1 = arith.constant 0 : i32
    return %c0_i32, %c0_i32_0 : i32, i32
  }
  func.func @transform_22(%arg0: i32, %arg1: i32) -> (i32, i32, i32) {
    %c0_i32 = arith.constant 0 : i32
    %c0_i32_0 = arith.constant 0 : i32
    %c0_i32_1 = arith.constant 0 : i32
    return %arg0, %c0_i32, %c0_i32_0 : i32, i32, i32
  }
  func.func @transform_23(%arg0: i32, %arg1: i32) -> (i32, i32, i32) {
    %c0_i32 = arith.constant 0 : i32
    %c0_i32_0 = arith.constant 0 : i32
    %c0_i32_1 = arith.constant 0 : i32
    return %arg0, %c0_i32, %c0_i32_0 : i32, i32, i32
  }
}

</mosaic_0001>

<llo_original>
// kernel: tpu_custom_call.1
$region0: #{tpu_custom_call.1}
  #allocation0 [shape = 'u32[]', space=smem, size = 0x4, offset = 0x4, fixed_abs, tag = 'smem constant byte address 0x4 - core index']
  #allocation1 [shape = 'u32[72,128]{1,0:T(1,128)}', space=vmem, size = 0x9000, scoped, tag = 'internal scratch']
  #allocation2 [shape = 'f32[8,128]{1,0:T(8,128)}', space=vmem, size = 0x1000, scoped, tag = 'scratch operand']
  %s0 = inlined_call_operand.vmem [shape: f32[2,8,128], index: 0, kind: input, shape index: {}]
  %s1 = inlined_call_operand.vmem [shape: f32[2,1,8], index: 1, kind: input, shape index: {}]
  %s2 = inlined_call_operand.vmem [shape: f32[2,1,128], index: 2, kind: input, shape index: {}]
  %s3 = inlined_call_operand.vmem [shape: f32[2,1,128], index: 3, kind: input, shape index: {}]
  %s4 = inlined_call_operand.vmem [shape: bf16[2,4,128,32], index: 4, kind: input, shape index: {}]
  %s5 = inlined_call_operand.vmem [shape: f32[2,4,1,32], index: 5, kind: input, shape index: {}]
  %s6 = inlined_call_operand.vmem [shape: bf16[2,4,128,32], index: 6, kind: input, shape index: {}]
  %s7 = inlined_call_operand.vmem [shape: f32[2,4,1,32], index: 7, kind: input, shape index: {}]
  %s8 = inlined_call_operand.vmem [shape: bf16[2,4,128,32], index: 8, kind: input, shape index: {}]
  %s9 = inlined_call_operand.vmem [shape: f32[2,4,1,32], index: 9, kind: input, shape index: {}]
  %s10 = inlined_call_operand.vmem [shape: bf16[2,4,32,128], index: 10, kind: input, shape index: {}]
  %s11 = inlined_call_operand.vmem [shape: f32[2,1,128], index: 11, kind: input, shape index: {}]
  %s12 = inlined_call_operand.vmem [shape: f32[2,1,128], index: 12, kind: input, shape index: {}]
  %s13 = inlined_call_operand.vmem [shape: f32[2,1,128], index: 13, kind: input, shape index: {}]
  %s14 = inlined_call_operand.vmem [shape: bf16[2,128,256], index: 14, kind: input, shape index: {}]
  %s15 = inlined_call_operand.vmem [shape: f32[2,1,256], index: 15, kind: input, shape index: {}]
  %s16 = inlined_call_operand.vmem [shape: bf16[2,256,128], index: 16, kind: input, shape index: {}]
  %s17 = inlined_call_operand.vmem [shape: f32[2,1,128], index: 17, kind: input, shape index: {}]
  %s18 = inlined_call_operand.vmem [shape: f32[1,128], index: 18, kind: input, shape index: {}]
  %s19 = inlined_call_operand.vmem [shape: f32[1,128], index: 19, kind: input, shape index: {}]
  %s20 = inlined_call_operand.vmem [shape: bf16[128,128], index: 20, kind: input, shape index: {}]
  %s21 = inlined_call_operand.vmem [shape: f32[1,128], index: 21, kind: input, shape index: {}]
  %s22 = inlined_call_operand.hbm [shape: f32[2,8,128], index: 22, kind: output, shape index: {0}]
  %s23 = inlined_call_operand.hbm [shape: f32[2,1,128], index: 23, kind: output, shape index: {1}]
  %24 = xla_tuple %s22, %s23
  %s25 = sld [smem:[#allocation0]]
  $region137: #{tpu_custom_call.1} parent=0
    _
  %s27 = ssub.s32 1, %s25
  %s28 = scalar_select 0, %s27, %s25
  $region1: #{tpu_custom_call.1} parent=0
    #allocation3 [shape = 'u8[8192]{0}', space=vmem, size = 0x2000, scoped, tag = 'output window, operand 0']
    #allocation4 [shape = 's32[2]{0}', space=sflag, size = 0x8, scoped, tag = 'scoped memory for tpu_custom_call.1']
    #allocation5 [shape = 'u8[1024]{0}', space=vmem, size = 0x400, scoped, tag = 'output window, operand 1']
    #allocation6 [shape = 's32[2]{0}', space=sflag, size = 0x8, scoped, tag = 'scoped memory for tpu_custom_call.1']
    %29 = vsyncpa [#allocation4], 0
    %s30 = scalar_lea.sflag [#allocation4], 1
    %31 = vsyncpa %s30, 0
    %32 = vsyncpa [#allocation6], 0
    %s33 = scalar_lea.sflag [#allocation6], 1
    %34 = vsyncpa %s33, 0
    loop: start=0, step=1, limit=6
    $region2: #{tpu_custom_call.1} parent=1 // loop_pre_header
      _
    $region3: #{tpu_custom_call.1} parent=1 // loop_header
      %s36 = sphi 0, %s40
      %p37 = scmp.ge.s32.totalorder %s36, 6
      %s43 = sphi 0, %s55
      %s44 = sphi 0, %s51
      %s45 = sphi 0, %s43
      %s46 = sphi 0, %s44
      %s47 = sphi 0, %s45
      %s48 = sphi 0, %s46
      %s58 = sphi 0, %s60
      %s61 = sphi 0, %s58
      %s62 = sphi 0, %s61
      %s78 = sphi 0, %s62
      %s84 = sphi 0, %s86
      %s87 = sphi 0, %s84
      %s88 = sphi 0, %s87
      %s104 = sphi 0, %s88
      %s110 = sphi 0, %s112
      %s113 = sphi 0, %s110
      %s114 = sphi 0, %s113
      %s130 = sphi 0, %s114
      %s136 = sphi 0, %s138
      %s139 = sphi 0, %s136
      %s140 = sphi 0, %s139
      %s156 = sphi 0, %s140
      %s162 = sphi 0, %s164
      %s165 = sphi 0, %s162
      %s166 = sphi 0, %s165
      %s182 = sphi 0, %s166
      %s188 = sphi 0, %s190
      %s191 = sphi 0, %s188
      %s192 = sphi 0, %s191
      %s208 = sphi 0, %s192
      %s214 = sphi 0, %s216
      %s217 = sphi 0, %s214
      %s218 = sphi 0, %s217
      %s234 = sphi 0, %s218
      %s240 = sphi 0, %s242
      %s243 = sphi 0, %s240
      %s244 = sphi 0, %s243
      %s260 = sphi 0, %s244
      %s266 = sphi 0, %s268
      %s269 = sphi 0, %s266
      %s270 = sphi 0, %s269
      %s286 = sphi 0, %s270
      %s292 = sphi 0, %s294
      %s295 = sphi 0, %s292
      %s296 = sphi 0, %s295
      %s312 = sphi 0, %s296
      %s318 = sphi 0, %s320
      %s321 = sphi 0, %s318
      %s322 = sphi 0, %s321
      %s338 = sphi 0, %s322
      %s344 = sphi 0, %s346
      %s347 = sphi 0, %s344
      %s348 = sphi 0, %s347
      %s364 = sphi 0, %s348
      %s370 = sphi 0, %s372
      %s373 = sphi 0, %s370
      %s374 = sphi 0, %s373
      %s390 = sphi 0, %s374
      %s396 = sphi 0, %s398
      %s399 = sphi 0, %s396
      %s400 = sphi 0, %s399
      %s416 = sphi 0, %s400
      %s422 = sphi 0, %s424
      %s425 = sphi 0, %s422
      %s426 = sphi 0, %s425
      %s442 = sphi 0, %s426
      %s448 = sphi 0, %s450
      %s451 = sphi 0, %s448
      %s452 = sphi 0, %s451
      %s468 = sphi 0, %s452
      %s474 = sphi 0, %s476
      %s477 = sphi 0, %s474
      %s478 = sphi 0, %s477
      %s494 = sphi 0, %s478
      %s500 = sphi 0, %s502
      %s503 = sphi 0, %s500
      %s504 = sphi 0, %s503
      %s520 = sphi 0, %s504
      %s524 = sphi 0, %s524
      %s526 = sphi 0, %s524
      %s527 = sphi 0, %s526
      %s541 = sphi 0, %s527
      %s545 = sphi 0, %s545
      %s547 = sphi 0, %s545
      %s548 = sphi 0, %s547
      %s562 = sphi 0, %s548
      %s566 = sphi 0, %s566
      %s568 = sphi 0, %s566
      %s569 = sphi 0, %s568
      %s583 = sphi 0, %s569
      %s587 = sphi 0, %s587
      %s589 = sphi 0, %s587
      %s590 = sphi 0, %s589
      %s604 = sphi 0, %s590
      %s610 = sphi 0, %s612
      %s613 = sphi 0, %s610
      %s614 = sphi 0, %s613
      %s630 = sphi 0, %s614
      %s636 = sphi 0, %s638
      %s639 = sphi 0, %s636
      %s640 = sphi 0, %s639
      %s656 = sphi 0, %s640
    $region4: #{tpu_custom_call.1} parent=1 // loop_header_branch
      %39 = sbr.rel (%p37) target = $region8
    $region5: #{tpu_custom_call.1} parent=1 // loop_body
      %s41 = ssub.s32 %s36, 1
      %s42 = ssub.s32 %s36, 2
      %s49 = sadd.s32 1, %s44
      %p50 = scmp.ge.s32.totalorder %s49, 2
      %s51 = scalar_select %p50, 0, %s49
      %s52 = sadd.s32 1, %s43
      %s53 = scalar_select %p50, %s52, %s43
      %p54 = scmp.ge.s32.totalorder %s53, 2
      %s55 = scalar_select %p54, 0, %s53
      %s56 = ssub.s32 %s43, %s55
      %p57 = scmp.eq.s32.totalorder %s56, 0
      %s59 = sadd.s32 %s58, 1
      %s60 = scalar_select %p57, %s58, %s59
      %p63 = pneg %p57
      %p64 = scmp.eq.s32.totalorder %s36, 3
      %p65 = por %p63, %p64
      %p66 = scmp.ne.s32.totalorder %s58, %s61
      %p67 = scmp.eq.s32.totalorder %s36, 0
      %p68 = por %p66, %p67
      %p69 = scmp.ne.s32.totalorder %s58, %s61
      %p70 = scmp.eq.s32.totalorder %s41, 3
      %p71 = por %p69, %p70
      %p72 = scmp.ne.s32.totalorder %s61, %s62
      %p73 = scmp.eq.s32.totalorder %s41, 0
      %p74 = por %p72, %p73
      %p75 = scmp.ne.s32.totalorder %s61, %s62
      %p76 = scmp.eq.s32.totalorder %s42, 3
      %p77 = por %p75, %p76
      %p79 = scmp.ne.s32.totalorder %s62, %s78
      %p80 = scmp.eq.s32.totalorder %s42, 0
      %p81 = por %p79, %p80
      %s82 = ssub.s32 %s43, %s55
      %p83 = scmp.eq.s32.totalorder %s82, 0
      %s85 = sadd.s32 %s84, 1
      %s86 = scalar_select %p83, %s84, %s85
      %p89 = pneg %p83
      %p90 = scmp.eq.s32.totalorder %s36, 3
      %p91 = por %p89, %p90
      %p92 = scmp.ne.s32.totalorder %s84, %s87
      %p93 = scmp.eq.s32.totalorder %s36, 0
      %p94 = por %p92, %p93
      %p95 = scmp.ne.s32.totalorder %s84, %s87
      %p96 = scmp.eq.s32.totalorder %s41, 3
      %p97 = por %p95, %p96
      %p98 = scmp.ne.s32.totalorder %s87, %s88
      %p99 = scmp.eq.s32.totalorder %s41, 0
      %p100 = por %p98, %p99
      %p101 = scmp.ne.s32.totalorder %s87, %s88
      %p102 = scmp.eq.s32.totalorder %s42, 3
      %p103 = por %p101, %p102
      %p105 = scmp.ne.s32.totalorder %s88, %s104
      %p106 = scmp.eq.s32.totalorder %s42, 0
      %p107 = por %p105, %p106
      %s108 = ssub.s32 %s44, %s51
      %p109 = scmp.eq.s32.totalorder %s108, 0
      %s111 = sadd.s32 %s110, 1
      %s112 = scalar_select %p109, %s110, %s111
      %p115 = pneg %p109
      %p116 = scmp.eq.s32.totalorder %s36, 3
      %p117 = por %p115, %p116
      %p118 = scmp.ne.s32.totalorder %s110, %s113
      %p119 = scmp.eq.s32.totalorder %s36, 0
      %p120 = por %p118, %p119
      %p121 = scmp.ne.s32.totalorder %s110, %s113
      %p122 = scmp.eq.s32.totalorder %s41, 3
      %p123 = por %p121, %p122
      %p124 = scmp.ne.s32.totalorder %s113, %s114
      %p125 = scmp.eq.s32.totalorder %s41, 0
      %p126 = por %p124, %p125
      %p127 = scmp.ne.s32.totalorder %s113, %s114
      %p128 = scmp.eq.s32.totalorder %s42, 3
      %p129 = por %p127, %p128
      %p131 = scmp.ne.s32.totalorder %s114, %s130
      %p132 = scmp.eq.s32.totalorder %s42, 0
      %p133 = por %p131, %p132
      %s134 = ssub.s32 %s44, %s51
      %p135 = scmp.eq.s32.totalorder %s134, 0
      %s137 = sadd.s32 %s136, 1
      %s138 = scalar_select %p135, %s136, %s137
      %p141 = pneg %p135
      %p142 = scmp.eq.s32.totalorder %s36, 3
      %p143 = por %p141, %p142
      %p144 = scmp.ne.s32.totalorder %s136, %s139
      %p145 = scmp.eq.s32.totalorder %s36, 0
      %p146 = por %p144, %p145
      %p147 = scmp.ne.s32.totalorder %s136, %s139
      %p148 = scmp.eq.s32.totalorder %s41, 3
      %p149 = por %p147, %p148
      %p150 = scmp.ne.s32.totalorder %s139, %s140
      %p151 = scmp.eq.s32.totalorder %s41, 0
      %p152 = por %p150, %p151
      %p153 = scmp.ne.s32.totalorder %s139, %s140
      %p154 = scmp.eq.s32.totalorder %s42, 3
      %p155 = por %p153, %p154
      %p157 = scmp.ne.s32.totalorder %s140, %s156
      %p158 = scmp.eq.s32.totalorder %s42, 0
      %p159 = por %p157, %p158
      %s160 = ssub.s32 %s44, %s51
      %p161 = scmp.eq.s32.totalorder %s160, 0
      %s163 = sadd.s32 %s162, 1
      %s164 = scalar_select %p161, %s162, %s163
      %p167 = pneg %p161
      %p168 = scmp.eq.s32.totalorder %s36, 3
      %p169 = por %p167, %p168
      %p170 = scmp.ne.s32.totalorder %s162, %s165
      %p171 = scmp.eq.s32.totalorder %s36, 0
      %p172 = por %p170, %p171
      %p173 = scmp.ne.s32.totalorder %s162, %s165
      %p174 = scmp.eq.s32.totalorder %s41, 3
      %p175 = por %p173, %p174
      %p176 = scmp.ne.s32.totalorder %s165, %s166
      %p177 = scmp.eq.s32.totalorder %s41, 0
      %p178 = por %p176, %p177
      %p179 = scmp.ne.s32.totalorder %s165, %s166
      %p180 = scmp.eq.s32.totalorder %s42, 3
      %p181 = por %p179, %p180
      %p183 = scmp.ne.s32.totalorder %s166, %s182
      %p184 = scmp.eq.s32.totalorder %s42, 0
      %p185 = por %p183, %p184
      %s186 = ssub.s32 %s44, %s51
      %p187 = scmp.eq.s32.totalorder %s186, 0
      %s189 = sadd.s32 %s188, 1
      %s190 = scalar_select %p187, %s188, %s189
      %p193 = pneg %p187
      %p194 = scmp.eq.s32.totalorder %s36, 3
      %p195 = por %p193, %p194
      %p196 = scmp.ne.s32.totalorder %s188, %s191
      %p197 = scmp.eq.s32.totalorder %s36, 0
      %p198 = por %p196, %p197
      %p199 = scmp.ne.s32.totalorder %s188, %s191
      %p200 = scmp.eq.s32.totalorder %s41, 3
      %p201 = por %p199, %p200
      %p202 = scmp.ne.s32.totalorder %s191, %s192
      %p203 = scmp.eq.s32.totalorder %s41, 0
      %p204 = por %p202, %p203
      %p205 = scmp.ne.s32.totalorder %s191, %s192
      %p206 = scmp.eq.s32.totalorder %s42, 3
      %p207 = por %p205, %p206
      %p209 = scmp.ne.s32.totalorder %s192, %s208
      %p210 = scmp.eq.s32.totalorder %s42, 0
      %p211 = por %p209, %p210
      %s212 = ssub.s32 %s44, %s51
      %p213 = scmp.eq.s32.totalorder %s212, 0
      %s215 = sadd.s32 %s214, 1
      %s216 = scalar_select %p213, %s214, %s215
      %p219 = pneg %p213
      %p220 = scmp.eq.s32.totalorder %s36, 3
      %p221 = por %p219, %p220
      %p222 = scmp.ne.s32.totalorder %s214, %s217
      %p223 = scmp.eq.s32.totalorder %s36, 0
      %p224 = por %p222, %p223
      %p225 = scmp.ne.s32.totalorder %s214, %s217
      %p226 = scmp.eq.s32.totalorder %s41, 3
      %p227 = por %p225, %p226
      %p228 = scmp.ne.s32.totalorder %s217, %s218
      %p229 = scmp.eq.s32.totalorder %s41, 0
      %p230 = por %p228, %p229
      %p231 = scmp.ne.s32.totalorder %s217, %s218
      %p232 = scmp.eq.s32.totalorder %s42, 3
      %p233 = por %p231, %p232
      %p235 = scmp.ne.s32.totalorder %s218, %s234
      %p236 = scmp.eq.s32.totalorder %s42, 0
      %p237 = por %p235, %p236
      %s238 = ssub.s32 %s44, %s51
      %p239 = scmp.eq.s32.totalorder %s238, 0
      %s241 = sadd.s32 %s240, 1
      %s242 = scalar_select %p239, %s240, %s241
      %p245 = pneg %p239
      %p246 = scmp.eq.s32.totalorder %s36, 3
      %p247 = por %p245, %p246
      %p248 = scmp.ne.s32.totalorder %s240, %s243
      %p249 = scmp.eq.s32.totalorder %s36, 0
      %p250 = por %p248, %p249
      %p251 = scmp.ne.s32.totalorder %s240, %s243
      %p252 = scmp.eq.s32.totalorder %s41, 3
      %p253 = por %p251, %p252
      %p254 = scmp.ne.s32.totalorder %s243, %s244
      %p255 = scmp.eq.s32.totalorder %s41, 0
      %p256 = por %p254, %p255
      %p257 = scmp.ne.s32.totalorder %s243, %s244
      %p258 = scmp.eq.s32.totalorder %s42, 3
      %p259 = por %p257, %p258
      %p261 = scmp.ne.s32.totalorder %s244, %s260
      %p262 = scmp.eq.s32.totalorder %s42, 0
      %p263 = por %p261, %p262
      %s264 = ssub.s32 %s44, %s51
      %p265 = scmp.eq.s32.totalorder %s264, 0
      %s267 = sadd.s32 %s266, 1
      %s268 = scalar_select %p265, %s266, %s267
      %p271 = pneg %p265
      %p272 = scmp.eq.s32.totalorder %s36, 3
      %p273 = por %p271, %p272
      %p274 = scmp.ne.s32.totalorder %s266, %s269
      %p275 = scmp.eq.s32.totalorder %s36, 0
      %p276 = por %p274, %p275
      %p277 = scmp.ne.s32.totalorder %s266, %s269
      %p278 = scmp.eq.s32.totalorder %s41, 3
      %p279 = por %p277, %p278
      %p280 = scmp.ne.s32.totalorder %s269, %s270
      %p281 = scmp.eq.s32.totalorder %s41, 0
      %p282 = por %p280, %p281
      %p283 = scmp.ne.s32.totalorder %s269, %s270
      %p284 = scmp.eq.s32.totalorder %s42, 3
      %p285 = por %p283, %p284
      %p287 = scmp.ne.s32.totalorder %s270, %s286
      %p288 = scmp.eq.s32.totalorder %s42, 0
      %p289 = por %p287, %p288
      %s290 = ssub.s32 %s44, %s51
      %p291 = scmp.eq.s32.totalorder %s290, 0
      %s293 = sadd.s32 %s292, 1
      %s294 = scalar_select %p291, %s292, %s293
      %p297 = pneg %p291
      %p298 = scmp.eq.s32.totalorder %s36, 3
      %p299 = por %p297, %p298
      %p300 = scmp.ne.s32.totalorder %s292, %s295
      %p301 = scmp.eq.s32.totalorder %s36, 0
      %p302 = por %p300, %p301
      %p303 = scmp.ne.s32.totalorder %s292, %s295
      %p304 = scmp.eq.s32.totalorder %s41, 3
      %p305 = por %p303, %p304
      %p306 = scmp.ne.s32.totalorder %s295, %s296
      %p307 = scmp.eq.s32.totalorder %s41, 0
      %p308 = por %p306, %p307
      %p309 = scmp.ne.s32.totalorder %s295, %s296
      %p310 = scmp.eq.s32.totalorder %s42, 3
      %p311 = por %p309, %p310
      %p313 = scmp.ne.s32.totalorder %s296, %s312
      %p314 = scmp.eq.s32.totalorder %s42, 0
      %p315 = por %p313, %p314
      %s316 = ssub.s32 %s44, %s51
      %p317 = scmp.eq.s32.totalorder %s316, 0
      %s319 = sadd.s32 %s318, 1
      %s320 = scalar_select %p317, %s318, %s319
      %p323 = pneg %p317
      %p324 = scmp.eq.s32.totalorder %s36, 3
      %p325 = por %p323, %p324
      %p326 = scmp.ne.s32.totalorder %s318, %s321
      %p327 = scmp.eq.s32.totalorder %s36, 0
      %p328 = por %p326, %p327
      %p329 = scmp.ne.s32.totalorder %s318, %s321
      %p330 = scmp.eq.s32.totalorder %s41, 3
      %p331 = por %p329, %p330
      %p332 = scmp.ne.s32.totalorder %s321, %s322
      %p333 = scmp.eq.s32.totalorder %s41, 0
      %p334 = por %p332, %p333
      %p335 = scmp.ne.s32.totalorder %s321, %s322
      %p336 = scmp.eq.s32.totalorder %s42, 3
      %p337 = por %p335, %p336
      %p339 = scmp.ne.s32.totalorder %s322, %s338
      %p340 = scmp.eq.s32.totalorder %s42, 0
      %p341 = por %p339, %p340
      %s342 = ssub.s32 %s44, %s51
      %p343 = scmp.eq.s32.totalorder %s342, 0
      %s345 = sadd.s32 %s344, 1
      %s346 = scalar_select %p343, %s344, %s345
      %p349 = pneg %p343
      %p350 = scmp.eq.s32.totalorder %s36, 3
      %p351 = por %p349, %p350
      %p352 = scmp.ne.s32.totalorder %s344, %s347
      %p353 = scmp.eq.s32.totalorder %s36, 0
      %p354 = por %p352, %p353
      %p355 = scmp.ne.s32.totalorder %s344, %s347
      %p356 = scmp.eq.s32.totalorder %s41, 3
      %p357 = por %p355, %p356
      %p358 = scmp.ne.s32.totalorder %s347, %s348
      %p359 = scmp.eq.s32.totalorder %s41, 0
      %p360 = por %p358, %p359
      %p361 = scmp.ne.s32.totalorder %s347, %s348
      %p362 = scmp.eq.s32.totalorder %s42, 3
      %p363 = por %p361, %p362
      %p365 = scmp.ne.s32.totalorder %s348, %s364
      %p366 = scmp.eq.s32.totalorder %s42, 0
      %p367 = por %p365, %p366
      %s368 = ssub.s32 %s44, %s51
      %p369 = scmp.eq.s32.totalorder %s368, 0
      %s371 = sadd.s32 %s370, 1
      %s372 = scalar_select %p369, %s370, %s371
      %p375 = pneg %p369
      %p376 = scmp.eq.s32.totalorder %s36, 3
      %p377 = por %p375, %p376
      %p378 = scmp.ne.s32.totalorder %s370, %s373
      %p379 = scmp.eq.s32.totalorder %s36, 0
      %p380 = por %p378, %p379
      %p381 = scmp.ne.s32.totalorder %s370, %s373
      %p382 = scmp.eq.s32.totalorder %s41, 3
      %p383 = por %p381, %p382
      %p384 = scmp.ne.s32.totalorder %s373, %s374
      %p385 = scmp.eq.s32.totalorder %s41, 0
      %p386 = por %p384, %p385
      %p387 = scmp.ne.s32.totalorder %s373, %s374
      %p388 = scmp.eq.s32.totalorder %s42, 3
      %p389 = por %p387, %p388
      %p391 = scmp.ne.s32.totalorder %s374, %s390
      %p392 = scmp.eq.s32.totalorder %s42, 0
      %p393 = por %p391, %p392
      %s394 = ssub.s32 %s44, %s51
      %p395 = scmp.eq.s32.totalorder %s394, 0
      %s397 = sadd.s32 %s396, 1
      %s398 = scalar_select %p395, %s396, %s397
      %p401 = pneg %p395
      %p402 = scmp.eq.s32.totalorder %s36, 3
      %p403 = por %p401, %p402
      %p404 = scmp.ne.s32.totalorder %s396, %s399
      %p405 = scmp.eq.s32.totalorder %s36, 0
      %p406 = por %p404, %p405
      %p407 = scmp.ne.s32.totalorder %s396, %s399
      %p408 = scmp.eq.s32.totalorder %s41, 3
      %p409 = por %p407, %p408
      %p410 = scmp.ne.s32.totalorder %s399, %s400
      %p411 = scmp.eq.s32.totalorder %s41, 0
      %p412 = por %p410, %p411
      %p413 = scmp.ne.s32.totalorder %s399, %s400
      %p414 = scmp.eq.s32.totalorder %s42, 3
      %p415 = por %p413, %p414
      %p417 = scmp.ne.s32.totalorder %s400, %s416
      %p418 = scmp.eq.s32.totalorder %s42, 0
      %p419 = por %p417, %p418
      %s420 = ssub.s32 %s44, %s51
      %p421 = scmp.eq.s32.totalorder %s420, 0
      %s423 = sadd.s32 %s422, 1
      %s424 = scalar_select %p421, %s422, %s423
      %p427 = pneg %p421
      %p428 = scmp.eq.s32.totalorder %s36, 3
      %p429 = por %p427, %p428
      %p430 = scmp.ne.s32.totalorder %s422, %s425
      %p431 = scmp.eq.s32.totalorder %s36, 0
      %p432 = por %p430, %p431
      %p433 = scmp.ne.s32.totalorder %s422, %s425
      %p434 = scmp.eq.s32.totalorder %s41, 3
      %p435 = por %p433, %p434
      %p436 = scmp.ne.s32.totalorder %s425, %s426
      %p437 = scmp.eq.s32.totalorder %s41, 0
      %p438 = por %p436, %p437
      %p439 = scmp.ne.s32.totalorder %s425, %s426
      %p440 = scmp.eq.s32.totalorder %s42, 3
      %p441 = por %p439, %p440
      %p443 = scmp.ne.s32.totalorder %s426, %s442
      %p444 = scmp.eq.s32.totalorder %s42, 0
      %p445 = por %p443, %p444
      %s446 = ssub.s32 %s44, %s51
      %p447 = scmp.eq.s32.totalorder %s446, 0
      %s449 = sadd.s32 %s448, 1
      %s450 = scalar_select %p447, %s448, %s449
      %p453 = pneg %p447
      %p454 = scmp.eq.s32.totalorder %s36, 3
      %p455 = por %p453, %p454
      %p456 = scmp.ne.s32.totalorder %s448, %s451
      %p457 = scmp.eq.s32.totalorder %s36, 0
      %p458 = por %p456, %p457
      %p459 = scmp.ne.s32.totalorder %s448, %s451
      %p460 = scmp.eq.s32.totalorder %s41, 3
      %p461 = por %p459, %p460
      %p462 = scmp.ne.s32.totalorder %s451, %s452
      %p463 = scmp.eq.s32.totalorder %s41, 0
      %p464 = por %p462, %p463
      %p465 = scmp.ne.s32.totalorder %s451, %s452
      %p466 = scmp.eq.s32.totalorder %s42, 3
      %p467 = por %p465, %p466
      %p469 = scmp.ne.s32.totalorder %s452, %s468
      %p470 = scmp.eq.s32.totalorder %s42, 0
      %p471 = por %p469, %p470
      %s472 = ssub.s32 %s44, %s51
      %p473 = scmp.eq.s32.totalorder %s472, 0
      %s475 = sadd.s32 %s474, 1
      %s476 = scalar_select %p473, %s474, %s475
      %p479 = pneg %p473
      %p480 = scmp.eq.s32.totalorder %s36, 3
      %p481 = por %p479, %p480
      %p482 = scmp.ne.s32.totalorder %s474, %s477
      %p483 = scmp.eq.s32.totalorder %s36, 0
      %p484 = por %p482, %p483
      %p485 = scmp.ne.s32.totalorder %s474, %s477
      %p486 = scmp.eq.s32.totalorder %s41, 3
      %p487 = por %p485, %p486
      %p488 = scmp.ne.s32.totalorder %s477, %s478
      %p489 = scmp.eq.s32.totalorder %s41, 0
      %p490 = por %p488, %p489
      %p491 = scmp.ne.s32.totalorder %s477, %s478
      %p492 = scmp.eq.s32.totalorder %s42, 3
      %p493 = por %p491, %p492
      %p495 = scmp.ne.s32.totalorder %s478, %s494
      %p496 = scmp.eq.s32.totalorder %s42, 0
      %p497 = por %p495, %p496
      %s498 = ssub.s32 %s44, %s51
      %p499 = scmp.eq.s32.totalorder %s498, 0
      %s501 = sadd.s32 %s500, 1
      %s502 = scalar_select %p499, %s500, %s501
      %p505 = pneg %p499
      %p506 = scmp.eq.s32.totalorder %s36, 3
      %p507 = por %p505, %p506
      %p508 = scmp.ne.s32.totalorder %s500, %s503
      %p509 = scmp.eq.s32.totalorder %s36, 0
      %p510 = por %p508, %p509
      %p511 = scmp.ne.s32.totalorder %s500, %s503
      %p512 = scmp.eq.s32.totalorder %s41, 3
      %p513 = por %p511, %p512
      %p514 = scmp.ne.s32.totalorder %s503, %s504
      %p515 = scmp.eq.s32.totalorder %s41, 0
      %p516 = por %p514, %p515
      %p517 = scmp.ne.s32.totalorder %s503, %s504
      %p518 = scmp.eq.s32.totalorder %s42, 3
      %p519 = por %p517, %p518
      %p521 = scmp.ne.s32.totalorder %s504, %s520
      %p522 = scmp.eq.s32.totalorder %s42, 0
      %p523 = por %p521, %p522
      %s525 = sadd.s32 %s524, 1
      %p528 = scmp.eq.s32.totalorder %s36, 3
      %p529 = scmp.ne.s32.totalorder %s524, %s526
      %p530 = scmp.eq.s32.totalorder %s36, 0
      %p531 = por %p529, %p530
      %p532 = scmp.ne.s32.totalorder %s524, %s526
      %p533 = scmp.eq.s32.totalorder %s41, 3
      %p534 = por %p532, %p533
      %p535 = scmp.ne.s32.totalorder %s526, %s527
      %p536 = scmp.eq.s32.totalorder %s41, 0
      %p537 = por %p535, %p536
      %p538 = scmp.ne.s32.totalorder %s526, %s527
      %p539 = scmp.eq.s32.totalorder %s42, 3
      %p540 = por %p538, %p539
      %p542 = scmp.ne.s32.totalorder %s527, %s541
      %p543 = scmp.eq.s32.totalorder %s42, 0
      %p544 = por %p542, %p543
      %s546 = sadd.s32 %s545, 1
      %p549 = scmp.eq.s32.totalorder %s36, 3
      %p550 = scmp.ne.s32.totalorder %s545, %s547
      %p551 = scmp.eq.s32.totalorder %s36, 0
      %p552 = por %p550, %p551
      %p553 = scmp.ne.s32.totalorder %s545, %s547
      %p554 = scmp.eq.s32.totalorder %s41, 3
      %p555 = por %p553, %p554
      %p556 = scmp.ne.s32.totalorder %s547, %s548
      %p557 = scmp.eq.s32.totalorder %s41, 0
      %p558 = por %p556, %p557
      %p559 = scmp.ne.s32.totalorder %s547, %s548
      %p560 = scmp.eq.s32.totalorder %s42, 3
      %p561 = por %p559, %p560
      %p563 = scmp.ne.s32.totalorder %s548, %s562
      %p564 = scmp.eq.s32.totalorder %s42, 0
      %p565 = por %p563, %p564
      %s567 = sadd.s32 %s566, 1
      %p570 = scmp.eq.s32.totalorder %s36, 3
      %p571 = scmp.ne.s32.totalorder %s566, %s568
      %p572 = scmp.eq.s32.totalorder %s36, 0
      %p573 = por %p571, %p572
      %p574 = scmp.ne.s32.totalorder %s566, %s568
      %p575 = scmp.eq.s32.totalorder %s41, 3
      %p576 = por %p574, %p575
      %p577 = scmp.ne.s32.totalorder %s568, %s569
      %p578 = scmp.eq.s32.totalorder %s41, 0
      %p579 = por %p577, %p578
      %p580 = scmp.ne.s32.totalorder %s568, %s569
      %p581 = scmp.eq.s32.totalorder %s42, 3
      %p582 = por %p580, %p581
      %p584 = scmp.ne.s32.totalorder %s569, %s583
      %p585 = scmp.eq.s32.totalorder %s42, 0
      %p586 = por %p584, %p585
      %s588 = sadd.s32 %s587, 1
      %p591 = scmp.eq.s32.totalorder %s36, 3
      %p592 = scmp.ne.s32.totalorder %s587, %s589
      %p593 = scmp.eq.s32.totalorder %s36, 0
      %p594 = por %p592, %p593
      %p595 = scmp.ne.s32.totalorder %s587, %s589
      %p596 = scmp.eq.s32.totalorder %s41, 3
      %p597 = por %p595, %p596
      %p598 = scmp.ne.s32.totalorder %s589, %s590
      %p599 = scmp.eq.s32.totalorder %s41, 0
      %p600 = por %p598, %p599
      %p601 = scmp.ne.s32.totalorder %s589, %s590
      %p602 = scmp.eq.s32.totalorder %s42, 3
      %p603 = por %p601, %p602
      %p605 = scmp.ne.s32.totalorder %s590, %s604
      %p606 = scmp.eq.s32.totalorder %s42, 0
      %p607 = por %p605, %p606
      %s608 = ssub.s32 %s43, %s55
      %p609 = scmp.eq.s32.totalorder %s608, 0
      %s611 = sadd.s32 %s610, 1
      %s612 = scalar_select %p609, %s610, %s611
      %p615 = pneg %p609
      %p616 = scmp.eq.s32.totalorder %s36, 3
      %p617 = por %p615, %p616
      %p618 = scmp.ne.s32.totalorder %s610, %s613
      %p619 = scmp.eq.s32.totalorder %s36, 0
      %p620 = por %p618, %p619
      %p621 = scmp.ne.s32.totalorder %s610, %s613
      %p622 = scmp.eq.s32.totalorder %s41, 3
      %p623 = por %p621, %p622
      %p624 = scmp.ne.s32.totalorder %s613, %s614
      %p625 = scmp.eq.s32.totalorder %s41, 0
      %p626 = por %p624, %p625
      %p627 = scmp.ne.s32.totalorder %s613, %s614
      %p628 = scmp.eq.s32.totalorder %s42, 3
      %p629 = por %p627, %p628
      %p631 = scmp.ne.s32.totalorder %s614, %s630
      %p632 = scmp.eq.s32.totalorder %s42, 0
      %p633 = por %p631, %p632
      %s634 = ssub.s32 %s43, %s55
      %p635 = scmp.eq.s32.totalorder %s634, 0
      %s637 = sadd.s32 %s636, 1
      %s638 = scalar_select %p635, %s636, %s637
      %p641 = pneg %p635
      %p642 = scmp.eq.s32.totalorder %s36, 3
      %p643 = por %p641, %p642
      %p644 = scmp.ne.s32.totalorder %s636, %s639
      %p645 = scmp.eq.s32.totalorder %s36, 0
      %p646 = por %p644, %p645
      %p647 = scmp.ne.s32.totalorder %s636, %s639
      %p648 = scmp.eq.s32.totalorder %s41, 3
      %p649 = por %p647, %p648
      %p650 = scmp.ne.s32.totalorder %s639, %s640
      %p651 = scmp.eq.s32.totalorder %s41, 0
      %p652 = por %p650, %p651
      %p653 = scmp.ne.s32.totalorder %s639, %s640
      %p654 = scmp.eq.s32.totalorder %s42, 3
      %p655 = por %p653, %p654
      %p657 = scmp.ne.s32.totalorder %s640, %s656
      %p658 = scmp.eq.s32.totalorder %s42, 0
      %p659 = por %p657, %p658
      %p660 = scmp.le.s32.totalorder 1, %s36
      %p661 = scmp.lt.s32.totalorder %s36, 5
      %p662 = pnand %p660, %p661
      %p663 = pneg %p662
      // Predicated region
      $region9: #{tpu_custom_call.1} parent=5 // pred_check
        _
      $region10: #{tpu_custom_call.1} parent=5 // pred_check_branch
        %665 = sbr.rel (%p662) target = $region12
      $region11: #{tpu_custom_call.1} parent=5 // pred_region
        %s666 = ssub.s32 %s36, 1
        // Predicated region
        $region13: #{tpu_custom_call.1} parent=11 // pred_check
          %p667 = pneg %p537
        $region14: #{tpu_custom_call.1} parent=11 // pred_check_branch
          %669 = sbr.rel (%p667) target = $region16
        $region15: #{tpu_custom_call.1} parent=11 // pred_region
          _
        $region16: #{tpu_custom_call.1} parent=11 // pred_fallthru
          _
        // Predicated region
        $region17: #{tpu_custom_call.1} parent=11 // pred_check
          %p670 = pneg %p558
        $region18: #{tpu_custom_call.1} parent=11 // pred_check_branch
          %672 = sbr.rel (%p670) target = $region20
        $region19: #{tpu_custom_call.1} parent=11 // pred_region
          _
        $region20: #{tpu_custom_call.1} parent=11 // pred_fallthru
          _
        // Predicated region
        $region21: #{tpu_custom_call.1} parent=11 // pred_check
          %p673 = pneg %p579
        $region22: #{tpu_custom_call.1} parent=11 // pred_check_branch
          %675 = sbr.rel (%p673) target = $region24
        $region23: #{tpu_custom_call.1} parent=11 // pred_region
          _
        $region24: #{tpu_custom_call.1} parent=11 // pred_fallthru
          _
        // Predicated region
        $region25: #{tpu_custom_call.1} parent=11 // pred_check
          %p676 = pneg %p600
        $region26: #{tpu_custom_call.1} parent=11 // pred_check_branch
          %678 = sbr.rel (%p676) target = $region28
        $region27: #{tpu_custom_call.1} parent=11 // pred_region
          _
        $region28: #{tpu_custom_call.1} parent=11 // pred_fallthru
          _
      $region12: #{tpu_custom_call.1} parent=5 // pred_fallthru
        _
      %p679 = scmp.lt.s32.totalorder %s36, 4
      // Predicated region
      $region29: #{tpu_custom_call.1} parent=5 // pred_check
        %p680 = pneg %p679
      $region30: #{tpu_custom_call.1} parent=5 // pred_check_branch
        %682 = sbr.rel (%p680) target = $region32
      $region31: #{tpu_custom_call.1} parent=5 // pred_region
        // Predicated region
        $region33: #{tpu_custom_call.1} parent=31 // pred_check
          %p683 = pneg %p68
        $region34: #{tpu_custom_call.1} parent=31 // pred_check_branch
          %685 = sbr.rel (%p683) target = $region36
        $region35: #{tpu_custom_call.1} parent=31 // pred_region
          %p686 = scmp.lt.s32.totalorder %s43, 1
          %s687 = scalar_select %p686, %s43, 1
          %s688 = smul.addr %s687, 8
          %s689 = scalar_lea.vmem %s0, %s688
        $region36: #{tpu_custom_call.1} parent=31 // pred_fallthru
          _
        // Predicated region
        $region37: #{tpu_custom_call.1} parent=31 // pred_check
          %p690 = pneg %p94
        $region38: #{tpu_custom_call.1} parent=31 // pred_check_branch
          %692 = sbr.rel (%p690) target = $region40
        $region39: #{tpu_custom_call.1} parent=31 // pred_region
          %p693 = scmp.lt.s32.totalorder %s43, 1
          %s694 = scalar_select %p693, %s43, 1
          %s695 = scalar_lea.vmem %s1, %s694
        $region40: #{tpu_custom_call.1} parent=31 // pred_fallthru
          _
        // Predicated region
        $region41: #{tpu_custom_call.1} parent=31 // pred_check
          %p696 = pneg %p120
        $region42: #{tpu_custom_call.1} parent=31 // pred_check_branch
          %698 = sbr.rel (%p696) target = $region44
        $region43: #{tpu_custom_call.1} parent=31 // pred_region
          %p699 = scmp.lt.s32.totalorder %s44, 1
          %s700 = scalar_select %p699, %s44, 1
          %s701 = scalar_lea.vmem %s2, %s700
        $region44: #{tpu_custom_call.1} parent=31 // pred_fallthru
          _
        // Predicated region
        $region45: #{tpu_custom_call.1} parent=31 // pred_check
          %p702 = pneg %p146
        $region46: #{tpu_custom_call.1} parent=31 // pred_check_branch
          %704 = sbr.rel (%p702) target = $region48
        $region47: #{tpu_custom_call.1} parent=31 // pred_region
          %p705 = scmp.lt.s32.totalorder %s44, 1
          %s706 = scalar_select %p705, %s44, 1
          %s707 = scalar_lea.vmem %s3, %s706
        $region48: #{tpu_custom_call.1} parent=31 // pred_fallthru
          _
        // Predicated region
        $region49: #{tpu_custom_call.1} parent=31 // pred_check
          %p708 = pneg %p172
        $region50: #{tpu_custom_call.1} parent=31 // pred_check_branch
          %710 = sbr.rel (%p708) target = $region52
        $region51: #{tpu_custom_call.1} parent=31 // pred_region
          %p711 = scmp.lt.s32.totalorder %s44, 1
          %s712 = scalar_select %p711, %s44, 1
          %s713 = smul.addr %s712, 64
          %s714 = smul.addr %s713, 4
          %s715 = scalar_lea.vmem %s4, %s714
        $region52: #{tpu_custom_call.1} parent=31 // pred_fallthru
          _
        // Predicated region
        $region53: #{tpu_custom_call.1} parent=31 // pred_check
          %p716 = pneg %p198
        $region54: #{tpu_custom_call.1} parent=31 // pred_check_branch
          %718 = sbr.rel (%p716) target = $region56
        $region55: #{tpu_custom_call.1} parent=31 // pred_region
          %p719 = scmp.lt.s32.totalorder %s44, 1
          %s720 = scalar_select %p719, %s44, 1
          %s721 = smul.addr %s720, 4
          %s722 = scalar_lea.vmem %s5, %s721
        $region56: #{tpu_custom_call.1} parent=31 // pred_fallthru
          _
        // Predicated region
        $region57: #{tpu_custom_call.1} parent=31 // pred_check
          %p723 = pneg %p224
        $region58: #{tpu_custom_call.1} parent=31 // pred_check_branch
          %725 = sbr.rel (%p723) target = $region60
        $region59: #{tpu_custom_call.1} parent=31 // pred_region
          %p726 = scmp.lt.s32.totalorder %s44, 1
          %s727 = scalar_select %p726, %s44, 1
          %s728 = smul.addr %s727, 64
          %s729 = smul.addr %s728, 4
          %s730 = scalar_lea.vmem %s6, %s729
        $region60: #{tpu_custom_call.1} parent=31 // pred_fallthru
          _
        // Predicated region
        $region61: #{tpu_custom_call.1} parent=31 // pred_check
          %p731 = pneg %p250
        $region62: #{tpu_custom_call.1} parent=31 // pred_check_branch
          %733 = sbr.rel (%p731) target = $region64
        $region63: #{tpu_custom_call.1} parent=31 // pred_region
          %p734 = scmp.lt.s32.totalorder %s44, 1
          %s735 = scalar_select %p734, %s44, 1
          %s736 = smul.addr %s735, 4
          %s737 = scalar_lea.vmem %s7, %s736
        $region64: #{tpu_custom_call.1} parent=31 // pred_fallthru
          _
        // Predicated region
        $region65: #{tpu_custom_call.1} parent=31 // pred_check
          %p738 = pneg %p276
        $region66: #{tpu_custom_call.1} parent=31 // pred_check_branch
          %740 = sbr.rel (%p738) target = $region68
        $region67: #{tpu_custom_call.1} parent=31 // pred_region
          %p741 = scmp.lt.s32.totalorder %s44, 1
          %s742 = scalar_select %p741, %s44, 1
          %s743 = smul.addr %s742, 64
          %s744 = smul.addr %s743, 4
          %s745 = scalar_lea.vmem %s8, %s744
        $region68: #{tpu_custom_call.1} parent=31 // pred_fallthru
          _
        // Predicated region
        $region69: #{tpu_custom_call.1} parent=31 // pred_check
          %p746 = pneg %p302
        $region70: #{tpu_custom_call.1} parent=31 // pred_check_branch
          %748 = sbr.rel (%p746) target = $region72
        $region71: #{tpu_custom_call.1} parent=31 // pred_region
          %p749 = scmp.lt.s32.totalorder %s44, 1
          %s750 = scalar_select %p749, %s44, 1
          %s751 = smul.addr %s750, 4
          %s752 = scalar_lea.vmem %s9, %s751
        $region72: #{tpu_custom_call.1} parent=31 // pred_fallthru
          _
        // Predicated region
        $region73: #{tpu_custom_call.1} parent=31 // pred_check
          %p753 = pneg %p328
        $region74: #{tpu_custom_call.1} parent=31 // pred_check_branch
          %755 = sbr.rel (%p753) target = $region76
        $region75: #{tpu_custom_call.1} parent=31 // pred_region
          %p756 = scmp.lt.s32.totalorder %s44, 1
          %s757 = scalar_select %p756, %s44, 1
          %s758 = smul.addr %s757, 16
          %s759 = smul.addr %s758, 4
          %s760 = scalar_lea.vmem %s10, %s759
        $region76: #{tpu_custom_call.1} parent=31 // pred_fallthru
          _
        // Predicated region
        $region77: #{tpu_custom_call.1} parent=31 // pred_check
          %p761 = pneg %p354
        $region78: #{tpu_custom_call.1} parent=31 // pred_check_branch
          %763 = sbr.rel (%p761) target = $region80
        $region79: #{tpu_custom_call.1} parent=31 // pred_region
          %p764 = scmp.lt.s32.totalorder %s44, 1
          %s765 = scalar_select %p764, %s44, 1
          %s766 = scalar_lea.vmem %s11, %s765
        $region80: #{tpu_custom_call.1} parent=31 // pred_fallthru
          _
        // Predicated region
        $region81: #{tpu_custom_call.1} parent=31 // pred_check
          %p767 = pneg %p380
        $region82: #{tpu_custom_call.1} parent=31 // pred_check_branch
          %769 = sbr.rel (%p767) target = $region84
        $region83: #{tpu_custom_call.1} parent=31 // pred_region
          %p770 = scmp.lt.s32.totalorder %s44, 1
          %s771 = scalar_select %p770, %s44, 1
          %s772 = scalar_lea.vmem %s12, %s771
        $region84: #{tpu_custom_call.1} parent=31 // pred_fallthru
          _
        // Predicated region
        $region85: #{tpu_custom_call.1} parent=31 // pred_check
          %p773 = pneg %p406
        $region86: #{tpu_custom_call.1} parent=31 // pred_check_branch
          %775 = sbr.rel (%p773) target = $region88
        $region87: #{tpu_custom_call.1} parent=31 // pred_region
          %p776 = scmp.lt.s32.totalorder %s44, 1
          %s777 = scalar_select %p776, %s44, 1
          %s778 = scalar_lea.vmem %s13, %s777
        $region88: #{tpu_custom_call.1} parent=31 // pred_fallthru
          _
        // Predicated region
        $region89: #{tpu_custom_call.1} parent=31 // pred_check
          %p779 = pneg %p432
        $region90: #{tpu_custom_call.1} parent=31 // pred_check_branch
          %781 = sbr.rel (%p779) target = $region92
        $region91: #{tpu_custom_call.1} parent=31 // pred_region
          %p782 = scmp.lt.s32.totalorder %s44, 1
          %s783 = scalar_select %p782, %s44, 1
          %s784 = smul.addr %s783, 32
          %s785 = smul.addr %s784, 4
          %s786 = scalar_lea.vmem %s14, %s785
        $region92: #{tpu_custom_call.1} parent=31 // pred_fallthru
          _
        // Predicated region
        $region93: #{tpu_custom_call.1} parent=31 // pred_check
          %p787 = pneg %p458
        $region94: #{tpu_custom_call.1} parent=31 // pred_check_branch
          %789 = sbr.rel (%p787) target = $region96
        $region95: #{tpu_custom_call.1} parent=31 // pred_region
          %p790 = scmp.lt.s32.totalorder %s44, 1
          %s791 = scalar_select %p790, %s44, 1
          %s792 = smul.addr %s791, 2
          %s793 = scalar_lea.vmem %s15, %s792
        $region96: #{tpu_custom_call.1} parent=31 // pred_fallthru
          _
        // Predicated region
        $region97: #{tpu_custom_call.1} parent=31 // pred_check
          %p794 = pneg %p484
        $region98: #{tpu_custom_call.1} parent=31 // pred_check_branch
          %796 = sbr.rel (%p794) target = $region100
        $region99: #{tpu_custom_call.1} parent=31 // pred_region
          %p797 = scmp.lt.s32.totalorder %s44, 1
          %s798 = scalar_select %p797, %s44, 1
          %s799 = smul.addr %s798, 32
          %s800 = smul.addr %s799, 4
          %s801 = scalar_lea.vmem %s16, %s800
        $region100: #{tpu_custom_call.1} parent=31 // pred_fallthru
          _
        // Predicated region
        $region101: #{tpu_custom_call.1} parent=31 // pred_check
          %p802 = pneg %p510
        $region102: #{tpu_custom_call.1} parent=31 // pred_check_branch
          %804 = sbr.rel (%p802) target = $region104
        $region103: #{tpu_custom_call.1} parent=31 // pred_region
          %p805 = scmp.lt.s32.totalorder %s44, 1
          %s806 = scalar_select %p805, %s44, 1
          %s807 = scalar_lea.vmem %s17, %s806
        $region104: #{tpu_custom_call.1} parent=31 // pred_fallthru
          _
      $region32: #{tpu_custom_call.1} parent=5 // pred_fallthru
        _
      %p808 = scmp.le.s32.totalorder 1, %s36
      %p809 = scmp.lt.s32.totalorder %s36, 5
      %p810 = pnand %p808, %p809
      %p811 = pneg %p810
      // Predicated region
      $region105: #{tpu_custom_call.1} parent=5 // pred_check
        _
      $region106: #{tpu_custom_call.1} parent=5 // pred_check_branch
        %813 = sbr.rel (%p810) target = $region108
      $region107: #{tpu_custom_call.1} parent=5 // pred_region
        %s814 = ssub.s32 %s36, 1
        %p815 = scmp.lt.s32.totalorder %s45, 1
        %s816 = scalar_select %p815, %s45, 1
        %s817 = smul.addr %s816, 8
        %s818 = scalar_lea.vmem %s0, %s817
        %p819 = pneg %p74
        %p820 = pneg %p71
        %p821 = scmp.lt.s32.totalorder %s45, 1
        %s822 = scalar_select %p821, %s45, 1
        %s823 = scalar_lea.vmem %s1, %s822
        %p824 = pneg %p100
        %p825 = pneg %p97
        %p826 = scmp.lt.s32.totalorder %s46, 1
        %s827 = scalar_select %p826, %s46, 1
        %s828 = scalar_lea.vmem %s2, %s827
        %p829 = pneg %p126
        %p830 = pneg %p123
        %p831 = scmp.lt.s32.totalorder %s46, 1
        %s832 = scalar_select %p831, %s46, 1
        %s833 = scalar_lea.vmem %s3, %s832
        %p834 = pneg %p152
        %p835 = pneg %p149
        %p836 = scmp.lt.s32.totalorder %s46, 1
        %s837 = scalar_select %p836, %s46, 1
        %s838 = smul.addr %s837, 64
        %s839 = smul.addr %s838, 4
        %s840 = scalar_lea.vmem %s4, %s839
        %p841 = pneg %p178
        %p842 = pneg %p175
        %p843 = scmp.lt.s32.totalorder %s46, 1
        %s844 = scalar_select %p843, %s46, 1
        %s845 = smul.addr %s844, 4
        %s846 = scalar_lea.vmem %s5, %s845
        %p847 = pneg %p204
        %p848 = pneg %p201
        %p849 = scmp.lt.s32.totalorder %s46, 1
        %s850 = scalar_select %p849, %s46, 1
        %s851 = smul.addr %s850, 64
        %s852 = smul.addr %s851, 4
        %s853 = scalar_lea.vmem %s6, %s852
        %p854 = pneg %p230
        %p855 = pneg %p227
        %p856 = scmp.lt.s32.totalorder %s46, 1
        %s857 = scalar_select %p856, %s46, 1
        %s858 = smul.addr %s857, 4
        %s859 = scalar_lea.vmem %s7, %s858
        %p860 = pneg %p256
        %p861 = pneg %p253
        %p862 = scmp.lt.s32.totalorder %s46, 1
        %s863 = scalar_select %p862, %s46, 1
        %s864 = smul.addr %s863, 64
        %s865 = smul.addr %s864, 4
        %s866 = scalar_lea.vmem %s8, %s865
        %p867 = pneg %p282
        %p868 = pneg %p279
        %p869 = scmp.lt.s32.totalorder %s46, 1
        %s870 = scalar_select %p869, %s46, 1
        %s871 = smul.addr %s870, 4
        %s872 = scalar_lea.vmem %s9, %s871
        %p873 = pneg %p308
        %p874 = pneg %p305
        %p875 = scmp.lt.s32.totalorder %s46, 1
        %s876 = scalar_select %p875, %s46, 1
        %s877 = smul.addr %s876, 16
        %s878 = smul.addr %s877, 4
        %s879 = scalar_lea.vmem %s10, %s878
        %p880 = pneg %p334
        %p881 = pneg %p331
        %p882 = scmp.lt.s32.totalorder %s46, 1
        %s883 = scalar_select %p882, %s46, 1
        %s884 = scalar_lea.vmem %s11, %s883
        %p885 = pneg %p360
        %p886 = pneg %p357
        %p887 = scmp.lt.s32.totalorder %s46, 1
        %s888 = scalar_select %p887, %s46, 1
        %s889 = scalar_lea.vmem %s12, %s888
        %p890 = pneg %p386
        %p891 = pneg %p383
        %p892 = scmp.lt.s32.totalorder %s46, 1
        %s893 = scalar_select %p892, %s46, 1
        %s894 = scalar_lea.vmem %s13, %s893
        %p895 = pneg %p412
        %p896 = pneg %p409
        %p897 = scmp.lt.s32.totalorder %s46, 1
        %s898 = scalar_select %p897, %s46, 1
        %s899 = smul.addr %s898, 32
        %s900 = smul.addr %s899, 4
        %s901 = scalar_lea.vmem %s14, %s900
        %p902 = pneg %p438
        %p903 = pneg %p435
        %p904 = scmp.lt.s32.totalorder %s46, 1
        %s905 = scalar_select %p904, %s46, 1
        %s906 = smul.addr %s905, 2
        %s907 = scalar_lea.vmem %s15, %s906
        %p908 = pneg %p464
        %p909 = pneg %p461
        %p910 = scmp.lt.s32.totalorder %s46, 1
        %s911 = scalar_select %p910, %s46, 1
        %s912 = smul.addr %s911, 32
        %s913 = smul.addr %s912, 4
        %s914 = scalar_lea.vmem %s16, %s913
        %p915 = pneg %p490
        %p916 = pneg %p487
        %p917 = scmp.lt.s32.totalorder %s46, 1
        %s918 = scalar_select %p917, %s46, 1
        %s919 = scalar_lea.vmem %s17, %s918
        %p920 = pneg %p516
        %p921 = pneg %p513
        %p922 = pneg %p537
        %p923 = pneg %p534
        %p924 = pneg %p558
        %p925 = pneg %p555
        %p926 = pneg %p579
        %p927 = pneg %p576
        %p928 = pneg %p600
        %p929 = pneg %p597
        %p930 = pneg %p626
        %p931 = pneg %p623
        %s932 = sand.u32 %s613, 1
        %s933 = scalar_lea.sflag [#allocation4], %s932
        %s934 = sand.u32 %s613, 1
        %s935 = smul.addr %s934, 8
        %s936 = scalar_lea.vmem [#allocation3], %s935
        %p937 = pneg %p652
        %p938 = pneg %p649
        %s939 = sand.u32 %s639, 1
        %s940 = scalar_lea.sflag [#allocation6], %s939
        %s941 = sand.u32 %s639, 1
        %s942 = scalar_lea.vmem [#allocation5], %s941
        %p943 = scmp.lt.s32.totalorder %s45, 1
        %s944 = scalar_select %p943, %s45, 1
        %s945 = smul.addr %s944, 8
        %s946 = scalar_lea.vmem %s0, %s945
        %p947 = scmp.lt.s32.totalorder %s45, 1
        %s948 = scalar_select %p947, %s45, 1
        %s949 = scalar_lea.vmem %s1, %s948
        %p950 = scmp.lt.s32.totalorder %s46, 1
        %s951 = scalar_select %p950, %s46, 1
        %s952 = scalar_lea.vmem %s2, %s951
        %p953 = scmp.lt.s32.totalorder %s46, 1
        %s954 = scalar_select %p953, %s46, 1
        %s955 = scalar_lea.vmem %s3, %s954
        %p956 = scmp.lt.s32.totalorder %s46, 1
        %s957 = scalar_select %p956, %s46, 1
        %s958 = smul.addr %s957, 64
        %s959 = smul.addr %s958, 4
        %s960 = scalar_lea.vmem %s4, %s959
        %p961 = scmp.lt.s32.totalorder %s46, 1
        %s962 = scalar_select %p961, %s46, 1
        %s963 = smul.addr %s962, 4
        %s964 = scalar_lea.vmem %s5, %s963
        %p965 = scmp.lt.s32.totalorder %s46, 1
        %s966 = scalar_select %p965, %s46, 1
        %s967 = smul.addr %s966, 64
        %s968 = smul.addr %s967, 4
        %s969 = scalar_lea.vmem %s6, %s968
        %p970 = scmp.lt.s32.totalorder %s46, 1
        %s971 = scalar_select %p970, %s46, 1
        %s972 = smul.addr %s971, 4
        %s973 = scalar_lea.vmem %s7, %s972
        %p974 = scmp.lt.s32.totalorder %s46, 1
        %s975 = scalar_select %p974, %s46, 1
        %s976 = smul.addr %s975, 64
        %s977 = smul.addr %s976, 4
        %s978 = scalar_lea.vmem %s8, %s977
        %p979 = scmp.lt.s32.totalorder %s46, 1
        %s980 = scalar_select %p979, %s46, 1
        %s981 = smul.addr %s980, 4
        %s982 = scalar_lea.vmem %s9, %s981
        %p983 = scmp.lt.s32.totalorder %s46, 1
        %s984 = scalar_select %p983, %s46, 1
        %s985 = smul.addr %s984, 16
        %s986 = smul.addr %s985, 4
        %s987 = scalar_lea.vmem %s10, %s986
        %p988 = scmp.lt.s32.totalorder %s46, 1
        %s989 = scalar_select %p988, %s46, 1
        %s990 = scalar_lea.vmem %s11, %s989
        %p991 = scmp.lt.s32.totalorder %s46, 1
        %s992 = scalar_select %p991, %s46, 1
        %s993 = scalar_lea.vmem %s12, %s992
        %p994 = scmp.lt.s32.totalorder %s46, 1
        %s995 = scalar_select %p994, %s46, 1
        %s996 = scalar_lea.vmem %s13, %s995
        %p997 = scmp.lt.s32.totalorder %s46, 1
        %s998 = scalar_select %p997, %s46, 1
        %s999 = smul.addr %s998, 32
        %s1000 = smul.addr %s999, 4
        %s1001 = scalar_lea.vmem %s14, %s1000
        %p1002 = scmp.lt.s32.totalorder %s46, 1
        %s1003 = scalar_select %p1002, %s46, 1
        %s1004 = smul.addr %s1003, 2
        %s1005 = scalar_lea.vmem %s15, %s1004
        %p1006 = scmp.lt.s32.totalorder %s46, 1
        %s1007 = scalar_select %p1006, %s46, 1
        %s1008 = smul.addr %s1007, 32
        %s1009 = smul.addr %s1008, 4
        %s1010 = scalar_lea.vmem %s16, %s1009
        %p1011 = scmp.lt.s32.totalorder %s46, 1
        %s1012 = scalar_select %p1011, %s46, 1
        %s1013 = scalar_lea.vmem %s17, %s1012
        %p1015 = scmp.eq.s32.totalorder %s46, 0
        // Predicated region
        $region109: #{tpu_custom_call.1} parent=107 // pred_check
          %p1016 = pneg %p1015
        $region110: #{tpu_custom_call.1} parent=107 // pred_check_branch
          %1018 = sbr.rel (%p1016) target = $region112
        $region111: #{tpu_custom_call.1} parent=107 // pred_region
          %v1019 = vld [vmem:[%s946] sm:$0xff]
          %1020 = vst [vmem:[#allocation2] sm:$0xff] %v1019
        $region112: #{tpu_custom_call.1} parent=107 // pred_fallthru
          _
        %v1021 = vld [vmem:[#allocation2] sm:$0xff]
        %v1022 = vld [vmem:[%s952] sm:$0x1]
        %v1023 = vld [vmem:[%s955] sm:$0x1]
        %1024 = vadd.xlane.f32.xlu0 %v1021
        %v1025 = vpop.xlane.xlu0 %1024
        %v1026 = vrcp.pop 128.0
        %v1027 = vmul.f32 128.0, %v1026
        %v1028 = vsub.f32 1.0, %v1027
        %v1029 = vmul.f32 %v1026, %v1028
        %v1030 = vadd.f32 %v1026, %v1029
        %vm1031 = vweird.f32 %v1026
        %v1032 = vsel %vm1031, %v1026, %v1030
        %v1033 = vmul.f32 %v1025, %v1032
        %v1034 = vsub.f32 %v1021, %v1033
        %v1035 = vmul.f32 %v1034, %v1034
        %1036 = vadd.xlane.f32.xlu0 %v1035
        %v1037 = vpop.xlane.xlu0 %1036
        %v1038 = vmul.f32 %v1037, %v1032
        %v1039 = vadd.f32 %v1038, 1e-05
        %v1040 = vrsqrt.pop %v1039
        %v1041 = vmul.f32 %v1040, %v1039
        %v1042 = vmul.f32 %v1041, %v1040
        %v1043 = vmul.f32 0.5, %v1042
        %v1044 = vsub.f32 1.5, %v1043
        %v1045 = vmul.f32 %v1040, %v1044
        %vm1046 = vweird.f32 %v1039
        %vm1047 = vweird.f32 %v1040
        %vm1048 = vmor %vm1046, %vm1047
        %v1049 = vsel %vm1048, %v1040, %v1045
        %v1050 = vmul.f32 %v1034, %v1049
        %v1052 = vperm.slane %v1022, 0
        %v1054 = vmul.f32 %v1050, %v1052
        %v1056 = vperm.slane %v1023, 0
        %v1058 = vadd.f32 %v1054, %v1056
        %v1059 = vpack.c.bf16 %v1058, %v1058
        %v1060 = vld [vmem:[%s960] sm:$0xf]
        %v1061 = vld [vmem:[%s960 + $0x4] sm:$0xf]
        %v1062 = vld [vmem:[%s960 + $0x8] sm:$0xf]
        %v1063 = vld [vmem:[%s960 + $0xc] sm:$0xf]
        %v1064 = vld [vmem:[%s960 + $0x10] sm:$0xf]
        %v1065 = vld [vmem:[%s960 + $0x14] sm:$0xf]
        %v1066 = vld [vmem:[%s960 + $0x18] sm:$0xf]
        %v1067 = vld [vmem:[%s960 + $0x1c] sm:$0xf]
        %v1068 = vld [vmem:[%s960 + $0x20] sm:$0xf]
        %v1069 = vld [vmem:[%s960 + $0x24] sm:$0xf]
        %v1070 = vld [vmem:[%s960 + $0x28] sm:$0xf]
        %v1071 = vld [vmem:[%s960 + $0x2c] sm:$0xf]
        %v1072 = vld [vmem:[%s960 + $0x30] sm:$0xf]
        %v1073 = vld [vmem:[%s960 + $0x34] sm:$0xf]
        %v1074 = vld [vmem:[%s960 + $0x38] sm:$0xf]
        %v1075 = vld [vmem:[%s960 + $0x3c] sm:$0xf]
        %v1076 = vld [vmem:[%s960 + $0x40] sm:$0xf]
        %v1077 = vld [vmem:[%s960 + $0x44] sm:$0xf]
        %v1078 = vld [vmem:[%s960 + $0x48] sm:$0xf]
        %v1079 = vld [vmem:[%s960 + $0x4c] sm:$0xf]
        %v1080 = vld [vmem:[%s960 + $0x50] sm:$0xf]
        %v1081 = vld [vmem:[%s960 + $0x54] sm:$0xf]
        %v1082 = vld [vmem:[%s960 + $0x58] sm:$0xf]
        %v1083 = vld [vmem:[%s960 + $0x5c] sm:$0xf]
        %v1084 = vld [vmem:[%s960 + $0x60] sm:$0xf]
        %v1085 = vld [vmem:[%s960 + $0x64] sm:$0xf]
        %v1086 = vld [vmem:[%s960 + $0x68] sm:$0xf]
        %v1087 = vld [vmem:[%s960 + $0x6c] sm:$0xf]
        %v1088 = vld [vmem:[%s960 + $0x70] sm:$0xf]
        %v1089 = vld [vmem:[%s960 + $0x74] sm:$0xf]
        %v1090 = vld [vmem:[%s960 + $0x78] sm:$0xf]
        %v1091 = vld [vmem:[%s960 + $0x7c] sm:$0xf]
        %v1092 = vld [vmem:[%s960 + $0x80] sm:$0xf]
        %v1093 = vld [vmem:[%s960 + $0x84] sm:$0xf]
        %v1094 = vld [vmem:[%s960 + $0x88] sm:$0xf]
        %v1095 = vld [vmem:[%s960 + $0x8c] sm:$0xf]
        %v1096 = vld [vmem:[%s960 + $0x90] sm:$0xf]
        %v1097 = vld [vmem:[%s960 + $0x94] sm:$0xf]
        %v1098 = vld [vmem:[%s960 + $0x98] sm:$0xf]
        %v1099 = vld [vmem:[%s960 + $0x9c] sm:$0xf]
        %v1100 = vld [vmem:[%s960 + $0xa0] sm:$0xf]
        %v1101 = vld [vmem:[%s960 + $0xa4] sm:$0xf]
        %v1102 = vld [vmem:[%s960 + $0xa8] sm:$0xf]
        %v1103 = vld [vmem:[%s960 + $0xac] sm:$0xf]
        %v1104 = vld [vmem:[%s960 + $0xb0] sm:$0xf]
        %v1105 = vld [vmem:[%s960 + $0xb4] sm:$0xf]
        %v1106 = vld [vmem:[%s960 + $0xb8] sm:$0xf]
        %v1107 = vld [vmem:[%s960 + $0xbc] sm:$0xf]
        %v1108 = vld [vmem:[%s960 + $0xc0] sm:$0xf]
        %v1109 = vld [vmem:[%s960 + $0xc4] sm:$0xf]
        %v1110 = vld [vmem:[%s960 + $0xc8] sm:$0xf]
        %v1111 = vld [vmem:[%s960 + $0xcc] sm:$0xf]
        %v1112 = vld [vmem:[%s960 + $0xd0] sm:$0xf]
        %v1113 = vld [vmem:[%s960 + $0xd4] sm:$0xf]
        %v1114 = vld [vmem:[%s960 + $0xd8] sm:$0xf]
        %v1115 = vld [vmem:[%s960 + $0xdc] sm:$0xf]
        %v1116 = vld [vmem:[%s960 + $0xe0] sm:$0xf]
        %v1117 = vld [vmem:[%s960 + $0xe4] sm:$0xf]
        %v1118 = vld [vmem:[%s960 + $0xe8] sm:$0xf]
        %v1119 = vld [vmem:[%s960 + $0xec] sm:$0xf]
        %v1120 = vld [vmem:[%s960 + $0xf0] sm:$0xf]
        %v1121 = vld [vmem:[%s960 + $0xf4] sm:$0xf]
        %v1122 = vld [vmem:[%s960 + $0xf8] sm:$0xf]
        %v1123 = vld [vmem:[%s960 + $0xfc] sm:$0xf]
        %v1124 = vld [vmem:[%s964] sm:$0x1]
        %v1125 = vld [vmem:[%s964 + $0x1] sm:$0x1]
        %v1126 = vld [vmem:[%s964 + $0x2] sm:$0x1]
        %v1127 = vld [vmem:[%s964 + $0x3] sm:$0x1]
        %v1132 = vperm.slane %v1124, 0
        %v1133 = vperm.slane %v1125, 0
        %v1134 = vperm.slane %v1126, 0
        %v1135 = vperm.slane %v1127, 0
        %v1156 = vunpack.c.l.b16 %v1060
        %v1157 = vunpack.c.l.b16 %v1061
        %v1158 = vunpack.c.l.b16 %v1062
        %v1159 = vunpack.c.l.b16 %v1063
        %v1160 = vunpack.c.l.b16 %v1064
        %v1161 = vunpack.c.l.b16 %v1065
        %v1162 = vunpack.c.l.b16 %v1066
        %v1163 = vunpack.c.l.b16 %v1067
        %v1164 = vunpack.c.l.b16 %v1068
        %v1165 = vunpack.c.l.b16 %v1069
        %v1166 = vunpack.c.l.b16 %v1070
        %v1167 = vunpack.c.l.b16 %v1071
        %v1168 = vunpack.c.l.b16 %v1072
        %v1169 = vunpack.c.l.b16 %v1073
        %v1170 = vunpack.c.l.b16 %v1074
        %v1171 = vunpack.c.l.b16 %v1075
        %v1172 = vpack.c.b16 %v1157, %v1156
        %v1173 = vpack.c.b16 %v1159, %v1158
        %v1174 = vpack.c.b16 %v1161, %v1160
        %v1175 = vpack.c.b16 %v1163, %v1162
        %v1176 = vpack.c.b16 %v1165, %v1164
        %v1177 = vpack.c.b16 %v1167, %v1166
        %v1178 = vpack.c.b16 %v1169, %v1168
        %v1179 = vpack.c.b16 %v1171, %v1170
        %1188 = vmatpush.bf16.msra.mxu0 %v1179
        %1189 = vmatpush.bf16.msra.mxu0 %v1178
        %1190 = vmatpush.bf16.msra.mxu0 %v1177
        %1191 = vmatpush.bf16.msra.mxu0 %v1176
        %1192 = vmatpush.bf16.msra.mxu0 %v1175
        %1193 = vmatpush.bf16.msra.mxu0 %v1174
        %1194 = vmatpush.bf16.msra.mxu0 %v1173
        %1195 = vmatpush.bf16.msra.mxu0 %v1172
        %1196 = vmatmul.bf16.gmra.mxu0 %v1059
        %v1197 = vpop.f32.mrf.mxu0
        %v1198 = vadd.f32 %v1132, %v1197
        %v1199 = vpop.f32.mrf.mxu0
        %1200 = vdwg.mxu0
        %v1217 = vunpack.c.l.b16 %v1076
        %v1218 = vunpack.c.l.b16 %v1077
        %v1219 = vunpack.c.l.b16 %v1078
        %v1220 = vunpack.c.l.b16 %v1079
        %v1221 = vunpack.c.l.b16 %v1080
        %v1222 = vunpack.c.l.b16 %v1081
        %v1223 = vunpack.c.l.b16 %v1082
        %v1224 = vunpack.c.l.b16 %v1083
        %v1225 = vunpack.c.l.b16 %v1084
        %v1226 = vunpack.c.l.b16 %v1085
        %v1227 = vunpack.c.l.b16 %v1086
        %v1228 = vunpack.c.l.b16 %v1087
        %v1229 = vunpack.c.l.b16 %v1088
        %v1230 = vunpack.c.l.b16 %v1089
        %v1231 = vunpack.c.l.b16 %v1090
        %v1232 = vunpack.c.l.b16 %v1091
        %v1233 = vpack.c.b16 %v1218, %v1217
        %v1234 = vpack.c.b16 %v1220, %v1219
        %v1235 = vpack.c.b16 %v1222, %v1221
        %v1236 = vpack.c.b16 %v1224, %v1223
        %v1237 = vpack.c.b16 %v1226, %v1225
        %v1238 = vpack.c.b16 %v1228, %v1227
        %v1239 = vpack.c.b16 %v1230, %v1229
        %v1240 = vpack.c.b16 %v1232, %v1231
        %1249 = vmatpush.bf16.msra.mxu0 %v1240
        %1250 = vmatpush.bf16.msra.mxu0 %v1239
        %1251 = vmatpush.bf16.msra.mxu0 %v1238
        %1252 = vmatpush.bf16.msra.mxu0 %v1237
        %1253 = vmatpush.bf16.msra.mxu0 %v1236
        %1254 = vmatpush.bf16.msra.mxu0 %v1235
        %1255 = vmatpush.bf16.msra.mxu0 %v1234
        %1256 = vmatpush.bf16.msra.mxu0 %v1233
        %1257 = vmatmul.bf16.gmra.mxu0 %v1059
        %v1258 = vpop.f32.mrf.mxu0
        %v1259 = vadd.f32 %v1133, %v1258
        %v1260 = vpop.f32.mrf.mxu0
        %1261 = vdwg.mxu0
        %v1278 = vunpack.c.l.b16 %v1092
        %v1279 = vunpack.c.l.b16 %v1093
        %v1280 = vunpack.c.l.b16 %v1094
        %v1281 = vunpack.c.l.b16 %v1095
        %v1282 = vunpack.c.l.b16 %v1096
        %v1283 = vunpack.c.l.b16 %v1097
        %v1284 = vunpack.c.l.b16 %v1098
        %v1285 = vunpack.c.l.b16 %v1099
        %v1286 = vunpack.c.l.b16 %v1100
        %v1287 = vunpack.c.l.b16 %v1101
        %v1288 = vunpack.c.l.b16 %v1102
        %v1289 = vunpack.c.l.b16 %v1103
        %v1290 = vunpack.c.l.b16 %v1104
        %v1291 = vunpack.c.l.b16 %v1105
        %v1292 = vunpack.c.l.b16 %v1106
        %v1293 = vunpack.c.l.b16 %v1107
        %v1294 = vpack.c.b16 %v1279, %v1278
        %v1295 = vpack.c.b16 %v1281, %v1280
        %v1296 = vpack.c.b16 %v1283, %v1282
        %v1297 = vpack.c.b16 %v1285, %v1284
        %v1298 = vpack.c.b16 %v1287, %v1286
        %v1299 = vpack.c.b16 %v1289, %v1288
        %v1300 = vpack.c.b16 %v1291, %v1290
        %v1301 = vpack.c.b16 %v1293, %v1292
        %1310 = vmatpush.bf16.msra.mxu0 %v1301
        %1311 = vmatpush.bf16.msra.mxu0 %v1300
        %1312 = vmatpush.bf16.msra.mxu0 %v1299
        %1313 = vmatpush.bf16.msra.mxu0 %v1298
        %1314 = vmatpush.bf16.msra.mxu0 %v1297
        %1315 = vmatpush.bf16.msra.mxu0 %v1296
        %1316 = vmatpush.bf16.msra.mxu0 %v1295
        %1317 = vmatpush.bf16.msra.mxu0 %v1294
        %1318 = vmatmul.bf16.gmra.mxu0 %v1059
        %v1319 = vpop.f32.mrf.mxu0
        %v1320 = vadd.f32 %v1134, %v1319
        %v1321 = vpop.f32.mrf.mxu0
        %1322 = vdwg.mxu0
        %v1339 = vunpack.c.l.b16 %v1108
        %v1340 = vunpack.c.l.b16 %v1109
        %v1341 = vunpack.c.l.b16 %v1110
        %v1342 = vunpack.c.l.b16 %v1111
        %v1343 = vunpack.c.l.b16 %v1112
        %v1344 = vunpack.c.l.b16 %v1113
        %v1345 = vunpack.c.l.b16 %v1114
        %v1346 = vunpack.c.l.b16 %v1115
        %v1347 = vunpack.c.l.b16 %v1116
        %v1348 = vunpack.c.l.b16 %v1117
        %v1349 = vunpack.c.l.b16 %v1118
        %v1350 = vunpack.c.l.b16 %v1119
        %v1351 = vunpack.c.l.b16 %v1120
        %v1352 = vunpack.c.l.b16 %v1121
        %v1353 = vunpack.c.l.b16 %v1122
        %v1354 = vunpack.c.l.b16 %v1123
        %v1355 = vpack.c.b16 %v1340, %v1339
        %v1356 = vpack.c.b16 %v1342, %v1341
        %v1357 = vpack.c.b16 %v1344, %v1343
        %v1358 = vpack.c.b16 %v1346, %v1345
        %v1359 = vpack.c.b16 %v1348, %v1347
        %v1360 = vpack.c.b16 %v1350, %v1349
        %v1361 = vpack.c.b16 %v1352, %v1351
        %v1362 = vpack.c.b16 %v1354, %v1353
        %1371 = vmatpush.bf16.msra.mxu0 %v1362
        %1372 = vmatpush.bf16.msra.mxu0 %v1361
        %1373 = vmatpush.bf16.msra.mxu0 %v1360
        %1374 = vmatpush.bf16.msra.mxu0 %v1359
        %1375 = vmatpush.bf16.msra.mxu0 %v1358
        %1376 = vmatpush.bf16.msra.mxu0 %v1357
        %1377 = vmatpush.bf16.msra.mxu0 %v1356
        %1378 = vmatpush.bf16.msra.mxu0 %v1355
        %1379 = vmatmul.bf16.gmra.mxu0 %v1059
        %v1380 = vpop.f32.mrf.mxu0
        %v1381 = vadd.f32 %v1135, %v1380
        %v1382 = vpop.f32.mrf.mxu0
        %1383 = vdwg.mxu0
        %v1384 = vld [vmem:[%s969] sm:$0xf]
        %v1385 = vld [vmem:[%s969 + $0x4] sm:$0xf]
        %v1386 = vld [vmem:[%s969 + $0x8] sm:$0xf]
        %v1387 = vld [vmem:[%s969 + $0xc] sm:$0xf]
        %v1388 = vld [vmem:[%s969 + $0x10] sm:$0xf]
        %v1389 = vld [vmem:[%s969 + $0x14] sm:$0xf]
        %v1390 = vld [vmem:[%s969 + $0x18] sm:$0xf]
        %v1391 = vld [vmem:[%s969 + $0x1c] sm:$0xf]
        %v1392 = vld [vmem:[%s969 + $0x20] sm:$0xf]
        %v1393 = vld [vmem:[%s969 + $0x24] sm:$0xf]
        %v1394 = vld [vmem:[%s969 + $0x28] sm:$0xf]
        %v1395 = vld [vmem:[%s969 + $0x2c] sm:$0xf]
        %v1396 = vld [vmem:[%s969 + $0x30] sm:$0xf]
        %v1397 = vld [vmem:[%s969 + $0x34] sm:$0xf]
        %v1398 = vld [vmem:[%s969 + $0x38] sm:$0xf]
        %v1399 = vld [vmem:[%s969 + $0x3c] sm:$0xf]
        %v1400 = vld [vmem:[%s969 + $0x40] sm:$0xf]
        %v1401 = vld [vmem:[%s969 + $0x44] sm:$0xf]
        %v1402 = vld [vmem:[%s969 + $0x48] sm:$0xf]
        %v1403 = vld [vmem:[%s969 + $0x4c] sm:$0xf]
        %v1404 = vld [vmem:[%s969 + $0x50] sm:$0xf]
        %v1405 = vld [vmem:[%s969 + $0x54] sm:$0xf]
        %v1406 = vld [vmem:[%s969 + $0x58] sm:$0xf]
        %v1407 = vld [vmem:[%s969 + $0x5c] sm:$0xf]
        %v1408 = vld [vmem:[%s969 + $0x60] sm:$0xf]
        %v1409 = vld [vmem:[%s969 + $0x64] sm:$0xf]
        %v1410 = vld [vmem:[%s969 + $0x68] sm:$0xf]
        %v1411 = vld [vmem:[%s969 + $0x6c] sm:$0xf]
        %v1412 = vld [vmem:[%s969 + $0x70] sm:$0xf]
        %v1413 = vld [vmem:[%s969 + $0x74] sm:$0xf]
        %v1414 = vld [vmem:[%s969 + $0x78] sm:$0xf]
        %v1415 = vld [vmem:[%s969 + $0x7c] sm:$0xf]
        %v1416 = vld [vmem:[%s969 + $0x80] sm:$0xf]
        %v1417 = vld [vmem:[%s969 + $0x84] sm:$0xf]
        %v1418 = vld [vmem:[%s969 + $0x88] sm:$0xf]
        %v1419 = vld [vmem:[%s969 + $0x8c] sm:$0xf]
        %v1420 = vld [vmem:[%s969 + $0x90] sm:$0xf]
        %v1421 = vld [vmem:[%s969 + $0x94] sm:$0xf]
        %v1422 = vld [vmem:[%s969 + $0x98] sm:$0xf]
        %v1423 = vld [vmem:[%s969 + $0x9c] sm:$0xf]
        %v1424 = vld [vmem:[%s969 + $0xa0] sm:$0xf]
        %v1425 = vld [vmem:[%s969 + $0xa4] sm:$0xf]
        %v1426 = vld [vmem:[%s969 + $0xa8] sm:$0xf]
        %v1427 = vld [vmem:[%s969 + $0xac] sm:$0xf]
        %v1428 = vld [vmem:[%s969 + $0xb0] sm:$0xf]
        %v1429 = vld [vmem:[%s969 + $0xb4] sm:$0xf]
        %v1430 = vld [vmem:[%s969 + $0xb8] sm:$0xf]
        %v1431 = vld [vmem:[%s969 + $0xbc] sm:$0xf]
        %v1432 = vld [vmem:[%s969 + $0xc0] sm:$0xf]
        %v1433 = vld [vmem:[%s969 + $0xc4] sm:$0xf]
        %v1434 = vld [vmem:[%s969 + $0xc8] sm:$0xf]
        %v1435 = vld [vmem:[%s969 + $0xcc] sm:$0xf]
        %v1436 = vld [vmem:[%s969 + $0xd0] sm:$0xf]
        %v1437 = vld [vmem:[%s969 + $0xd4] sm:$0xf]
        %v1438 = vld [vmem:[%s969 + $0xd8] sm:$0xf]
        %v1439 = vld [vmem:[%s969 + $0xdc] sm:$0xf]
        %v1440 = vld [vmem:[%s969 + $0xe0] sm:$0xf]
        %v1441 = vld [vmem:[%s969 + $0xe4] sm:$0xf]
        %v1442 = vld [vmem:[%s969 + $0xe8] sm:$0xf]
        %v1443 = vld [vmem:[%s969 + $0xec] sm:$0xf]
        %v1444 = vld [vmem:[%s969 + $0xf0] sm:$0xf]
        %v1445 = vld [vmem:[%s969 + $0xf4] sm:$0xf]
        %v1446 = vld [vmem:[%s969 + $0xf8] sm:$0xf]
        %v1447 = vld [vmem:[%s969 + $0xfc] sm:$0xf]
        %v1448 = vld [vmem:[%s973] sm:$0x1]
        %v1449 = vld [vmem:[%s973 + $0x1] sm:$0x1]
        %v1450 = vld [vmem:[%s973 + $0x2] sm:$0x1]
        %v1451 = vld [vmem:[%s973 + $0x3] sm:$0x1]
        %v1456 = vperm.slane %v1448, 0
        %v1457 = vperm.slane %v1449, 0
        %v1458 = vperm.slane %v1450, 0
        %v1459 = vperm.slane %v1451, 0
        %v1480 = vunpack.c.l.b16 %v1384
        %v1481 = vunpack.c.l.b16 %v1385
        %v1482 = vunpack.c.l.b16 %v1386
        %v1483 = vunpack.c.l.b16 %v1387
        %v1484 = vunpack.c.l.b16 %v1388
        %v1485 = vunpack.c.l.b16 %v1389
        %v1486 = vunpack.c.l.b16 %v1390
        %v1487 = vunpack.c.l.b16 %v1391
        %v1488 = vunpack.c.l.b16 %v1392
        %v1489 = vunpack.c.l.b16 %v1393
        %v1490 = vunpack.c.l.b16 %v1394
        %v1491 = vunpack.c.l.b16 %v1395
        %v1492 = vunpack.c.l.b16 %v1396
        %v1493 = vunpack.c.l.b16 %v1397
        %v1494 = vunpack.c.l.b16 %v1398
        %v1495 = vunpack.c.l.b16 %v1399
        %v1496 = vpack.c.b16 %v1481, %v1480
        %v1497 = vpack.c.b16 %v1483, %v1482
        %v1498 = vpack.c.b16 %v1485, %v1484
        %v1499 = vpack.c.b16 %v1487, %v1486
        %v1500 = vpack.c.b16 %v1489, %v1488
        %v1501 = vpack.c.b16 %v1491, %v1490
        %v1502 = vpack.c.b16 %v1493, %v1492
        %v1503 = vpack.c.b16 %v1495, %v1494
        %1512 = vmatpush.bf16.msra.mxu0 %v1503
        %1513 = vmatpush.bf16.msra.mxu0 %v1502
        %1514 = vmatpush.bf16.msra.mxu0 %v1501
        %1515 = vmatpush.bf16.msra.mxu0 %v1500
        %1516 = vmatpush.bf16.msra.mxu0 %v1499
        %1517 = vmatpush.bf16.msra.mxu0 %v1498
        %1518 = vmatpush.bf16.msra.mxu0 %v1497
        %1519 = vmatpush.bf16.msra.mxu0 %v1496
        %1520 = vmatmul.bf16.gmra.mxu0 %v1059
        %v1521 = vpop.f32.mrf.mxu0
        %v1522 = vadd.f32 %v1456, %v1521
        %v1523 = vpop.f32.mrf.mxu0
        %1524 = vdwg.mxu0
        %v1541 = vunpack.c.l.b16 %v1400
        %v1542 = vunpack.c.l.b16 %v1401
        %v1543 = vunpack.c.l.b16 %v1402
        %v1544 = vunpack.c.l.b16 %v1403
        %v1545 = vunpack.c.l.b16 %v1404
        %v1546 = vunpack.c.l.b16 %v1405
        %v1547 = vunpack.c.l.b16 %v1406
        %v1548 = vunpack.c.l.b16 %v1407
        %v1549 = vunpack.c.l.b16 %v1408
        %v1550 = vunpack.c.l.b16 %v1409
        %v1551 = vunpack.c.l.b16 %v1410
        %v1552 = vunpack.c.l.b16 %v1411
        %v1553 = vunpack.c.l.b16 %v1412
        %v1554 = vunpack.c.l.b16 %v1413
        %v1555 = vunpack.c.l.b16 %v1414
        %v1556 = vunpack.c.l.b16 %v1415
        %v1557 = vpack.c.b16 %v1542, %v1541
        %v1558 = vpack.c.b16 %v1544, %v1543
        %v1559 = vpack.c.b16 %v1546, %v1545
        %v1560 = vpack.c.b16 %v1548, %v1547
        %v1561 = vpack.c.b16 %v1550, %v1549
        %v1562 = vpack.c.b16 %v1552, %v1551
        %v1563 = vpack.c.b16 %v1554, %v1553
        %v1564 = vpack.c.b16 %v1556, %v1555
        %1573 = vmatpush.bf16.msra.mxu0 %v1564
        %1574 = vmatpush.bf16.msra.mxu0 %v1563
        %1575 = vmatpush.bf16.msra.mxu0 %v1562
        %1576 = vmatpush.bf16.msra.mxu0 %v1561
        %1577 = vmatpush.bf16.msra.mxu0 %v1560
        %1578 = vmatpush.bf16.msra.mxu0 %v1559
        %1579 = vmatpush.bf16.msra.mxu0 %v1558
        %1580 = vmatpush.bf16.msra.mxu0 %v1557
        %1581 = vmatmul.bf16.gmra.mxu0 %v1059
        %v1582 = vpop.f32.mrf.mxu0
        %v1583 = vadd.f32 %v1457, %v1582
        %v1584 = vpop.f32.mrf.mxu0
        %1585 = vdwg.mxu0
        %v1602 = vunpack.c.l.b16 %v1416
        %v1603 = vunpack.c.l.b16 %v1417
        %v1604 = vunpack.c.l.b16 %v1418
        %v1605 = vunpack.c.l.b16 %v1419
        %v1606 = vunpack.c.l.b16 %v1420
        %v1607 = vunpack.c.l.b16 %v1421
        %v1608 = vunpack.c.l.b16 %v1422
        %v1609 = vunpack.c.l.b16 %v1423
        %v1610 = vunpack.c.l.b16 %v1424
        %v1611 = vunpack.c.l.b16 %v1425
        %v1612 = vunpack.c.l.b16 %v1426
        %v1613 = vunpack.c.l.b16 %v1427
        %v1614 = vunpack.c.l.b16 %v1428
        %v1615 = vunpack.c.l.b16 %v1429
        %v1616 = vunpack.c.l.b16 %v1430
        %v1617 = vunpack.c.l.b16 %v1431
        %v1618 = vpack.c.b16 %v1603, %v1602
        %v1619 = vpack.c.b16 %v1605, %v1604
        %v1620 = vpack.c.b16 %v1607, %v1606
        %v1621 = vpack.c.b16 %v1609, %v1608
        %v1622 = vpack.c.b16 %v1611, %v1610
        %v1623 = vpack.c.b16 %v1613, %v1612
        %v1624 = vpack.c.b16 %v1615, %v1614
        %v1625 = vpack.c.b16 %v1617, %v1616
        %1634 = vmatpush.bf16.msra.mxu0 %v1625
        %1635 = vmatpush.bf16.msra.mxu0 %v1624
        %1636 = vmatpush.bf16.msra.mxu0 %v1623
        %1637 = vmatpush.bf16.msra.mxu0 %v1622
        %1638 = vmatpush.bf16.msra.mxu0 %v1621
        %1639 = vmatpush.bf16.msra.mxu0 %v1620
        %1640 = vmatpush.bf16.msra.mxu0 %v1619
        %1641 = vmatpush.bf16.msra.mxu0 %v1618
        %1642 = vmatmul.bf16.gmra.mxu0 %v1059
        %v1643 = vpop.f32.mrf.mxu0
        %v1644 = vadd.f32 %v1458, %v1643
        %v1645 = vpop.f32.mrf.mxu0
        %1646 = vdwg.mxu0
        %v1663 = vunpack.c.l.b16 %v1432
        %v1664 = vunpack.c.l.b16 %v1433
        %v1665 = vunpack.c.l.b16 %v1434
        %v1666 = vunpack.c.l.b16 %v1435
        %v1667 = vunpack.c.l.b16 %v1436
        %v1668 = vunpack.c.l.b16 %v1437
        %v1669 = vunpack.c.l.b16 %v1438
        %v1670 = vunpack.c.l.b16 %v1439
        %v1671 = vunpack.c.l.b16 %v1440
        %v1672 = vunpack.c.l.b16 %v1441
        %v1673 = vunpack.c.l.b16 %v1442
        %v1674 = vunpack.c.l.b16 %v1443
        %v1675 = vunpack.c.l.b16 %v1444
        %v1676 = vunpack.c.l.b16 %v1445
        %v1677 = vunpack.c.l.b16 %v1446
        %v1678 = vunpack.c.l.b16 %v1447
        %v1679 = vpack.c.b16 %v1664, %v1663
        %v1680 = vpack.c.b16 %v1666, %v1665
        %v1681 = vpack.c.b16 %v1668, %v1667
        %v1682 = vpack.c.b16 %v1670, %v1669
        %v1683 = vpack.c.b16 %v1672, %v1671
        %v1684 = vpack.c.b16 %v1674, %v1673
        %v1685 = vpack.c.b16 %v1676, %v1675
        %v1686 = vpack.c.b16 %v1678, %v1677
        %1695 = vmatpush.bf16.msra.mxu0 %v1686
        %1696 = vmatpush.bf16.msra.mxu0 %v1685
        %1697 = vmatpush.bf16.msra.mxu0 %v1684
        %1698 = vmatpush.bf16.msra.mxu0 %v1683
        %1699 = vmatpush.bf16.msra.mxu0 %v1682
        %1700 = vmatpush.bf16.msra.mxu0 %v1681
        %1701 = vmatpush.bf16.msra.mxu0 %v1680
        %1702 = vmatpush.bf16.msra.mxu0 %v1679
        %1703 = vmatmul.bf16.gmra.mxu0 %v1059
        %v1704 = vpop.f32.mrf.mxu0
        %v1705 = vadd.f32 %v1459, %v1704
        %v1706 = vpop.f32.mrf.mxu0
        %1707 = vdwg.mxu0
        %v1708 = vld [vmem:[%s978] sm:$0xf]
        %v1709 = vld [vmem:[%s978 + $0x4] sm:$0xf]
        %v1710 = vld [vmem:[%s978 + $0x8] sm:$0xf]
        %v1711 = vld [vmem:[%s978 + $0xc] sm:$0xf]
        %v1712 = vld [vmem:[%s978 + $0x10] sm:$0xf]
        %v1713 = vld [vmem:[%s978 + $0x14] sm:$0xf]
        %v1714 = vld [vmem:[%s978 + $0x18] sm:$0xf]
        %v1715 = vld [vmem:[%s978 + $0x1c] sm:$0xf]
        %v1716 = vld [vmem:[%s978 + $0x20] sm:$0xf]
        %v1717 = vld [vmem:[%s978 + $0x24] sm:$0xf]
        %v1718 = vld [vmem:[%s978 + $0x28] sm:$0xf]
        %v1719 = vld [vmem:[%s978 + $0x2c] sm:$0xf]
        %v1720 = vld [vmem:[%s978 + $0x30] sm:$0xf]
        %v1721 = vld [vmem:[%s978 + $0x34] sm:$0xf]
        %v1722 = vld [vmem:[%s978 + $0x38] sm:$0xf]
        %v1723 = vld [vmem:[%s978 + $0x3c] sm:$0xf]
        %v1724 = vld [vmem:[%s978 + $0x40] sm:$0xf]
        %v1725 = vld [vmem:[%s978 + $0x44] sm:$0xf]
        %v1726 = vld [vmem:[%s978 + $0x48] sm:$0xf]
        %v1727 = vld [vmem:[%s978 + $0x4c] sm:$0xf]
        %v1728 = vld [vmem:[%s978 + $0x50] sm:$0xf]
        %v1729 = vld [vmem:[%s978 + $0x54] sm:$0xf]
        %v1730 = vld [vmem:[%s978 + $0x58] sm:$0xf]
        %v1731 = vld [vmem:[%s978 + $0x5c] sm:$0xf]
        %v1732 = vld [vmem:[%s978 + $0x60] sm:$0xf]
        %v1733 = vld [vmem:[%s978 + $0x64] sm:$0xf]
        %v1734 = vld [vmem:[%s978 + $0x68] sm:$0xf]
        %v1735 = vld [vmem:[%s978 + $0x6c] sm:$0xf]
        %v1736 = vld [vmem:[%s978 + $0x70] sm:$0xf]
        %v1737 = vld [vmem:[%s978 + $0x74] sm:$0xf]
        %v1738 = vld [vmem:[%s978 + $0x78] sm:$0xf]
        %v1739 = vld [vmem:[%s978 + $0x7c] sm:$0xf]
        %v1740 = vld [vmem:[%s978 + $0x80] sm:$0xf]
        %v1741 = vld [vmem:[%s978 + $0x84] sm:$0xf]
        %v1742 = vld [vmem:[%s978 + $0x88] sm:$0xf]
        %v1743 = vld [vmem:[%s978 + $0x8c] sm:$0xf]
        %v1744 = vld [vmem:[%s978 + $0x90] sm:$0xf]
        %v1745 = vld [vmem:[%s978 + $0x94] sm:$0xf]
        %v1746 = vld [vmem:[%s978 + $0x98] sm:$0xf]
        %v1747 = vld [vmem:[%s978 + $0x9c] sm:$0xf]
        %v1748 = vld [vmem:[%s978 + $0xa0] sm:$0xf]
        %v1749 = vld [vmem:[%s978 + $0xa4] sm:$0xf]
        %v1750 = vld [vmem:[%s978 + $0xa8] sm:$0xf]
        %v1751 = vld [vmem:[%s978 + $0xac] sm:$0xf]
        %v1752 = vld [vmem:[%s978 + $0xb0] sm:$0xf]
        %v1753 = vld [vmem:[%s978 + $0xb4] sm:$0xf]
        %v1754 = vld [vmem:[%s978 + $0xb8] sm:$0xf]
        %v1755 = vld [vmem:[%s978 + $0xbc] sm:$0xf]
        %v1756 = vld [vmem:[%s978 + $0xc0] sm:$0xf]
        %v1757 = vld [vmem:[%s978 + $0xc4] sm:$0xf]
        %v1758 = vld [vmem:[%s978 + $0xc8] sm:$0xf]
        %v1759 = vld [vmem:[%s978 + $0xcc] sm:$0xf]
        %v1760 = vld [vmem:[%s978 + $0xd0] sm:$0xf]
        %v1761 = vld [vmem:[%s978 + $0xd4] sm:$0xf]
        %v1762 = vld [vmem:[%s978 + $0xd8] sm:$0xf]
        %v1763 = vld [vmem:[%s978 + $0xdc] sm:$0xf]
        %v1764 = vld [vmem:[%s978 + $0xe0] sm:$0xf]
        %v1765 = vld [vmem:[%s978 + $0xe4] sm:$0xf]
        %v1766 = vld [vmem:[%s978 + $0xe8] sm:$0xf]
        %v1767 = vld [vmem:[%s978 + $0xec] sm:$0xf]
        %v1768 = vld [vmem:[%s978 + $0xf0] sm:$0xf]
        %v1769 = vld [vmem:[%s978 + $0xf4] sm:$0xf]
        %v1770 = vld [vmem:[%s978 + $0xf8] sm:$0xf]
        %v1771 = vld [vmem:[%s978 + $0xfc] sm:$0xf]
        %v1772 = vld [vmem:[%s982] sm:$0x1]
        %v1773 = vld [vmem:[%s982 + $0x1] sm:$0x1]
        %v1774 = vld [vmem:[%s982 + $0x2] sm:$0x1]
        %v1775 = vld [vmem:[%s982 + $0x3] sm:$0x1]
        %v1780 = vperm.slane %v1772, 0
        %v1781 = vperm.slane %v1773, 0
        %v1782 = vperm.slane %v1774, 0
        %v1783 = vperm.slane %v1775, 0
        %v1804 = vunpack.c.l.b16 %v1708
        %v1805 = vunpack.c.l.b16 %v1709
        %v1806 = vunpack.c.l.b16 %v1710
        %v1807 = vunpack.c.l.b16 %v1711
        %v1808 = vunpack.c.l.b16 %v1712
        %v1809 = vunpack.c.l.b16 %v1713
        %v1810 = vunpack.c.l.b16 %v1714
        %v1811 = vunpack.c.l.b16 %v1715
        %v1812 = vunpack.c.l.b16 %v1716
        %v1813 = vunpack.c.l.b16 %v1717
        %v1814 = vunpack.c.l.b16 %v1718
        %v1815 = vunpack.c.l.b16 %v1719
        %v1816 = vunpack.c.l.b16 %v1720
        %v1817 = vunpack.c.l.b16 %v1721
        %v1818 = vunpack.c.l.b16 %v1722
        %v1819 = vunpack.c.l.b16 %v1723
        %v1820 = vpack.c.b16 %v1805, %v1804
        %v1821 = vpack.c.b16 %v1807, %v1806
        %v1822 = vpack.c.b16 %v1809, %v1808
        %v1823 = vpack.c.b16 %v1811, %v1810
        %v1824 = vpack.c.b16 %v1813, %v1812
        %v1825 = vpack.c.b16 %v1815, %v1814
        %v1826 = vpack.c.b16 %v1817, %v1816
        %v1827 = vpack.c.b16 %v1819, %v1818
        %1836 = vmatpush.bf16.msra.mxu0 %v1827
        %1837 = vmatpush.bf16.msra.mxu0 %v1826
        %1838 = vmatpush.bf16.msra.mxu0 %v1825
        %1839 = vmatpush.bf16.msra.mxu0 %v1824
        %1840 = vmatpush.bf16.msra.mxu0 %v1823
        %1841 = vmatpush.bf16.msra.mxu0 %v1822
        %1842 = vmatpush.bf16.msra.mxu0 %v1821
        %1843 = vmatpush.bf16.msra.mxu0 %v1820
        %1844 = vmatmul.bf16.gmra.mxu0 %v1059
        %v1845 = vpop.f32.mrf.mxu0
        %v1846 = vadd.f32 %v1780, %v1845
        %v1847 = vpop.f32.mrf.mxu0
        %1848 = vdwg.mxu0
        %v1865 = vunpack.c.l.b16 %v1724
        %v1866 = vunpack.c.l.b16 %v1725
        %v1867 = vunpack.c.l.b16 %v1726
        %v1868 = vunpack.c.l.b16 %v1727
        %v1869 = vunpack.c.l.b16 %v1728
        %v1870 = vunpack.c.l.b16 %v1729
        %v1871 = vunpack.c.l.b16 %v1730
        %v1872 = vunpack.c.l.b16 %v1731
        %v1873 = vunpack.c.l.b16 %v1732
        %v1874 = vunpack.c.l.b16 %v1733
        %v1875 = vunpack.c.l.b16 %v1734
        %v1876 = vunpack.c.l.b16 %v1735
        %v1877 = vunpack.c.l.b16 %v1736
        %v1878 = vunpack.c.l.b16 %v1737
        %v1879 = vunpack.c.l.b16 %v1738
        %v1880 = vunpack.c.l.b16 %v1739
        %v1881 = vpack.c.b16 %v1866, %v1865
        %v1882 = vpack.c.b16 %v1868, %v1867
        %v1883 = vpack.c.b16 %v1870, %v1869
        %v1884 = vpack.c.b16 %v1872, %v1871
        %v1885 = vpack.c.b16 %v1874, %v1873
        %v1886 = vpack.c.b16 %v1876, %v1875
        %v1887 = vpack.c.b16 %v1878, %v1877
        %v1888 = vpack.c.b16 %v1880, %v1879
        %1897 = vmatpush.bf16.msra.mxu0 %v1888
        %1898 = vmatpush.bf16.msra.mxu0 %v1887
        %1899 = vmatpush.bf16.msra.mxu0 %v1886
        %1900 = vmatpush.bf16.msra.mxu0 %v1885
        %1901 = vmatpush.bf16.msra.mxu0 %v1884
        %1902 = vmatpush.bf16.msra.mxu0 %v1883
        %1903 = vmatpush.bf16.msra.mxu0 %v1882
        %1904 = vmatpush.bf16.msra.mxu0 %v1881
        %1905 = vmatmul.bf16.gmra.mxu0 %v1059
        %v1906 = vpop.f32.mrf.mxu0
        %v1907 = vadd.f32 %v1781, %v1906
        %v1908 = vpop.f32.mrf.mxu0
        %1909 = vdwg.mxu0
        %v1926 = vunpack.c.l.b16 %v1740
        %v1927 = vunpack.c.l.b16 %v1741
        %v1928 = vunpack.c.l.b16 %v1742
        %v1929 = vunpack.c.l.b16 %v1743
        %v1930 = vunpack.c.l.b16 %v1744
        %v1931 = vunpack.c.l.b16 %v1745
        %v1932 = vunpack.c.l.b16 %v1746
        %v1933 = vunpack.c.l.b16 %v1747
        %v1934 = vunpack.c.l.b16 %v1748
        %v1935 = vunpack.c.l.b16 %v1749
        %v1936 = vunpack.c.l.b16 %v1750
        %v1937 = vunpack.c.l.b16 %v1751
        %v1938 = vunpack.c.l.b16 %v1752
        %v1939 = vunpack.c.l.b16 %v1753
        %v1940 = vunpack.c.l.b16 %v1754
        %v1941 = vunpack.c.l.b16 %v1755
        %v1942 = vpack.c.b16 %v1927, %v1926
        %v1943 = vpack.c.b16 %v1929, %v1928
        %v1944 = vpack.c.b16 %v1931, %v1930
        %v1945 = vpack.c.b16 %v1933, %v1932
        %v1946 = vpack.c.b16 %v1935, %v1934
        %v1947 = vpack.c.b16 %v1937, %v1936
        %v1948 = vpack.c.b16 %v1939, %v1938
        %v1949 = vpack.c.b16 %v1941, %v1940
        %1958 = vmatpush.bf16.msra.mxu0 %v1949
        %1959 = vmatpush.bf16.msra.mxu0 %v1948
        %1960 = vmatpush.bf16.msra.mxu0 %v1947
        %1961 = vmatpush.bf16.msra.mxu0 %v1946
        %1962 = vmatpush.bf16.msra.mxu0 %v1945
        %1963 = vmatpush.bf16.msra.mxu0 %v1944
        %1964 = vmatpush.bf16.msra.mxu0 %v1943
        %1965 = vmatpush.bf16.msra.mxu0 %v1942
        %1966 = vmatmul.bf16.gmra.mxu0 %v1059
        %v1967 = vpop.f32.mrf.mxu0
        %v1968 = vadd.f32 %v1782, %v1967
        %v1969 = vpop.f32.mrf.mxu0
        %1970 = vdwg.mxu0
        %v1987 = vunpack.c.l.b16 %v1756
        %v1988 = vunpack.c.l.b16 %v1757
        %v1989 = vunpack.c.l.b16 %v1758
        %v1990 = vunpack.c.l.b16 %v1759
        %v1991 = vunpack.c.l.b16 %v1760
        %v1992 = vunpack.c.l.b16 %v1761
        %v1993 = vunpack.c.l.b16 %v1762
        %v1994 = vunpack.c.l.b16 %v1763
        %v1995 = vunpack.c.l.b16 %v1764
        %v1996 = vunpack.c.l.b16 %v1765
        %v1997 = vunpack.c.l.b16 %v1766
        %v1998 = vunpack.c.l.b16 %v1767
        %v1999 = vunpack.c.l.b16 %v1768
        %v2000 = vunpack.c.l.b16 %v1769
        %v2001 = vunpack.c.l.b16 %v1770
        %v2002 = vunpack.c.l.b16 %v1771
        %v2003 = vpack.c.b16 %v1988, %v1987
        %v2004 = vpack.c.b16 %v1990, %v1989
        %v2005 = vpack.c.b16 %v1992, %v1991
        %v2006 = vpack.c.b16 %v1994, %v1993
        %v2007 = vpack.c.b16 %v1996, %v1995
        %v2008 = vpack.c.b16 %v1998, %v1997
        %v2009 = vpack.c.b16 %v2000, %v1999
        %v2010 = vpack.c.b16 %v2002, %v2001
        %2019 = vmatpush.bf16.msra.mxu0 %v2010
        %2020 = vmatpush.bf16.msra.mxu0 %v2009
        %2021 = vmatpush.bf16.msra.mxu0 %v2008
        %2022 = vmatpush.bf16.msra.mxu0 %v2007
        %2023 = vmatpush.bf16.msra.mxu0 %v2006
        %2024 = vmatpush.bf16.msra.mxu0 %v2005
        %2025 = vmatpush.bf16.msra.mxu0 %v2004
        %2026 = vmatpush.bf16.msra.mxu0 %v2003
        %2027 = vmatmul.bf16.gmra.mxu0 %v1059
        %v2028 = vpop.f32.mrf.mxu0
        %v2029 = vadd.f32 %v1783, %v2028
        %v2030 = vpop.f32.mrf.mxu0
        %2031 = vdwg.mxu0
        %v2032 = vpack.c.bf16 %v1198, %v1198
        %v2033 = vpack.c.bf16 %v1259, %v1259
        %v2034 = vpack.c.bf16 %v1320, %v1320
        %v2035 = vpack.c.bf16 %v1381, %v1381
        %v2036 = vpack.c.bf16 %v1522, %v1522
        %v2037 = vpack.c.bf16 %v1583, %v1583
        %v2038 = vpack.c.bf16 %v1644, %v1644
        %v2039 = vpack.c.bf16 %v1705, %v1705
        %vm2040 = vcmask 261120
        %v2042 = vsel %vm2040, %v2032, 0
        %v2045 = vsel %vm2040, %v2036, 0
        %2047 = vmatpush.bf16.xpose.msra.mxu0 0
        %2048 = vmatpush.bf16.xpose.msra.mxu0 0
        %2049 = vmatpush.bf16.xpose.msra.mxu0 0
        %2050 = vmatpush.bf16.xpose.msra.mxu0 0
        %2051 = vmatpush.bf16.xpose.msra.mxu0 0
        %2052 = vmatpush.bf16.xpose.msra.mxu0 0
        %2053 = vmatpush.bf16.xpose.msra.mxu0 0
        %2054 = vmatpush.bf16.xpose.msra.mxu0 %v2045
        %2055 = vmatmul.bf16.gmra.mxu0 %v2042
        %v2056 = vpop.f32.mrf.mxu0
        %v2057 = vadd.f32 0.0, %v2056
        %v2058 = vpop.f32.mrf.mxu0
        %2059 = vdwg.mxu0
        %v2061 = vsel %vm2040, %v2033, 0
        %v2064 = vsel %vm2040, %v2037, 0
        %2066 = vmatpush.bf16.xpose.msra.mxu0 0
        %2067 = vmatpush.bf16.xpose.msra.mxu0 0
        %2068 = vmatpush.bf16.xpose.msra.mxu0 0
        %2069 = vmatpush.bf16.xpose.msra.mxu0 0
        %2070 = vmatpush.bf16.xpose.msra.mxu0 0
        %2071 = vmatpush.bf16.xpose.msra.mxu0 0
        %2072 = vmatpush.bf16.xpose.msra.mxu0 0
        %2073 = vmatpush.bf16.xpose.msra.mxu0 %v2064
        %2074 = vmatmul.bf16.gmra.mxu0 %v2061
        %v2075 = vpop.f32.mrf.mxu0
        %v2076 = vadd.f32 0.0, %v2075
        %v2077 = vpop.f32.mrf.mxu0
        %2078 = vdwg.mxu0
        %v2080 = vsel %vm2040, %v2034, 0
        %v2083 = vsel %vm2040, %v2038, 0
        %2085 = vmatpush.bf16.xpose.msra.mxu0 0
        %2086 = vmatpush.bf16.xpose.msra.mxu0 0
        %2087 = vmatpush.bf16.xpose.msra.mxu0 0
        %2088 = vmatpush.bf16.xpose.msra.mxu0 0
        %2089 = vmatpush.bf16.xpose.msra.mxu0 0
        %2090 = vmatpush.bf16.xpose.msra.mxu0 0
        %2091 = vmatpush.bf16.xpose.msra.mxu0 0
        %2092 = vmatpush.bf16.xpose.msra.mxu0 %v2083
        %2093 = vmatmul.bf16.gmra.mxu0 %v2080
        %v2094 = vpop.f32.mrf.mxu0
        %v2095 = vadd.f32 0.0, %v2094
        %v2096 = vpop.f32.mrf.mxu0
        %2097 = vdwg.mxu0
        %v2099 = vsel %vm2040, %v2035, 0
        %v2102 = vsel %vm2040, %v2039, 0
        %2104 = vmatpush.bf16.xpose.msra.mxu0 0
        %2105 = vmatpush.bf16.xpose.msra.mxu0 0
        %2106 = vmatpush.bf16.xpose.msra.mxu0 0
        %2107 = vmatpush.bf16.xpose.msra.mxu0 0
        %2108 = vmatpush.bf16.xpose.msra.mxu0 0
        %2109 = vmatpush.bf16.xpose.msra.mxu0 0
        %2110 = vmatpush.bf16.xpose.msra.mxu0 0
        %2111 = vmatpush.bf16.xpose.msra.mxu0 %v2102
        %2112 = vmatmul.bf16.gmra.mxu0 %v2099
        %v2113 = vpop.f32.mrf.mxu0
        %v2114 = vadd.f32 0.0, %v2113
        %v2115 = vpop.f32.mrf.mxu0
        %2116 = vdwg.mxu0
        %v2117 = vmul.f32 %v2057, 0.17677669
        %v2118 = vmul.f32 %v2076, 0.17677669
        %v2119 = vmul.f32 %v2095, 0.17677669
        %v2120 = vmul.f32 %v2114, 0.17677669
        %v2121 = vld [vmem:[%s949] sm:$0x1]
        %v2123 = vperm.slane %v2121, 0
        %v2125 = vadd.f32 %v2117, %v2123
        %v2126 = vadd.f32 %v2118, %v2123
        %v2127 = vadd.f32 %v2119, %v2123
        %v2128 = vadd.f32 %v2120, %v2123
        %vm2129 = vcmask 64512
        %v2130 = vsel %vm2129, %v2125, -inf
        %2131 = vmax.xlane.f32.xlu0 %v2130
        %v2132 = vpop.xlane.xlu0 %2131
        %v2133 = vsel %vm2129, %v2126, -inf
        %2134 = vmax.xlane.f32.xlu0 %v2133
        %v2135 = vpop.xlane.xlu0 %2134
        %v2136 = vsel %vm2129, %v2127, -inf
        %2137 = vmax.xlane.f32.xlu0 %v2136
        %v2138 = vpop.xlane.xlu0 %2137
        %v2139 = vsel %vm2129, %v2128, -inf
        %2140 = vmax.xlane.f32.xlu0 %v2139
        %v2141 = vpop.xlane.xlu0 %2140
        %v2142 = vsub.f32 %v2125, %v2132
        %v2143 = vsub.f32 %v2126, %v2135
        %v2144 = vsub.f32 %v2127, %v2138
        %v2145 = vsub.f32 %v2128, %v2141
        %v2146 = vmul.f32 %v2142, 1.442695
        %v2147 = vpow.pop %v2146
        %v2148 = vmul.f32 %v2143, 1.442695
        %v2149 = vpow.pop %v2148
        %v2150 = vmul.f32 %v2144, 1.442695
        %v2151 = vpow.pop %v2150
        %v2152 = vmul.f32 %v2145, 1.442695
        %v2153 = vpow.pop %v2152
        %v2154 = vsel %vm2129, %v2147, 0.0
        %2155 = vadd.xlane.f32.xlu0 %v2154
        %v2156 = vpop.xlane.xlu0 %2155
        %v2157 = vsel %vm2129, %v2149, 0.0
        %2158 = vadd.xlane.f32.xlu0 %v2157
        %v2159 = vpop.xlane.xlu0 %2158
        %v2160 = vsel %vm2129, %v2151, 0.0
        %2161 = vadd.xlane.f32.xlu0 %v2160
        %v2162 = vpop.xlane.xlu0 %2161
        %v2163 = vsel %vm2129, %v2153, 0.0
        %2164 = vadd.xlane.f32.xlu0 %v2163
        %v2165 = vpop.xlane.xlu0 %2164
        %v2166 = vrcp.pop %v2156
        %v2167 = vrcp.pop %v2159
        %v2168 = vrcp.pop %v2162
        %v2169 = vrcp.pop %v2165
        %v2170 = vmul.f32 %v2147, %v2166
        %v2171 = vmul.f32 %v2149, %v2167
        %v2172 = vmul.f32 %v2151, %v2168
        %v2173 = vmul.f32 %v2153, %v2169
        %v2174 = vpack.c.bf16 %v2170, %v2170
        %v2175 = vpack.c.bf16 %v2171, %v2171
        %v2176 = vpack.c.bf16 %v2172, %v2172
        %v2177 = vpack.c.bf16 %v2173, %v2173
        %v2178 = vpack.c.bf16 %v1846, %v1846
        %v2179 = vpack.c.bf16 %v1907, %v1907
        %v2180 = vpack.c.bf16 %v1968, %v1968
        %v2181 = vpack.c.bf16 %v2029, %v2029
        %v2183 = vsel %vm2129, %v2174, 0
        %vm2185 = vcmask 1043456
        %v2187 = vsel %vm2185, %v2178, 0
        %2189 = vmatpush.bf16.msra.mxu0 0
        %2190 = vmatpush.bf16.msra.mxu0 0
        %2191 = vmatpush.bf16.msra.mxu0 0
        %2192 = vmatpush.bf16.msra.mxu0 0
        %2193 = vmatpush.bf16.msra.mxu0 0
        %2194 = vmatpush.bf16.msra.mxu0 0
        %2195 = vmatpush.bf16.msra.mxu0 0
        %2196 = vmatpush.bf16.msra.mxu0 %v2187
        %2197 = vmatmul.bf16.gmra.mxu0 %v2183
        %v2198 = vpop.f32.mrf.mxu0
        %v2199 = vadd.f32 0.0, %v2198
        %v2200 = vpop.f32.mrf.mxu0
        %2201 = vdwg.mxu0
        %v2203 = vsel %vm2129, %v2175, 0
        %v2206 = vsel %vm2185, %v2179, 0
        %2208 = vmatpush.bf16.msra.mxu0 0
        %2209 = vmatpush.bf16.msra.mxu0 0
        %2210 = vmatpush.bf16.msra.mxu0 0
        %2211 = vmatpush.bf16.msra.mxu0 0
        %2212 = vmatpush.bf16.msra.mxu0 0
        %2213 = vmatpush.bf16.msra.mxu0 0
        %2214 = vmatpush.bf16.msra.mxu0 0
        %2215 = vmatpush.bf16.msra.mxu0 %v2206
        %2216 = vmatmul.bf16.gmra.mxu0 %v2203
        %v2217 = vpop.f32.mrf.mxu0
        %v2218 = vadd.f32 0.0, %v2217
        %v2219 = vpop.f32.mrf.mxu0
        %2220 = vdwg.mxu0
        %v2222 = vsel %vm2129, %v2176, 0
        %v2225 = vsel %vm2185, %v2180, 0
        %2227 = vmatpush.bf16.msra.mxu0 0
        %2228 = vmatpush.bf16.msra.mxu0 0
        %2229 = vmatpush.bf16.msra.mxu0 0
        %2230 = vmatpush.bf16.msra.mxu0 0
        %2231 = vmatpush.bf16.msra.mxu0 0
        %2232 = vmatpush.bf16.msra.mxu0 0
        %2233 = vmatpush.bf16.msra.mxu0 0
        %2234 = vmatpush.bf16.msra.mxu0 %v2225
        %2235 = vmatmul.bf16.gmra.mxu0 %v2222
        %v2236 = vpop.f32.mrf.mxu0
        %v2237 = vadd.f32 0.0, %v2236
        %v2238 = vpop.f32.mrf.mxu0
        %2239 = vdwg.mxu0
        %v2241 = vsel %vm2129, %v2177, 0
        %v2244 = vsel %vm2185, %v2181, 0
        %2246 = vmatpush.bf16.msra.mxu0 0
        %2247 = vmatpush.bf16.msra.mxu0 0
        %2248 = vmatpush.bf16.msra.mxu0 0
        %2249 = vmatpush.bf16.msra.mxu0 0
        %2250 = vmatpush.bf16.msra.mxu0 0
        %2251 = vmatpush.bf16.msra.mxu0 0
        %2252 = vmatpush.bf16.msra.mxu0 0
        %2253 = vmatpush.bf16.msra.mxu0 %v2244
        %2254 = vmatmul.bf16.gmra.mxu0 %v2241
        %v2255 = vpop.f32.mrf.mxu0
        %v2256 = vadd.f32 0.0, %v2255
        %v2257 = vpop.f32.mrf.mxu0
        %2258 = vdwg.mxu0
        %v2259 = vpack.c.bf16 %v2199, %v2199
        %v2260 = vpack.c.bf16 %v2218, %v2218
        %v2261 = vpack.c.bf16 %v2237, %v2237
        %v2262 = vpack.c.bf16 %v2256, %v2256
        %v2263 = vld [vmem:[%s987] sm:$0xf]
        %v2264 = vld [vmem:[%s987 + $0x4] sm:$0xf]
        %v2265 = vld [vmem:[%s987 + $0x8] sm:$0xf]
        %v2266 = vld [vmem:[%s987 + $0xc] sm:$0xf]
        %v2267 = vld [vmem:[%s987 + $0x10] sm:$0xf]
        %v2268 = vld [vmem:[%s987 + $0x14] sm:$0xf]
        %v2269 = vld [vmem:[%s987 + $0x18] sm:$0xf]
        %v2270 = vld [vmem:[%s987 + $0x1c] sm:$0xf]
        %v2271 = vld [vmem:[%s987 + $0x20] sm:$0xf]
        %v2272 = vld [vmem:[%s987 + $0x24] sm:$0xf]
        %v2273 = vld [vmem:[%s987 + $0x28] sm:$0xf]
        %v2274 = vld [vmem:[%s987 + $0x2c] sm:$0xf]
        %v2275 = vld [vmem:[%s987 + $0x30] sm:$0xf]
        %v2276 = vld [vmem:[%s987 + $0x34] sm:$0xf]
        %v2277 = vld [vmem:[%s987 + $0x38] sm:$0xf]
        %v2278 = vld [vmem:[%s987 + $0x3c] sm:$0xf]
        %v2283 = vunpack.c.l.b16 %v2263
        %v2284 = vunpack.c.l.b16 %v2264
        %v2285 = vunpack.c.l.b16 %v2265
        %v2286 = vunpack.c.l.b16 %v2266
        %v2287 = vpack.c.b16 %v2284, %v2283
        %v2288 = vpack.c.b16 %v2286, %v2285
        %v2292 = vsel %vm2040, %v2259, 0
        %2294 = vmatpush.bf16.msra.mxu0 0
        %2295 = vmatpush.bf16.msra.mxu0 0
        %2296 = vmatpush.bf16.msra.mxu0 0
        %2297 = vmatpush.bf16.msra.mxu0 0
        %2298 = vmatpush.bf16.msra.mxu0 0
        %2299 = vmatpush.bf16.msra.mxu0 0
        %2300 = vmatpush.bf16.msra.mxu0 %v2288
        %2301 = vmatpush.bf16.msra.mxu0 %v2287
        %2302 = vmatmul.bf16.gmra.mxu0 %v2292
        %v2303 = vpop.f32.mrf.mxu0
        %v2304 = vadd.f32 0.0, %v2303
        %v2305 = vpop.f32.mrf.mxu0
        %2306 = vdwg.mxu0
        %v2311 = vunpack.c.l.b16 %v2267
        %v2312 = vunpack.c.l.b16 %v2268
        %v2313 = vunpack.c.l.b16 %v2269
        %v2314 = vunpack.c.l.b16 %v2270
        %v2315 = vpack.c.b16 %v2312, %v2311
        %v2316 = vpack.c.b16 %v2314, %v2313
        %v2320 = vsel %vm2040, %v2260, 0
        %2322 = vmatpush.bf16.msra.mxu0 0
        %2323 = vmatpush.bf16.msra.mxu0 0
        %2324 = vmatpush.bf16.msra.mxu0 0
        %2325 = vmatpush.bf16.msra.mxu0 0
        %2326 = vmatpush.bf16.msra.mxu0 0
        %2327 = vmatpush.bf16.msra.mxu0 0
        %2328 = vmatpush.bf16.msra.mxu0 %v2316
        %2329 = vmatpush.bf16.msra.mxu0 %v2315
        %2330 = vmatmul.bf16.gmra.mxu0 %v2320
        %v2331 = vpop.f32.mrf.mxu0
        %v2332 = vadd.f32 0.0, %v2331
        %v2333 = vpop.f32.mrf.mxu0
        %2334 = vdwg.mxu0
        %v2339 = vunpack.c.l.b16 %v2271
        %v2340 = vunpack.c.l.b16 %v2272
        %v2341 = vunpack.c.l.b16 %v2273
        %v2342 = vunpack.c.l.b16 %v2274
        %v2343 = vpack.c.b16 %v2340, %v2339
        %v2344 = vpack.c.b16 %v2342, %v2341
        %v2348 = vsel %vm2040, %v2261, 0
        %2350 = vmatpush.bf16.msra.mxu0 0
        %2351 = vmatpush.bf16.msra.mxu0 0
        %2352 = vmatpush.bf16.msra.mxu0 0
        %2353 = vmatpush.bf16.msra.mxu0 0
        %2354 = vmatpush.bf16.msra.mxu0 0
        %2355 = vmatpush.bf16.msra.mxu0 0
        %2356 = vmatpush.bf16.msra.mxu0 %v2344
        %2357 = vmatpush.bf16.msra.mxu0 %v2343
        %2358 = vmatmul.bf16.gmra.mxu0 %v2348
        %v2359 = vpop.f32.mrf.mxu0
        %v2360 = vadd.f32 0.0, %v2359
        %v2361 = vpop.f32.mrf.mxu0
        %2362 = vdwg.mxu0
        %v2367 = vunpack.c.l.b16 %v2275
        %v2368 = vunpack.c.l.b16 %v2276
        %v2369 = vunpack.c.l.b16 %v2277
        %v2370 = vunpack.c.l.b16 %v2278
        %v2371 = vpack.c.b16 %v2368, %v2367
        %v2372 = vpack.c.b16 %v2370, %v2369
        %v2376 = vsel %vm2040, %v2262, 0
        %2378 = vmatpush.bf16.msra.mxu0 0
        %2379 = vmatpush.bf16.msra.mxu0 0
        %2380 = vmatpush.bf16.msra.mxu0 0
        %2381 = vmatpush.bf16.msra.mxu0 0
        %2382 = vmatpush.bf16.msra.mxu0 0
        %2383 = vmatpush.bf16.msra.mxu0 0
        %2384 = vmatpush.bf16.msra.mxu0 %v2372
        %2385 = vmatpush.bf16.msra.mxu0 %v2371
        %2386 = vmatmul.bf16.gmra.mxu0 %v2376
        %v2387 = vpop.f32.mrf.mxu0
        %v2388 = vadd.f32 0.0, %v2387
        %v2389 = vpop.f32.mrf.mxu0
        %2390 = vdwg.mxu0
        %v2391 = vadd.f32 %v2304, %v2332
        %v2392 = vadd.f32 %v2391, %v2360
        %v2393 = vadd.f32 %v2392, %v2388
        %v2394 = vld [vmem:[%s990] sm:$0x1]
        %v2396 = vperm.slane %v2394, 0
        %v2398 = vadd.f32 %v2393, %v2396
        %v2399 = vadd.f32 %v2398, %v1021
        %v2400 = vld [vmem:[%s993] sm:$0x1]
        %v2401 = vld [vmem:[%s996] sm:$0x1]
        %2402 = vadd.xlane.f32.xlu0 %v2399
        %v2403 = vpop.xlane.xlu0 %2402
        %v2404 = vmul.f32 %v2403, %v1032
        %v2405 = vsub.f32 %v2399, %v2404
        %v2406 = vmul.f32 %v2405, %v2405
        %2407 = vadd.xlane.f32.xlu0 %v2406
        %v2408 = vpop.xlane.xlu0 %2407
        %v2409 = vmul.f32 %v2408, %v1032
        %v2410 = vadd.f32 %v2409, 1e-05
        %v2411 = vrsqrt.pop %v2410
        %v2412 = vmul.f32 %v2411, %v2410
        %v2413 = vmul.f32 %v2412, %v2411
        %v2414 = vmul.f32 0.5, %v2413
        %v2415 = vsub.f32 1.5, %v2414
        %v2416 = vmul.f32 %v2411, %v2415
        %vm2417 = vweird.f32 %v2410
        %vm2418 = vweird.f32 %v2411
        %vm2419 = vmor %vm2417, %vm2418
        %v2420 = vsel %vm2419, %v2411, %v2416
        %v2421 = vmul.f32 %v2405, %v2420
        %v2423 = vperm.slane %v2400, 0
        %v2425 = vmul.f32 %v2421, %v2423
        %v2427 = vperm.slane %v2401, 0
        %v2429 = vadd.f32 %v2425, %v2427
        %v2430 = vpack.c.bf16 %v2429, %v2429
        %v2431 = vld [vmem:[%s1001] sm:$0xff]
        %v2432 = vld [vmem:[%s1001 + $0x8] sm:$0xff]
        %v2433 = vld [vmem:[%s1001 + $0x10] sm:$0xff]
        %v2434 = vld [vmem:[%s1001 + $0x18] sm:$0xff]
        %v2435 = vld [vmem:[%s1001 + $0x20] sm:$0xff]
        %v2436 = vld [vmem:[%s1001 + $0x28] sm:$0xff]
        %v2437 = vld [vmem:[%s1001 + $0x30] sm:$0xff]
        %v2438 = vld [vmem:[%s1001 + $0x38] sm:$0xff]
        %v2439 = vld [vmem:[%s1001 + $0x40] sm:$0xff]
        %v2440 = vld [vmem:[%s1001 + $0x48] sm:$0xff]
        %v2441 = vld [vmem:[%s1001 + $0x50] sm:$0xff]
        %v2442 = vld [vmem:[%s1001 + $0x58] sm:$0xff]
        %v2443 = vld [vmem:[%s1001 + $0x60] sm:$0xff]
        %v2444 = vld [vmem:[%s1001 + $0x68] sm:$0xff]
        %v2445 = vld [vmem:[%s1001 + $0x70] sm:$0xff]
        %v2446 = vld [vmem:[%s1001 + $0x78] sm:$0xff]
        %v2447 = vld [vmem:[%s1005] sm:$0x3]
        %v2449 = vperm.slane %v2447, 0
        %v2450 = vperm.slane %v2447, 1
        %v2469 = vunpack.c.l.b16 %v2431
        %v2470 = vunpack.c.h.b16 %v2431
        %v2471 = vunpack.c.l.b16 %v2432
        %v2472 = vunpack.c.h.b16 %v2432
        %v2473 = vunpack.c.l.b16 %v2433
        %v2474 = vunpack.c.h.b16 %v2433
        %v2475 = vunpack.c.l.b16 %v2434
        %v2476 = vunpack.c.h.b16 %v2434
        %v2477 = vunpack.c.l.b16 %v2435
        %v2478 = vunpack.c.h.b16 %v2435
        %v2479 = vunpack.c.l.b16 %v2436
        %v2480 = vunpack.c.h.b16 %v2436
        %v2481 = vunpack.c.l.b16 %v2437
        %v2482 = vunpack.c.h.b16 %v2437
        %v2483 = vunpack.c.l.b16 %v2438
        %v2484 = vunpack.c.h.b16 %v2438
        %v2485 = vunpack.c.l.b16 %v2439
        %v2486 = vunpack.c.h.b16 %v2439
        %v2487 = vunpack.c.l.b16 %v2440
        %v2488 = vunpack.c.h.b16 %v2440
        %v2489 = vunpack.c.l.b16 %v2441
        %v2490 = vunpack.c.h.b16 %v2441
        %v2491 = vunpack.c.l.b16 %v2442
        %v2492 = vunpack.c.h.b16 %v2442
        %v2493 = vunpack.c.l.b16 %v2443
        %v2494 = vunpack.c.h.b16 %v2443
        %v2495 = vunpack.c.l.b16 %v2444
        %v2496 = vunpack.c.h.b16 %v2444
        %v2497 = vunpack.c.l.b16 %v2445
        %v2498 = vunpack.c.h.b16 %v2445
        %v2499 = vunpack.c.l.b16 %v2446
        %v2500 = vunpack.c.h.b16 %v2446
        %v2501 = vpack.c.b16 %v2471, %v2469
        %v2502 = vpack.c.b16 %v2472, %v2470
        %v2503 = vpack.c.b16 %v2475, %v2473
        %v2504 = vpack.c.b16 %v2476, %v2474
        %v2505 = vpack.c.b16 %v2479, %v2477
        %v2506 = vpack.c.b16 %v2480, %v2478
        %v2507 = vpack.c.b16 %v2483, %v2481
        %v2508 = vpack.c.b16 %v2484, %v2482
        %v2509 = vpack.c.b16 %v2487, %v2485
        %v2510 = vpack.c.b16 %v2488, %v2486
        %v2511 = vpack.c.b16 %v2491, %v2489
        %v2512 = vpack.c.b16 %v2492, %v2490
        %v2513 = vpack.c.b16 %v2495, %v2493
        %v2514 = vpack.c.b16 %v2496, %v2494
        %v2515 = vpack.c.b16 %v2499, %v2497
        %v2516 = vpack.c.b16 %v2500, %v2498
        %2533 = vmatpush.bf16.msra.mxu0 %v2515
        %2534 = vmatpush.bf16.msra.mxu0 %v2513
        %2535 = vmatpush.bf16.msra.mxu0 %v2511
        %2536 = vmatpush.bf16.msra.mxu0 %v2509
        %2537 = vmatpush.bf16.msra.mxu0 %v2507
        %2538 = vmatpush.bf16.msra.mxu0 %v2505
        %2539 = vmatpush.bf16.msra.mxu0 %v2503
        %2540 = vmatpush.bf16.msra.mxu0 %v2501
        %2541 = vmatmul.bf16.gmra.mxu0 %v2430
        %v2542 = vpop.f32.mrf.mxu0
        %v2543 = vadd.f32 %v2449, %v2542
        %v2544 = vpop.f32.mrf.mxu0
        %2545 = vdwg.mxu0
        %2546 = vmatpush.bf16.msra.mxu0 %v2516
        %2547 = vmatpush.bf16.msra.mxu0 %v2514
        %2548 = vmatpush.bf16.msra.mxu0 %v2512
        %2549 = vmatpush.bf16.msra.mxu0 %v2510
        %2550 = vmatpush.bf16.msra.mxu0 %v2508
        %2551 = vmatpush.bf16.msra.mxu0 %v2506
        %2552 = vmatpush.bf16.msra.mxu0 %v2504
        %2553 = vmatpush.bf16.msra.mxu0 %v2502
        %2554 = vmatmul.bf16.gmra.mxu0 %v2430
        %v2555 = vpop.f32.mrf.mxu0
        %v2556 = vadd.f32 %v2450, %v2555
        %v2557 = vpop.f32.mrf.mxu0
        %2558 = vdwg.mxu0
        %v2559 = vmax.f32 %v2543, 0.0
        %v2560 = vmax.f32 %v2556, 0.0
        %v2561 = vpack.c.bf16 %v2559, %v2559
        %v2562 = vpack.c.bf16 %v2560, %v2560
        %v2563 = vld [vmem:[%s1010] sm:$0xf]
        %v2564 = vld [vmem:[%s1010 + $0x4] sm:$0xf]
        %v2565 = vld [vmem:[%s1010 + $0x8] sm:$0xf]
        %v2566 = vld [vmem:[%s1010 + $0xc] sm:$0xf]
        %v2567 = vld [vmem:[%s1010 + $0x10] sm:$0xf]
        %v2568 = vld [vmem:[%s1010 + $0x14] sm:$0xf]
        %v2569 = vld [vmem:[%s1010 + $0x18] sm:$0xf]
        %v2570 = vld [vmem:[%s1010 + $0x1c] sm:$0xf]
        %v2571 = vld [vmem:[%s1010 + $0x20] sm:$0xf]
        %v2572 = vld [vmem:[%s1010 + $0x24] sm:$0xf]
        %v2573 = vld [vmem:[%s1010 + $0x28] sm:$0xf]
        %v2574 = vld [vmem:[%s1010 + $0x2c] sm:$0xf]
        %v2575 = vld [vmem:[%s1010 + $0x30] sm:$0xf]
        %v2576 = vld [vmem:[%s1010 + $0x34] sm:$0xf]
        %v2577 = vld [vmem:[%s1010 + $0x38] sm:$0xf]
        %v2578 = vld [vmem:[%s1010 + $0x3c] sm:$0xf]
        %v2579 = vld [vmem:[%s1010 + $0x40] sm:$0xf]
        %v2580 = vld [vmem:[%s1010 + $0x44] sm:$0xf]
        %v2581 = vld [vmem:[%s1010 + $0x48] sm:$0xf]
        %v2582 = vld [vmem:[%s1010 + $0x4c] sm:$0xf]
        %v2583 = vld [vmem:[%s1010 + $0x50] sm:$0xf]
        %v2584 = vld [vmem:[%s1010 + $0x54] sm:$0xf]
        %v2585 = vld [vmem:[%s1010 + $0x58] sm:$0xf]
        %v2586 = vld [vmem:[%s1010 + $0x5c] sm:$0xf]
        %v2587 = vld [vmem:[%s1010 + $0x60] sm:$0xf]
        %v2588 = vld [vmem:[%s1010 + $0x64] sm:$0xf]
        %v2589 = vld [vmem:[%s1010 + $0x68] sm:$0xf]
        %v2590 = vld [vmem:[%s1010 + $0x6c] sm:$0xf]
        %v2591 = vld [vmem:[%s1010 + $0x70] sm:$0xf]
        %v2592 = vld [vmem:[%s1010 + $0x74] sm:$0xf]
        %v2593 = vld [vmem:[%s1010 + $0x78] sm:$0xf]
        %v2594 = vld [vmem:[%s1010 + $0x7c] sm:$0xf]
        %v2595 = vld [vmem:[%s1013] sm:$0x1]
        %v2597 = vperm.slane %v2595, 0
        %v2631 = vunpack.c.l.b16 %v2563
        %v2632 = vunpack.c.l.b16 %v2564
        %v2633 = vunpack.c.l.b16 %v2565
        %v2634 = vunpack.c.l.b16 %v2566
        %v2635 = vunpack.c.l.b16 %v2567
        %v2636 = vunpack.c.l.b16 %v2568
        %v2637 = vunpack.c.l.b16 %v2569
        %v2638 = vunpack.c.l.b16 %v2570
        %v2639 = vunpack.c.l.b16 %v2571
        %v2640 = vunpack.c.l.b16 %v2572
        %v2641 = vunpack.c.l.b16 %v2573
        %v2642 = vunpack.c.l.b16 %v2574
        %v2643 = vunpack.c.l.b16 %v2575
        %v2644 = vunpack.c.l.b16 %v2576
        %v2645 = vunpack.c.l.b16 %v2577
        %v2646 = vunpack.c.l.b16 %v2578
        %v2647 = vunpack.c.l.b16 %v2579
        %v2648 = vunpack.c.l.b16 %v2580
        %v2649 = vunpack.c.l.b16 %v2581
        %v2650 = vunpack.c.l.b16 %v2582
        %v2651 = vunpack.c.l.b16 %v2583
        %v2652 = vunpack.c.l.b16 %v2584
        %v2653 = vunpack.c.l.b16 %v2585
        %v2654 = vunpack.c.l.b16 %v2586
        %v2655 = vunpack.c.l.b16 %v2587
        %v2656 = vunpack.c.l.b16 %v2588
        %v2657 = vunpack.c.l.b16 %v2589
        %v2658 = vunpack.c.l.b16 %v2590
        %v2659 = vunpack.c.l.b16 %v2591
        %v2660 = vunpack.c.l.b16 %v2592
        %v2661 = vunpack.c.l.b16 %v2593
        %v2662 = vunpack.c.l.b16 %v2594
        %v2663 = vpack.c.b16 %v2632, %v2631
        %v2664 = vpack.c.b16 %v2634, %v2633
        %v2665 = vpack.c.b16 %v2636, %v2635
        %v2666 = vpack.c.b16 %v2638, %v2637
        %v2667 = vpack.c.b16 %v2640, %v2639
        %v2668 = vpack.c.b16 %v2642, %v2641
        %v2669 = vpack.c.b16 %v2644, %v2643
        %v2670 = vpack.c.b16 %v2646, %v2645
        %v2671 = vpack.c.b16 %v2648, %v2647
        %v2672 = vpack.c.b16 %v2650, %v2649
        %v2673 = vpack.c.b16 %v2652, %v2651
        %v2674 = vpack.c.b16 %v2654, %v2653
        %v2675 = vpack.c.b16 %v2656, %v2655
        %v2676 = vpack.c.b16 %v2658, %v2657
        %v2677 = vpack.c.b16 %v2660, %v2659
        %v2678 = vpack.c.b16 %v2662, %v2661
        %2695 = vmatpush.bf16.msra.mxu0 %v2670
        %2696 = vmatpush.bf16.msra.mxu0 %v2669
        %2697 = vmatpush.bf16.msra.mxu0 %v2668
        %2698 = vmatpush.bf16.msra.mxu0 %v2667
        %2699 = vmatpush.bf16.msra.mxu0 %v2666
        %2700 = vmatpush.bf16.msra.mxu0 %v2665
        %2701 = vmatpush.bf16.msra.mxu0 %v2664
        %2702 = vmatpush.bf16.msra.mxu0 %v2663
        %2703 = vmatmul.bf16.gmra.mxu0 %v2561
        %v2704 = vpop.f32.mrf.mxu0
        %v2705 = vadd.f32 %v2597, %v2704
        %v2706 = vpop.f32.mrf.mxu0
        %2707 = vdwg.mxu0
        %2708 = vmatpush.bf16.msra.mxu0 %v2678
        %2709 = vmatpush.bf16.msra.mxu0 %v2677
        %2710 = vmatpush.bf16.msra.mxu0 %v2676
        %2711 = vmatpush.bf16.msra.mxu0 %v2675
        %2712 = vmatpush.bf16.msra.mxu0 %v2674
        %2713 = vmatpush.bf16.msra.mxu0 %v2673
        %2714 = vmatpush.bf16.msra.mxu0 %v2672
        %2715 = vmatpush.bf16.msra.mxu0 %v2671
        %2716 = vmatmul.bf16.gmra.mxu0 %v2562
        %v2717 = vpop.f32.mrf.mxu0
        %v2718 = vadd.f32 %v2705, %v2717
        %v2719 = vpop.f32.mrf.mxu0
        %2720 = vdwg.mxu0
        %v2721 = vadd.f32 %v2718, %v2399
        %2722 = vst [vmem:[#allocation2] sm:$0xff] %v2721
        %p2723 = scmp.eq.s32.totalorder %s46, 1
        // Predicated region
        $region113: #{tpu_custom_call.1} parent=107 // pred_check
          %p2724 = pneg %p2723
        $region114: #{tpu_custom_call.1} parent=107 // pred_check_branch
          %2726 = sbr.rel (%p2724) target = $region116
        $region115: #{tpu_custom_call.1} parent=107 // pred_region
          %v2727 = vld [vmem:[%s18] sm:$0x1]
          %v2728 = vld [vmem:[%s19] sm:$0x1]
          %2729 = vadd.xlane.f32.xlu0 %v2721
          %v2730 = vpop.xlane.xlu0 %2729
          %v2731 = vmul.f32 %v2730, %v1032
          %v2732 = vsub.f32 %v2721, %v2731
          %v2733 = vmul.f32 %v2732, %v2732
          %2734 = vadd.xlane.f32.xlu0 %v2733
          %v2735 = vpop.xlane.xlu0 %2734
          %v2736 = vmul.f32 %v2735, %v1032
          %v2737 = vadd.f32 %v2736, 1e-05
          %v2738 = vrsqrt.pop %v2737
          %v2739 = vmul.f32 %v2738, %v2737
          %v2740 = vmul.f32 %v2739, %v2738
          %v2741 = vmul.f32 0.5, %v2740
          %v2742 = vsub.f32 1.5, %v2741
          %v2743 = vmul.f32 %v2738, %v2742
          %vm2744 = vweird.f32 %v2737
          %vm2745 = vweird.f32 %v2738
          %vm2746 = vmor %vm2744, %vm2745
          %v2747 = vsel %vm2746, %v2738, %v2743
          %v2748 = vmul.f32 %v2732, %v2747
          %v2750 = vperm.slane %v2727, 0
          %v2752 = vmul.f32 %v2748, %v2750
          %v2754 = vperm.slane %v2728, 0
          %v2756 = vadd.f32 %v2752, %v2754
          %2757 = vst [vmem:[%s936] sm:$0xff] %v2756
          %v2758 = vpack.c.bf16 %v2756, %v2756
          %v2759 = vld [vmem:[%s20] sm:$0xf]
          %v2760 = vld [vmem:[%s20 + $0x4] sm:$0xf]
          %v2761 = vld [vmem:[%s20 + $0x8] sm:$0xf]
          %v2762 = vld [vmem:[%s20 + $0xc] sm:$0xf]
          %v2763 = vld [vmem:[%s20 + $0x10] sm:$0xf]
          %v2764 = vld [vmem:[%s20 + $0x14] sm:$0xf]
          %v2765 = vld [vmem:[%s20 + $0x18] sm:$0xf]
          %v2766 = vld [vmem:[%s20 + $0x1c] sm:$0xf]
          %v2767 = vld [vmem:[%s20 + $0x20] sm:$0xf]
          %v2768 = vld [vmem:[%s20 + $0x24] sm:$0xf]
          %v2769 = vld [vmem:[%s20 + $0x28] sm:$0xf]
          %v2770 = vld [vmem:[%s20 + $0x2c] sm:$0xf]
          %v2771 = vld [vmem:[%s20 + $0x30] sm:$0xf]
          %v2772 = vld [vmem:[%s20 + $0x34] sm:$0xf]
          %v2773 = vld [vmem:[%s20 + $0x38] sm:$0xf]
          %v2774 = vld [vmem:[%s20 + $0x3c] sm:$0xf]
          %v2775 = vld [vmem:[%s21] sm:$0x1]
          %v2792 = vunpack.c.l.b16 %v2759
          %v2793 = vunpack.c.l.b16 %v2760
          %v2794 = vunpack.c.l.b16 %v2761
          %v2795 = vunpack.c.l.b16 %v2762
          %v2796 = vunpack.c.l.b16 %v2763
          %v2797 = vunpack.c.l.b16 %v2764
          %v2798 = vunpack.c.l.b16 %v2765
          %v2799 = vunpack.c.l.b16 %v2766
          %v2800 = vunpack.c.l.b16 %v2767
          %v2801 = vunpack.c.l.b16 %v2768
          %v2802 = vunpack.c.l.b16 %v2769
          %v2803 = vunpack.c.l.b16 %v2770
          %v2804 = vunpack.c.l.b16 %v2771
          %v2805 = vunpack.c.l.b16 %v2772
          %v2806 = vunpack.c.l.b16 %v2773
          %v2807 = vunpack.c.l.b16 %v2774
          %v2808 = vpack.c.b16 %v2793, %v2792
          %v2809 = vpack.c.b16 %v2795, %v2794
          %v2810 = vpack.c.b16 %v2797, %v2796
          %v2811 = vpack.c.b16 %v2799, %v2798
          %v2812 = vpack.c.b16 %v2801, %v2800
          %v2813 = vpack.c.b16 %v2803, %v2802
          %v2814 = vpack.c.b16 %v2805, %v2804
          %v2815 = vpack.c.b16 %v2807, %v2806
          %2824 = vmatpush.bf16.msra.mxu0 %v2815
          %2825 = vmatpush.bf16.msra.mxu0 %v2814
          %2826 = vmatpush.bf16.msra.mxu0 %v2813
          %2827 = vmatpush.bf16.msra.mxu0 %v2812
          %2828 = vmatpush.bf16.msra.mxu0 %v2811
          %2829 = vmatpush.bf16.msra.mxu0 %v2810
          %2830 = vmatpush.bf16.msra.mxu0 %v2809
          %2831 = vmatpush.bf16.msra.mxu0 %v2808
          %2832 = vmatmul.bf16.gmra.mxu0 %v2758
          %v2833 = vpop.f32.mrf.mxu0
          %v2834 = vadd.f32 %v2775, %v2833
          %v2835 = vpop.f32.mrf.mxu0
          %2836 = vdwg.mxu0
          %v2837 = vtanh.pop %v2834
          %2838 = vst [vmem:[%s942] sm:$0x1] %v2837
        $region116: #{tpu_custom_call.1} parent=107 // pred_fallthru
          _
        %s2839 = sand.u32 %s613, 1
        %s2840 = scalar_lea.sflag [#allocation4], %s2839
        %s2841 = sand.u32 %s613, 1
        %s2842 = smul.addr %s2841, 8
        %s2843 = scalar_lea.vmem [#allocation3], %s2842
        %s2844 = sand.u32 %s639, 1
        %s2845 = scalar_lea.sflag [#allocation6], %s2844
        %s2846 = sand.u32 %s639, 1
        %s2847 = scalar_lea.vmem [#allocation5], %s2846
        // Predicated region
        $region117: #{tpu_custom_call.1} parent=107 // pred_check
          %p2848 = pneg %p623
        $region118: #{tpu_custom_call.1} parent=107 // pred_check_branch
          %2850 = sbr.rel (%p2848) target = $region120
        $region119: #{tpu_custom_call.1} parent=107 // pred_region
          %2852 = vsyncadd %s2840, 0
          %s2853 = smul.addr %s45, 8
          %s2854 = scalar_lea.hbm %s22, %s2853
          %s2856 = sshll.u32 %s2843, 4
          %s2857 = int_to_ptr.vmem [resolvable:$true] %s2856
          %s2858 = sshll.u32 %s2854, 4
          %s2859 = int_to_ptr.hbm [resolvable:$true] %s2858
          %2861 = dma.vmem_to_hbm [thread:$0]  %s2857, 128, %s2859, %s2840
        $region120: #{tpu_custom_call.1} parent=107 // pred_fallthru
          _
        // Predicated region
        $region121: #{tpu_custom_call.1} parent=107 // pred_check
          %p2862 = pneg %p649
        $region122: #{tpu_custom_call.1} parent=107 // pred_check_branch
          %2864 = sbr.rel (%p2862) target = $region124
        $region123: #{tpu_custom_call.1} parent=107 // pred_region
          %2866 = vsyncadd %s2845, 0
          %s2867 = scalar_lea.hbm %s23, %s45
          %s2869 = sshll.u32 %s2847, 4
          %s2870 = int_to_ptr.vmem [resolvable:$true] %s2869
          %s2871 = sshll.u32 %s2867, 4
          %s2872 = int_to_ptr.hbm [resolvable:$true] %s2871
          %2874 = dma.vmem_to_hbm [thread:$0]  %s2870, 16, %s2872, %s2845
        $region124: #{tpu_custom_call.1} parent=107 // pred_fallthru
          _
      $region108: #{tpu_custom_call.1} parent=5 // pred_fallthru
        _
      %p2875 = scmp.le.s32.totalorder 2, %s36
      // Predicated region
      $region125: #{tpu_custom_call.1} parent=5 // pred_check
        %p2876 = pneg %p2875
      $region126: #{tpu_custom_call.1} parent=5 // pred_check_branch
        %2878 = sbr.rel (%p2876) target = $region128
      $region127: #{tpu_custom_call.1} parent=5 // pred_region
        %s2879 = ssub.s32 %s36, 2
        // Predicated region
        $region129: #{tpu_custom_call.1} parent=127 // pred_check
          %p2880 = pneg %p629
        $region130: #{tpu_custom_call.1} parent=127 // pred_check_branch
          %2882 = sbr.rel (%p2880) target = $region132
        $region131: #{tpu_custom_call.1} parent=127 // pred_region
          %s2883 = sand.u32 %s614, 1
          %s2884 = scalar_lea.sflag [#allocation4], %s2883
          %s2885 = sand.u32 %s614, 1
          %s2886 = smul.addr %s2885, 8
          %s2887 = scalar_lea.vmem [#allocation3], %s2886
          %2889 = dma.done %s2884, 128
        $region132: #{tpu_custom_call.1} parent=127 // pred_fallthru
          _
        // Predicated region
        $region133: #{tpu_custom_call.1} parent=127 // pred_check
          %p2890 = pneg %p655
        $region134: #{tpu_custom_call.1} parent=127 // pred_check_branch
          %2892 = sbr.rel (%p2890) target = $region136
        $region135: #{tpu_custom_call.1} parent=127 // pred_region
          %s2893 = sand.u32 %s640, 1
          %s2894 = scalar_lea.sflag [#allocation6], %s2893
          %s2895 = sand.u32 %s640, 1
          %s2896 = scalar_lea.vmem [#allocation5], %s2895
          %2898 = dma.done %s2894, 16
        $region136: #{tpu_custom_call.1} parent=127 // pred_fallthru
          _
      $region128: #{tpu_custom_call.1} parent=5 // pred_fallthru
        _
    $region6: #{tpu_custom_call.1} parent=1 // loop_footer
      %s40 = sadd.s32 1, %s36
    $region7: #{tpu_custom_call.1} parent=1 // loop_footer_branch
      %35 = sbr.rel target = $region3
    $region8: #{tpu_custom_call.1} parent=1 // loop_exit
      _
    %2899 = vsyncpa [#allocation4], 1
    %s2900 = scalar_lea.sflag [#allocation4], 1
    %2901 = vsyncpa %s2900, 1
    %2902 = vsyncpa [#allocation6], 1
    %s2903 = scalar_lea.sflag [#allocation6], 1
    %2904 = vsyncpa %s2903, 1

</llo_original>
